<compile_context>
chip_gen: v6e
topology: v6e:2x2x1
jax: 0.10.0
libtpu: 0.0.40
codegen_flags: <defaults>
</compile_context>

<pallas_src>
import functools

import jax
import jax.numpy as jnp
from jax.experimental import pallas as pl
from jax.experimental.pallas import tpu as pltpu

_LANE = 128


def _round_up(x, m):
    return ((x + m - 1) // m) * m


def _vmem_capacity_bytes():
    """Physical per-core VMEM, generation aware (used to cap vmem_limit_bytes)."""
    try:
        cap = int(pltpu.get_tpu_info().vmem_capacity_bytes)
        if cap > 0:
            return cap
    except Exception:
        pass
    try:
        kind = jax.devices()[0].device_kind.lower()
        if "v7" in kind:
            return 64 << 20
    except Exception:
        pass
    return 128 << 20


def _mxu_tile_width():
    """Preferred MXU column width: 256 on v6e/v7x, 128 on v5e/older/unknown."""
    try:
        kind = jax.devices()[0].device_kind.lower()
        if "v6" in kind or "v7" in kind:
            return 256
    except Exception:
        pass
    return _LANE


def _conv3d_kernel(*refs, K, Cin_p, Ho, Wo, tCout, input_resident, w_resident):
    """One grid step = one (sample n, output-depth slice d, Cout tile ct).

    refs:
      refs[:n_in]  x refs : either one (Dp, Hp, Wp, Cin_p) resident volume or
                            K kd-shifted (Hp, Wp, Cin_p) depth-slice views
      then         w_ref  : (nCt, K, K, K*Cin_p, tCout) if w_resident else
                            (K, K, K*Cin_p, tCout)
                   b_ref  : (1, tCout) fp32 bias
                   o_ref  : (Ho*Wo, tCout) lane-dense output slab
                   col_ref: VMEM scratch (K, Hp*Wo, K*Cin_p) kw-im2col slabs
    """
    n_in = 1 if input_resident else K
    x_refs = refs[:n_in]
    w_ref, b_ref, o_ref, col_ref = refs[n_in:n_in + 4]

    d = pl.program_id(1)
    ct = pl.program_id(2)
    Hp = x_refs[0].shape[1] if input_resident else x_refs[0].shape[0]

    # Build the kw-im2col slabs ONCE per (n, d).  ct is the innermost grid
    # axis and col_ref is a persistent VMEM scratch, so every Cout tile
    # (ct > 0) reuses the slabs instead of rebuilding them (saves K^2 full-slab
    # stores + relayouts per extra Cout tile; the vst slot is scarce on v5e).
    @pl.when(ct == 0)
    def _build_col():
        for kd in range(K):
            if input_resident:
                xk = x_refs[0][d + kd]                      # (Hp, Wp, Cin_p)
                for kw in range(K):
                    col_ref[kd, :, kw * Cin_p:(kw + 1) * Cin_p] = (
                        xk[:, kw:kw + Wo, :].reshape(Hp * Wo, Cin_p))
            else:
                xr = x_refs[kd]
                for kw in range(K):
                    col_ref[kd, :, kw * Cin_p:(kw + 1) * Cin_p] = (
                        xr[:, kw:kw + Wo, :].reshape(Hp * Wo, Cin_p))
    # TODO(synk): the kw slices still relayout when Wo is not a multiple of 8;
    # a flattened (Hp*Wp, Cin_p) row-offset formulation (compact Wp->Wo in the
    # epilogue) would remove the im2col stores entirely.

    # kh offsets are contiguous row offsets of the flattened (h, w) axis ->
    # cheap slicing.  One fat MXU matmul per (kd, kh), chained fp32
    # accumulation as a value (no per-tap RMW of a VMEM accumulator).
    acc = jnp.zeros((Ho * Wo, tCout), jnp.float32)
    for kd in range(K):
        for kh in range(K):
            lhs = col_ref[kd, kh * Wo:kh * Wo + Ho * Wo, :]
            rhs = w_ref[ct, kd, kh] if w_resident else w_ref[kd, kh]
            acc = acc + jnp.dot(lhs, rhs, preferred_element_type=jnp.float32)

    # fp32 epilogue (bias + cast); tCout is a multiple of 128 -> unmasked vst.
    o_ref[...] = (acc + b_ref[...]).astype(o_ref.dtype)


def conv3d_pallas(x, w, b=None, *, w_scale=1.0, compute_dtype=None,
                  input_mode=None, weight_resident=None):
    """Equivalent of F.conv3d(x, w * w_scale, b, padding=1), stride 1.

    x: (N, Cin, D, H, W)   w: (Cout, Cin, K, K, K)   b: (Cout,) or None.
    compute_dtype: MXU operand dtype.  None (default) = bfloat16 operands with
      fp32 accumulation/epilogue (MXU-native on v5e/v6e/v7x); pass jnp.float32
      for full-precision operands.
    input_mode / weight_resident: None = auto (VMEM-budgeted); "volume" /
      "slices" and True / False force the blocking (used by the self-test).
    """
    N, Cin, D, H, W = x.shape
    Cout, Cin_w, K, _, _ = w.shape
    assert Cin_w == Cin
    pad = 1                                   # the PyTorch module hardcodes padding=1
    Do, Ho, Wo = D + 2 * pad - K + 1, H + 2 * pad - K + 1, W + 2 * pad - K + 1
    Dp, Hp, Wp = D + 2 * pad, H + 2 * pad, W + 2 * pad

    out_dtype = x.dtype
    cdt = (jnp.dtype(compute_dtype) if compute_dtype is not None
           else jnp.dtype(jnp.bfloat16))

    # Lane-dense channel padding.
    Cin_p = _round_up(Cin, _LANE)
    Cout_p = _round_up(Cout, _LANE)

    # ---- generation-aware resource model -----------------------------------
    vmem_phys = _vmem_capacity_bytes()
    # Never request more scoped VMEM than physically exists: v7x (64 MiB) is
    # capped at 56 MiB; v5e/v6e (128 MiB) keep the 100 MiB ceiling.
    vmem_cap = int(min(vmem_phys - (8 << 20), 100 << 20))

    itc = jnp.dtype(cdt).itemsize
    ito = jnp.dtype(out_dtype).itemsize
    rows = Ho * Wo

    # Cout tile width: match the MXU (2x256x256 on v6e/v7x, 4x128x128 on v5e).
    mxu_w = _mxu_tile_width()
    tCout = mxu_w if (Cout_p >= mxu_w and Cout_p % mxu_w == 0) else _LANE
    tCout = min(tCout, Cout_p)

    col_bytes = K * Hp * Wo * K * Cin_p * itc           # persistent im2col slabs
    in_bytes_vol = 2 * Dp * Hp * Wp * Cin_p * itc       # whole volume, 2-buffered
    in_bytes_slc = 2 * K * Hp * Wp * Cin_p * itc        # K slice views, 2-buffered
    w_bytes_full = 2 * K * K * K * Cin_p * Cout_p * itc

    def _w_bytes_tile(tco):
        return 2 * K * K * K * Cin_p * tco * itc

    def _step_bytes(tco, in_b, w_b):
        return (col_bytes + in_b + w_b
                + 2 * rows * tco * ito          # output tile, 2-buffered
                + rows * tco * 4                # fp32 accumulator (vregs/VMEM)
                + 2 * Cout_p * 4)               # bias

    if tCout > _LANE and _step_bytes(tCout, min(in_bytes_vol, in_bytes_slc),
                                     _w_bytes_tile(tCout)) > vmem_cap:
        tCout = _LANE                           # 256-wide tile does not fit
    nCt = Cout_p // tCout

    # Input blocking: keep the whole padded volume VMEM-resident when it fits
    # (one HBM fetch per sample instead of ~K fetches per depth slice).
    if input_mode is None:
        input_resident = (
            _step_bytes(tCout, in_bytes_vol, _w_bytes_tile(tCout)) <= vmem_cap)
    else:
        input_resident = (input_mode == "volume")
    in_bytes = in_bytes_vol if input_resident else in_bytes_slc
    # TODO(synk): when even the slice views blow the budget (very large H*W on
    # v7x), add an Ho-tile grid axis and/or a manual rolling-depth-window DMA.

    # Weight blocking: keep the full folded weight VMEM-resident (DMA'd once,
    # constant index_map) when it fits; otherwise stream one Cout tile per ct.
    if weight_resident is None:
        w_res = _step_bytes(tCout, in_bytes, w_bytes_full) <= vmem_cap
    else:
        w_res = bool(weight_resident)
    w_bytes = w_bytes_full if w_res else _w_bytes_tile(tCout)
    # TODO(synk): for streamed weights with small Ho*Wo, reorder the grid to
    # (ct, n, d) so the weight is fetched nCt times instead of N*Do*nCt.

    est = _step_bytes(tCout, in_bytes, w_bytes)
    vmem_limit = int(min(max(int(est * 1.25), 32 << 20), vmem_cap))

    # ---- wrapper-side layout plumbing (cheap XLA ops) -----------------------
    # NCDHW -> NDHWC, zero-pad spatial by 1 and channels to Cin_p, cast to the
    # MXU operand dtype.
    # TODO(synk): keep activations NDHWC end-to-end across the network and fold
    # the zero padding into the kernel to drop these extra HBM round trips.
    x_cl = jnp.transpose(x, (0, 2, 3, 4, 1))
    x_pad = jnp.pad(
        x_cl, ((0, 0), (pad, pad), (pad, pad), (pad, pad), (0, Cin_p - Cin))
    ).astype(cdt)

    # (Cout, Cin, kd, kh, kw) -> (nCt, kd, kh, kw*Cin_p + ci, tCout); the
    # w_scale (wscale/lrmul) factor is folded in here instead of rewriting the
    # full weight tensor in the caller.
    w_t = jnp.transpose(w, (2, 3, 4, 1, 0)).astype(jnp.float32) * jnp.float32(w_scale)
    w_t = jnp.pad(w_t, ((0, 0), (0, 0), (0, 0),
                        (0, Cin_p - Cin), (0, Cout_p - Cout)))
    w_col = w_t.reshape(K, K, K * Cin_p, nCt, tCout)
    w_col = jnp.transpose(w_col, (3, 0, 1, 2, 4)).astype(cdt)

    if b is None:
        b = jnp.zeros((Cout,), jnp.float32)
    b_p = jnp.pad(b.astype(jnp.float32), (0, Cout_p - Cout)).reshape(1, Cout_p)

    # ---- BlockSpecs ---------------------------------------------------------
    if input_resident:
        x_specs = [pl.BlockSpec((None, Dp, Hp, Wp, Cin_p),
                                lambda n, d, ct: (n, 0, 0, 0, 0))]
        x_args = [x_pad]
    else:
        # K views of the same padded input, kd-shifted in depth.  Their
        # index_maps do not depend on ct, so consecutive Cout tiles reuse the
        # same VMEM blocks without re-DMA.
        x_specs = [pl.BlockSpec((None, None, Hp, Wp, Cin_p),
                                (lambda n, d, ct, _kd=kd: (n, d + _kd, 0, 0, 0)))
                   for kd in range(K)]
        x_args = [x_pad] * K

    if w_res:
        w_spec = pl.BlockSpec((nCt, K, K, K * Cin_p, tCout),
                              lambda n, d, ct: (0, 0, 0, 0, 0))
    else:
        w_spec = pl.BlockSpec((None, K, K, K * Cin_p, tCout),
                              lambda n, d, ct: (ct, 0, 0, 0, 0))
    b_spec = pl.BlockSpec((1, tCout), lambda n, d, ct: (0, ct))
    out_spec = pl.BlockSpec((None, None, Ho * Wo, tCout),
                            lambda n, d, ct: (n, d, 0, ct))

    kernel = functools.partial(
        _conv3d_kernel, K=K, Cin_p=Cin_p, Ho=Ho, Wo=Wo, tCout=tCout,
        input_resident=input_resident, w_resident=w_res)

    out2 = pl.pallas_call(
        kernel,
        out_shape=jax.ShapeDtypeStruct((N, Do, Ho * Wo, Cout_p), out_dtype),
        grid_spec=pltpu.PrefetchScalarGridSpec(
            num_scalar_prefetch=0,
            grid=(N, Do, nCt),
            in_specs=x_specs + [w_spec, b_spec],
            out_specs=out_spec,
            scratch_shapes=[pltpu.VMEM((K, Hp * Wo, K * Cin_p), cdt)]),
        compiler_params=pltpu.CompilerParams(
            dimension_semantics=("parallel", "parallel", "arbitrary"),
            vmem_limit_bytes=vmem_limit),
    )(*x_args, w_col, b_p)

    out_cl = out2.reshape(N, Do, Ho, Wo, Cout_p)[..., :Cout]
    return jnp.transpose(out_cl, (0, 4, 1, 2, 3))            # back to NCDHW


class Conv3dPallas:
    """Pallas port of 3DGAN_pytorch/modules/Conv3d.py::Conv3d (forward).

    MXU operands default to bfloat16 (fp32 accumulate/epilogue) — the native
    fast path on v5e/v6e/v7x.  Pass compute_dtype=jnp.float32 for exact fp32.
    """

    def __init__(self, input_channels, output_channels, kernel_size=3,
                 gain=2 ** 0.5, use_wscale=False, lrmul=1, bias=True, *,
                 key, compute_dtype=None):
        # NOTE: faithful to the PyTorch module, which uses
        # input_channels * kernel_size ** 2 as fan-in (not ** 3).
        he_std = gain * (input_channels * kernel_size ** 2) ** (-0.5)
        self.kernel_size = kernel_size
        self.compute_dtype = compute_dtype     # None -> bfloat16 operands
        if use_wscale:
            init_std = 1.0 / lrmul
            self.w_lrmul = he_std * lrmul
        else:
            init_std = he_std / lrmul
            self.w_lrmul = lrmul
        self.weight = init_std * jax.random.normal(
            key, (output_channels, input_channels,
                  kernel_size, kernel_size, kernel_size), dtype=jnp.float32)
        if bias:
            self.bias = jnp.zeros((output_channels,), jnp.float32)
            self.b_lrmul = lrmul
        else:
            self.bias = None

    def __call__(self, x, **kwargs):
        b = self.bias * self.b_lrmul if self.bias is not None else None
        return conv3d_pallas(x, self.weight, b, w_scale=self.w_lrmul,
                             compute_dtype=self.compute_dtype, **kwargs)


if __name__ == "__main__":
    key = jax.random.PRNGKey(0)
    k_w, k_x = jax.random.split(key)

    N, Cin, Cout = 2, 4, 8
    D = H = W = 8

    module = Conv3dPallas(Cin, Cout, kernel_size=3, use_wscale=True, key=k_w)
    x = jax.random.normal(k_x, (N, Cin, D, H, W), dtype=jnp.float32)

    # Reference: XLA conv (same semantics as F.conv3d, padding=1), fp32.
    w_scaled = module.weight * module.w_lrmul
    b_scaled = module.bias * module.b_lrmul
    ref = jax.lax.conv_general_dilated(
        x, w_scaled,
        window_strides=(1, 1, 1),
        padding=((1, 1), (1, 1), (1, 1)),
        dimension_numbers=("NCDHW", "OIDHW", "NCDHW"),
        precision=jax.lax.Precision.HIGHEST,
    ) + b_scaled.reshape(1, Cout, 1, 1, 1)

    # 1) Default path: bf16 MXU operands, fp32 accumulate, auto blocking
    #    (volume-resident input + resident folded weight at these shapes).
    out = jax.block_until_ready(module(x))
    assert out.shape == (N, Cout, D, H, W), out.shape
    assert jnp.allclose(out, ref, atol=1e-1, rtol=1e-1), float(
        jnp.max(jnp.abs(out - ref)))

    # 2) fp32 operand path (opt-in): tight tolerance.
    module_f32 = Conv3dPallas(Cin, Cout, kernel_size=3, use_wscale=True,
                              key=k_w, compute_dtype=jnp.float32)
    out_f32 = jax.block_until_ready(module_f32(x))
    assert jnp.allclose(out_f32, ref, atol=1e-4, rtol=1e-4), float(
        jnp.max(jnp.abs(out_f32 - ref)))

    # 3) Large-shape fallback blocking (K depth-slice input views + streamed
    #    weight tiles), forced at small shapes so the self-test covers it.
    out_slc = jax.block_until_ready(
        module(x, input_mode="slices", weight_resident=False))
    assert jnp.allclose(out_slc, ref, atol=1e-1, rtol=1e-1), float(
        jnp.max(jnp.abs(out_slc - ref)))

    print("KERNEL_OK")
</pallas_src>

<mosaic_0001>
module attributes {stable_mosaic.version = 11 : i64} {
  func.func @_conv3d_kernel(%arg0: i32, %arg1: i32, %arg2: i32, %arg3: memref<1x10x10x10x128xbf16, #tpu.memory_space<vmem>>, %arg4: memref<1x3x3x384x128xbf16, #tpu.memory_space<vmem>>, %arg5: memref<1x128xf32, #tpu.memory_space<vmem>>, %arg6: memref<1x1x64x128xf32, #tpu.memory_space<vmem>>, %arg7: memref<3x80x384xbf16, #tpu.memory_space<vmem>>) attributes {dimension_semantics = [#tpu.dimension_semantics<parallel>, #tpu.dimension_semantics<parallel>, #tpu.dimension_semantics<arbitrary>], iteration_bounds = array<i64: 2, 8, 1>, scalar_prefetch = 0 : i64, scratch_operands = 1 : i64, tpu.core_type = #tpu.core_type<tc>, window_params = [{transform_indices = @transform_0, window_bounds = array<i64: 1, 10, 10, 10, 128>}, {pipeline_mode = #tpu.pipeline_mode<synchronous>, transform_indices = @transform_1, window_bounds = array<i64: 1, 3, 3, 384, 128>}, {transform_indices = @transform_2, window_bounds = array<i64: 1, 128>}, {transform_indices = @transform_3, window_bounds = array<i64: 1, 1, 64, 128>}]} {
    %c0_i32 = arith.constant 0 : i32
    %0 = arith.cmpi eq, %arg2, %c0_i32 : i32
    %1 = arith.extui %0 : i1 to i32
    %c0_i32_0 = arith.constant 0 : i32
    %2 = arith.cmpi ne, %1, %c0_i32_0 : i32
    scf.if %2 {
      %c0_i32_74 = arith.constant 0 : i32
      %73 = arith.addi %arg1, %c0_i32_74 : i32
      %c0_75 = arith.constant 0 : index
      %74 = arith.index_cast %73 : i32 to index
      %c0_76 = arith.constant 0 : index
      %c0_77 = arith.constant 0 : index
      %c0_78 = arith.constant 0 : index
      %75 = vector.load %arg3[%c0_75, %74, %c0_76, %c0_77, %c0_78] : memref<1x10x10x10x128xbf16, #tpu.memory_space<vmem>>, vector<1x1x10x10x128xbf16>
      %76 = vector.shape_cast %75 : vector<1x1x10x10x128xbf16> to vector<10x10x128xbf16>
      %77 = vector.extract_strided_slice %76 {offsets = [0, 0, 0], sizes = [10, 8, 128], strides = [1, 1, 1]} : vector<10x10x128xbf16> to vector<10x8x128xbf16>
      %78 = vector.shape_cast %77 : vector<10x8x128xbf16> to vector<80x128xbf16>
      %c0_79 = arith.constant 0 : index
      %c0_80 = arith.constant 0 : index
      %c0_81 = arith.constant 0 : index
      %79 = vector.load %arg7[%c0_79, %c0_80, %c0_81] : memref<3x80x384xbf16, #tpu.memory_space<vmem>>, vector<1x80x128xbf16>
      %80 = vector.shape_cast %79 : vector<1x80x128xbf16> to vector<80x128xbf16>
      %81 = vector.shape_cast %78 : vector<80x128xbf16> to vector<1x80x128xbf16>
      tpu.vector_store %arg7[%c0_79, %c0_80, %c0_81], %81 {strides = array<i32>} : memref<3x80x384xbf16, #tpu.memory_space<vmem>>, vector<1x80x128xbf16>,
      %82 = vector.extract_strided_slice %76 {offsets = [0, 1, 0], sizes = [10, 8, 128], strides = [1, 1, 1]} : vector<10x10x128xbf16> to vector<10x8x128xbf16>
      %83 = vector.shape_cast %82 : vector<10x8x128xbf16> to vector<80x128xbf16>
      %c0_82 = arith.constant 0 : index
      %c0_83 = arith.constant 0 : index
      %c128 = arith.constant 128 : index
      %84 = vector.load %arg7[%c0_82, %c0_83, %c128] : memref<3x80x384xbf16, #tpu.memory_space<vmem>>, vector<1x80x128xbf16>
      %85 = vector.shape_cast %84 : vector<1x80x128xbf16> to vector<80x128xbf16>
      %86 = vector.shape_cast %83 : vector<80x128xbf16> to vector<1x80x128xbf16>
      tpu.vector_store %arg7[%c0_82, %c0_83, %c128], %86 {strides = array<i32>} : memref<3x80x384xbf16, #tpu.memory_space<vmem>>, vector<1x80x128xbf16>,
      %87 = vector.extract_strided_slice %76 {offsets = [0, 2, 0], sizes = [10, 8, 128], strides = [1, 1, 1]} : vector<10x10x128xbf16> to vector<10x8x128xbf16>
      %88 = vector.shape_cast %87 : vector<10x8x128xbf16> to vector<80x128xbf16>
      %c0_84 = arith.constant 0 : index
      %c0_85 = arith.constant 0 : index
      %c256 = arith.constant 256 : index
      %89 = vector.load %arg7[%c0_84, %c0_85, %c256] : memref<3x80x384xbf16, #tpu.memory_space<vmem>>, vector<1x80x128xbf16>
      %90 = vector.shape_cast %89 : vector<1x80x128xbf16> to vector<80x128xbf16>
      %91 = vector.shape_cast %88 : vector<80x128xbf16> to vector<1x80x128xbf16>
      tpu.vector_store %arg7[%c0_84, %c0_85, %c256], %91 {strides = array<i32>} : memref<3x80x384xbf16, #tpu.memory_space<vmem>>, vector<1x80x128xbf16>,
      %c1_i32 = arith.constant 1 : i32
      %92 = arith.addi %arg1, %c1_i32 : i32
      %c0_86 = arith.constant 0 : index
      %93 = arith.index_cast %92 : i32 to index
      %c0_87 = arith.constant 0 : index
      %c0_88 = arith.constant 0 : index
      %c0_89 = arith.constant 0 : index
      %94 = vector.load %arg3[%c0_86, %93, %c0_87, %c0_88, %c0_89] : memref<1x10x10x10x128xbf16, #tpu.memory_space<vmem>>, vector<1x1x10x10x128xbf16>
      %95 = vector.shape_cast %94 : vector<1x1x10x10x128xbf16> to vector<10x10x128xbf16>
      %96 = vector.extract_strided_slice %95 {offsets = [0, 0, 0], sizes = [10, 8, 128], strides = [1, 1, 1]} : vector<10x10x128xbf16> to vector<10x8x128xbf16>
      %97 = vector.shape_cast %96 : vector<10x8x128xbf16> to vector<80x128xbf16>
      %c1_90 = arith.constant 1 : index
      %c0_91 = arith.constant 0 : index
      %c0_92 = arith.constant 0 : index
      %98 = vector.load %arg7[%c1_90, %c0_91, %c0_92] : memref<3x80x384xbf16, #tpu.memory_space<vmem>>, vector<1x80x128xbf16>
      %99 = vector.shape_cast %98 : vector<1x80x128xbf16> to vector<80x128xbf16>
      %100 = vector.shape_cast %97 : vector<80x128xbf16> to vector<1x80x128xbf16>
      tpu.vector_store %arg7[%c1_90, %c0_91, %c0_92], %100 {strides = array<i32>} : memref<3x80x384xbf16, #tpu.memory_space<vmem>>, vector<1x80x128xbf16>,
      %101 = vector.extract_strided_slice %95 {offsets = [0, 1, 0], sizes = [10, 8, 128], strides = [1, 1, 1]} : vector<10x10x128xbf16> to vector<10x8x128xbf16>
      %102 = vector.shape_cast %101 : vector<10x8x128xbf16> to vector<80x128xbf16>
      %c1_93 = arith.constant 1 : index
      %c0_94 = arith.constant 0 : index
      %c128_95 = arith.constant 128 : index
      %103 = vector.load %arg7[%c1_93, %c0_94, %c128_95] : memref<3x80x384xbf16, #tpu.memory_space<vmem>>, vector<1x80x128xbf16>
      %104 = vector.shape_cast %103 : vector<1x80x128xbf16> to vector<80x128xbf16>
      %105 = vector.shape_cast %102 : vector<80x128xbf16> to vector<1x80x128xbf16>
      tpu.vector_store %arg7[%c1_93, %c0_94, %c128_95], %105 {strides = array<i32>} : memref<3x80x384xbf16, #tpu.memory_space<vmem>>, vector<1x80x128xbf16>,
      %106 = vector.extract_strided_slice %95 {offsets = [0, 2, 0], sizes = [10, 8, 128], strides = [1, 1, 1]} : vector<10x10x128xbf16> to vector<10x8x128xbf16>
      %107 = vector.shape_cast %106 : vector<10x8x128xbf16> to vector<80x128xbf16>
      %c1_96 = arith.constant 1 : index
      %c0_97 = arith.constant 0 : index
      %c256_98 = arith.constant 256 : index
      %108 = vector.load %arg7[%c1_96, %c0_97, %c256_98] : memref<3x80x384xbf16, #tpu.memory_space<vmem>>, vector<1x80x128xbf16>
      %109 = vector.shape_cast %108 : vector<1x80x128xbf16> to vector<80x128xbf16>
      %110 = vector.shape_cast %107 : vector<80x128xbf16> to vector<1x80x128xbf16>
      tpu.vector_store %arg7[%c1_96, %c0_97, %c256_98], %110 {strides = array<i32>} : memref<3x80x384xbf16, #tpu.memory_space<vmem>>, vector<1x80x128xbf16>,
      %c2_i32 = arith.constant 2 : i32
      %111 = arith.addi %arg1, %c2_i32 : i32
      %c0_99 = arith.constant 0 : index
      %112 = arith.index_cast %111 : i32 to index
      %c0_100 = arith.constant 0 : index
      %c0_101 = arith.constant 0 : index
      %c0_102 = arith.constant 0 : index
      %113 = vector.load %arg3[%c0_99, %112, %c0_100, %c0_101, %c0_102] : memref<1x10x10x10x128xbf16, #tpu.memory_space<vmem>>, vector<1x1x10x10x128xbf16>
      %114 = vector.shape_cast %113 : vector<1x1x10x10x128xbf16> to vector<10x10x128xbf16>
      %115 = vector.extract_strided_slice %114 {offsets = [0, 0, 0], sizes = [10, 8, 128], strides = [1, 1, 1]} : vector<10x10x128xbf16> to vector<10x8x128xbf16>
      %116 = vector.shape_cast %115 : vector<10x8x128xbf16> to vector<80x128xbf16>
      %c2_103 = arith.constant 2 : index
      %c0_104 = arith.constant 0 : index
      %c0_105 = arith.constant 0 : index
      %117 = vector.load %arg7[%c2_103, %c0_104, %c0_105] : memref<3x80x384xbf16, #tpu.memory_space<vmem>>, vector<1x80x128xbf16>
      %118 = vector.shape_cast %117 : vector<1x80x128xbf16> to vector<80x128xbf16>
      %119 = vector.shape_cast %116 : vector<80x128xbf16> to vector<1x80x128xbf16>
      tpu.vector_store %arg7[%c2_103, %c0_104, %c0_105], %119 {strides = array<i32>} : memref<3x80x384xbf16, #tpu.memory_space<vmem>>, vector<1x80x128xbf16>,
      %120 = vector.extract_strided_slice %114 {offsets = [0, 1, 0], sizes = [10, 8, 128], strides = [1, 1, 1]} : vector<10x10x128xbf16> to vector<10x8x128xbf16>
      %121 = vector.shape_cast %120 : vector<10x8x128xbf16> to vector<80x128xbf16>
      %c2_106 = arith.constant 2 : index
      %c0_107 = arith.constant 0 : index
      %c128_108 = arith.constant 128 : index
      %122 = vector.load %arg7[%c2_106, %c0_107, %c128_108] : memref<3x80x384xbf16, #tpu.memory_space<vmem>>, vector<1x80x128xbf16>
      %123 = vector.shape_cast %122 : vector<1x80x128xbf16> to vector<80x128xbf16>
      %124 = vector.shape_cast %121 : vector<80x128xbf16> to vector<1x80x128xbf16>
      tpu.vector_store %arg7[%c2_106, %c0_107, %c128_108], %124 {strides = array<i32>} : memref<3x80x384xbf16, #tpu.memory_space<vmem>>, vector<1x80x128xbf16>,
      %125 = vector.extract_strided_slice %114 {offsets = [0, 2, 0], sizes = [10, 8, 128], strides = [1, 1, 1]} : vector<10x10x128xbf16> to vector<10x8x128xbf16>
      %126 = vector.shape_cast %125 : vector<10x8x128xbf16> to vector<80x128xbf16>
      %c2_109 = arith.constant 2 : index
      %c0_110 = arith.constant 0 : index
      %c256_111 = arith.constant 256 : index
      %127 = vector.load %arg7[%c2_109, %c0_110, %c256_111] : memref<3x80x384xbf16, #tpu.memory_space<vmem>>, vector<1x80x128xbf16>
      %128 = vector.shape_cast %127 : vector<1x80x128xbf16> to vector<80x128xbf16>
      %129 = vector.shape_cast %126 : vector<80x128xbf16> to vector<1x80x128xbf16>
      tpu.vector_store %arg7[%c2_109, %c0_110, %c256_111], %129 {strides = array<i32>} : memref<3x80x384xbf16, #tpu.memory_space<vmem>>, vector<1x80x128xbf16>,
    } else {
    }
    %cst = arith.constant 0.000000e+00 : f32
    %3 = vector.broadcast %cst : f32 to vector<64x128xf32>
    %c0 = arith.constant 0 : index
    %c0_1 = arith.constant 0 : index
    %c0_2 = arith.constant 0 : index
    %4 = vector.load %arg7[%c0, %c0_1, %c0_2] : memref<3x80x384xbf16, #tpu.memory_space<vmem>>, vector<1x64x384xbf16>
    %5 = vector.shape_cast %4 : vector<1x64x384xbf16> to vector<64x384xbf16>
    %6 = arith.index_cast %arg2 : i32 to index
    %c0_3 = arith.constant 0 : index
    %c0_4 = arith.constant 0 : index
    %c0_5 = arith.constant 0 : index
    %c0_6 = arith.constant 0 : index
    %7 = vector.load %arg4[%6, %c0_3, %c0_4, %c0_5, %c0_6] : memref<1x3x3x384x128xbf16, #tpu.memory_space<vmem>>, vector<1x1x1x384x128xbf16>
    %8 = vector.shape_cast %7 : vector<1x1x1x384x128xbf16> to vector<384x128xbf16>
    %cst_7 = arith.constant dense<0.000000e+00> : vector<64x128xf32>
    %9 = tpu.matmul %5, %8, %cst_7 {dimension_numbers = #tpu.dot_dimension_numbers<[1], [0], [0], [1], [0, 0, 1, 1], [], []>} : vector<64x384xbf16>, vector<384x128xbf16>, vector<64x128xf32> -> vector<64x128xf32>
    %10 = arith.addf %3, %9 : vector<64x128xf32>
    %c0_8 = arith.constant 0 : index
    %c8 = arith.constant 8 : index
    %c0_9 = arith.constant 0 : index
    %11 = vector.load %arg7[%c0_8, %c8, %c0_9] : memref<3x80x384xbf16, #tpu.memory_space<vmem>>, vector<1x64x384xbf16>
    %12 = vector.shape_cast %11 : vector<1x64x384xbf16> to vector<64x384xbf16>
    %13 = arith.index_cast %arg2 : i32 to index
    %c0_10 = arith.constant 0 : index
    %c1 = arith.constant 1 : index
    %c0_11 = arith.constant 0 : index
    %c0_12 = arith.constant 0 : index
    %14 = vector.load %arg4[%13, %c0_10, %c1, %c0_11, %c0_12] : memref<1x3x3x384x128xbf16, #tpu.memory_space<vmem>>, vector<1x1x1x384x128xbf16>
    %15 = vector.shape_cast %14 : vector<1x1x1x384x128xbf16> to vector<384x128xbf16>
    %cst_13 = arith.constant dense<0.000000e+00> : vector<64x128xf32>
    %16 = tpu.matmul %12, %15, %cst_13 {dimension_numbers = #tpu.dot_dimension_numbers<[1], [0], [0], [1], [0, 0, 1, 1], [], []>} : vector<64x384xbf16>, vector<384x128xbf16>, vector<64x128xf32> -> vector<64x128xf32>
    %17 = arith.addf %10, %16 : vector<64x128xf32>
    %c0_14 = arith.constant 0 : index
    %c16 = arith.constant 16 : index
    %c0_15 = arith.constant 0 : index
    %18 = vector.load %arg7[%c0_14, %c16, %c0_15] : memref<3x80x384xbf16, #tpu.memory_space<vmem>>, vector<1x64x384xbf16>
    %19 = vector.shape_cast %18 : vector<1x64x384xbf16> to vector<64x384xbf16>
    %20 = arith.index_cast %arg2 : i32 to index
    %c0_16 = arith.constant 0 : index
    %c2 = arith.constant 2 : index
    %c0_17 = arith.constant 0 : index
    %c0_18 = arith.constant 0 : index
    %21 = vector.load %arg4[%20, %c0_16, %c2, %c0_17, %c0_18] : memref<1x3x3x384x128xbf16, #tpu.memory_space<vmem>>, vector<1x1x1x384x128xbf16>
    %22 = vector.shape_cast %21 : vector<1x1x1x384x128xbf16> to vector<384x128xbf16>
    %cst_19 = arith.constant dense<0.000000e+00> : vector<64x128xf32>
    %23 = tpu.matmul %19, %22, %cst_19 {dimension_numbers = #tpu.dot_dimension_numbers<[1], [0], [0], [1], [0, 0, 1, 1], [], []>} : vector<64x384xbf16>, vector<384x128xbf16>, vector<64x128xf32> -> vector<64x128xf32>
    %24 = arith.addf %17, %23 : vector<64x128xf32>
    %c1_20 = arith.constant 1 : index
    %c0_21 = arith.constant 0 : index
    %c0_22 = arith.constant 0 : index
    %25 = vector.load %arg7[%c1_20, %c0_21, %c0_22] : memref<3x80x384xbf16, #tpu.memory_space<vmem>>, vector<1x64x384xbf16>
    %26 = vector.shape_cast %25 : vector<1x64x384xbf16> to vector<64x384xbf16>
    %27 = arith.index_cast %arg2 : i32 to index
    %c1_23 = arith.constant 1 : index
    %c0_24 = arith.constant 0 : index
    %c0_25 = arith.constant 0 : index
    %c0_26 = arith.constant 0 : index
    %28 = vector.load %arg4[%27, %c1_23, %c0_24, %c0_25, %c0_26] : memref<1x3x3x384x128xbf16, #tpu.memory_space<vmem>>, vector<1x1x1x384x128xbf16>
    %29 = vector.shape_cast %28 : vector<1x1x1x384x128xbf16> to vector<384x128xbf16>
    %cst_27 = arith.constant dense<0.000000e+00> : vector<64x128xf32>
    %30 = tpu.matmul %26, %29, %cst_27 {dimension_numbers = #tpu.dot_dimension_numbers<[1], [0], [0], [1], [0, 0, 1, 1], [], []>} : vector<64x384xbf16>, vector<384x128xbf16>, vector<64x128xf32> -> vector<64x128xf32>
    %31 = arith.addf %24, %30 : vector<64x128xf32>
    %c1_28 = arith.constant 1 : index
    %c8_29 = arith.constant 8 : index
    %c0_30 = arith.constant 0 : index
    %32 = vector.load %arg7[%c1_28, %c8_29, %c0_30] : memref<3x80x384xbf16, #tpu.memory_space<vmem>>, vector<1x64x384xbf16>
    %33 = vector.shape_cast %32 : vector<1x64x384xbf16> to vector<64x384xbf16>
    %34 = arith.index_cast %arg2 : i32 to index
    %c1_31 = arith.constant 1 : index
    %c1_32 = arith.constant 1 : index
    %c0_33 = arith.constant 0 : index
    %c0_34 = arith.constant 0 : index
    %35 = vector.load %arg4[%34, %c1_31, %c1_32, %c0_33, %c0_34] : memref<1x3x3x384x128xbf16, #tpu.memory_space<vmem>>, vector<1x1x1x384x128xbf16>
    %36 = vector.shape_cast %35 : vector<1x1x1x384x128xbf16> to vector<384x128xbf16>
    %cst_35 = arith.constant dense<0.000000e+00> : vector<64x128xf32>
    %37 = tpu.matmul %33, %36, %cst_35 {dimension_numbers = #tpu.dot_dimension_numbers<[1], [0], [0], [1], [0, 0, 1, 1], [], []>} : vector<64x384xbf16>, vector<384x128xbf16>, vector<64x128xf32> -> vector<64x128xf32>
    %38 = arith.addf %31, %37 : vector<64x128xf32>
    %c1_36 = arith.constant 1 : index
    %c16_37 = arith.constant 16 : index
    %c0_38 = arith.constant 0 : index
    %39 = vector.load %arg7[%c1_36, %c16_37, %c0_38] : memref<3x80x384xbf16, #tpu.memory_space<vmem>>, vector<1x64x384xbf16>
    %40 = vector.shape_cast %39 : vector<1x64x384xbf16> to vector<64x384xbf16>
    %41 = arith.index_cast %arg2 : i32 to index
    %c1_39 = arith.constant 1 : index
    %c2_40 = arith.constant 2 : index
    %c0_41 = arith.constant 0 : index
    %c0_42 = arith.constant 0 : index
    %42 = vector.load %arg4[%41, %c1_39, %c2_40, %c0_41, %c0_42] : memref<1x3x3x384x128xbf16, #tpu.memory_space<vmem>>, vector<1x1x1x384x128xbf16>
    %43 = vector.shape_cast %42 : vector<1x1x1x384x128xbf16> to vector<384x128xbf16>
    %cst_43 = arith.constant dense<0.000000e+00> : vector<64x128xf32>
    %44 = tpu.matmul %40, %43, %cst_43 {dimension_numbers = #tpu.dot_dimension_numbers<[1], [0], [0], [1], [0, 0, 1, 1], [], []>} : vector<64x384xbf16>, vector<384x128xbf16>, vector<64x128xf32> -> vector<64x128xf32>
    %45 = arith.addf %38, %44 : vector<64x128xf32>
    %c2_44 = arith.constant 2 : index
    %c0_45 = arith.constant 0 : index
    %c0_46 = arith.constant 0 : index
    %46 = vector.load %arg7[%c2_44, %c0_45, %c0_46] : memref<3x80x384xbf16, #tpu.memory_space<vmem>>, vector<1x64x384xbf16>
    %47 = vector.shape_cast %46 : vector<1x64x384xbf16> to vector<64x384xbf16>
    %48 = arith.index_cast %arg2 : i32 to index
    %c2_47 = arith.constant 2 : index
    %c0_48 = arith.constant 0 : index
    %c0_49 = arith.constant 0 : index
    %c0_50 = arith.constant 0 : index
    %49 = vector.load %arg4[%48, %c2_47, %c0_48, %c0_49, %c0_50] : memref<1x3x3x384x128xbf16, #tpu.memory_space<vmem>>, vector<1x1x1x384x128xbf16>
    %50 = vector.shape_cast %49 : vector<1x1x1x384x128xbf16> to vector<384x128xbf16>
    %cst_51 = arith.constant dense<0.000000e+00> : vector<64x128xf32>
    %51 = tpu.matmul %47, %50, %cst_51 {dimension_numbers = #tpu.dot_dimension_numbers<[1], [0], [0], [1], [0, 0, 1, 1], [], []>} : vector<64x384xbf16>, vector<384x128xbf16>, vector<64x128xf32> -> vector<64x128xf32>
    %52 = arith.addf %45, %51 : vector<64x128xf32>
    %c2_52 = arith.constant 2 : index
    %c8_53 = arith.constant 8 : index
    %c0_54 = arith.constant 0 : index
    %53 = vector.load %arg7[%c2_52, %c8_53, %c0_54] : memref<3x80x384xbf16, #tpu.memory_space<vmem>>, vector<1x64x384xbf16>
    %54 = vector.shape_cast %53 : vector<1x64x384xbf16> to vector<64x384xbf16>
    %55 = arith.index_cast %arg2 : i32 to index
    %c2_55 = arith.constant 2 : index
    %c1_56 = arith.constant 1 : index
    %c0_57 = arith.constant 0 : index
    %c0_58 = arith.constant 0 : index
    %56 = vector.load %arg4[%55, %c2_55, %c1_56, %c0_57, %c0_58] : memref<1x3x3x384x128xbf16, #tpu.memory_space<vmem>>, vector<1x1x1x384x128xbf16>
    %57 = vector.shape_cast %56 : vector<1x1x1x384x128xbf16> to vector<384x128xbf16>
    %cst_59 = arith.constant dense<0.000000e+00> : vector<64x128xf32>
    %58 = tpu.matmul %54, %57, %cst_59 {dimension_numbers = #tpu.dot_dimension_numbers<[1], [0], [0], [1], [0, 0, 1, 1], [], []>} : vector<64x384xbf16>, vector<384x128xbf16>, vector<64x128xf32> -> vector<64x128xf32>
    %59 = arith.addf %52, %58 : vector<64x128xf32>
    %c2_60 = arith.constant 2 : index
    %c16_61 = arith.constant 16 : index
    %c0_62 = arith.constant 0 : index
    %60 = vector.load %arg7[%c2_60, %c16_61, %c0_62] : memref<3x80x384xbf16, #tpu.memory_space<vmem>>, vector<1x64x384xbf16>
    %61 = vector.shape_cast %60 : vector<1x64x384xbf16> to vector<64x384xbf16>
    %62 = arith.index_cast %arg2 : i32 to index
    %c2_63 = arith.constant 2 : index
    %c2_64 = arith.constant 2 : index
    %c0_65 = arith.constant 0 : index
    %c0_66 = arith.constant 0 : index
    %63 = vector.load %arg4[%62, %c2_63, %c2_64, %c0_65, %c0_66] : memref<1x3x3x384x128xbf16, #tpu.memory_space<vmem>>, vector<1x1x1x384x128xbf16>
    %64 = vector.shape_cast %63 : vector<1x1x1x384x128xbf16> to vector<384x128xbf16>
    %cst_67 = arith.constant dense<0.000000e+00> : vector<64x128xf32>
    %65 = tpu.matmul %61, %64, %cst_67 {dimension_numbers = #tpu.dot_dimension_numbers<[1], [0], [0], [1], [0, 0, 1, 1], [], []>} : vector<64x384xbf16>, vector<384x128xbf16>, vector<64x128xf32> -> vector<64x128xf32>
    %66 = arith.addf %59, %65 : vector<64x128xf32>
    %c0_68 = arith.constant 0 : index
    %c0_69 = arith.constant 0 : index
    %67 = vector.load %arg5[%c0_68, %c0_69] : memref<1x128xf32, #tpu.memory_space<vmem>>, vector<1x128xf32>
    %68 = vector.broadcast %67 : vector<1x128xf32> to vector<64x128xf32>
    %69 = arith.addf %66, %68 : vector<64x128xf32>
    %c0_70 = arith.constant 0 : index
    %c0_71 = arith.constant 0 : index
    %c0_72 = arith.constant 0 : index
    %c0_73 = arith.constant 0 : index
    %70 = vector.load %arg6[%c0_70, %c0_71, %c0_72, %c0_73] : memref<1x1x64x128xf32, #tpu.memory_space<vmem>>, vector<1x1x64x128xf32>
    %71 = vector.shape_cast %70 : vector<1x1x64x128xf32> to vector<64x128xf32>
    %72 = vector.shape_cast %69 : vector<64x128xf32> to vector<1x1x64x128xf32>
    tpu.vector_store %arg6[%c0_70, %c0_71, %c0_72, %c0_73], %72 {strides = array<i32>} : memref<1x1x64x128xf32, #tpu.memory_space<vmem>>, vector<1x1x64x128xf32>,
    return
  }
  func.func @transform_0(%arg0: i32, %arg1: i32, %arg2: i32) -> (i32, i32, i32, i32, i32) {
    %c0_i32 = arith.constant 0 : i32
    %c0_i32_0 = arith.constant 0 : i32
    %c0_i32_1 = arith.constant 0 : i32
    %c0_i32_2 = arith.constant 0 : i32
    %c0_i32_3 = arith.constant 0 : i32
    return %arg0, %c0_i32, %c0_i32_0, %c0_i32_1, %c0_i32_2 : i32, i32, i32, i32, i32
  }
  func.func @transform_1(%arg0: i32, %arg1: i32, %arg2: i32) -> (i32, i32, i32, i32, i32) {
    %c0_i32 = arith.constant 0 : i32
    %c0_i32_0 = arith.constant 0 : i32
    %c0_i32_1 = arith.constant 0 : i32
    %c0_i32_2 = arith.constant 0 : i32
    %c0_i32_3 = arith.constant 0 : i32
    %c0_i32_4 = arith.constant 0 : i32
    return %c0_i32, %c0_i32_0, %c0_i32_1, %c0_i32_2, %c0_i32_3 : i32, i32, i32, i32, i32
  }
  func.func @transform_2(%arg0: i32, %arg1: i32, %arg2: i32) -> (i32, i32) {
    %c0_i32 = arith.constant 0 : i32
    %c0_i32_0 = arith.constant 0 : i32
    return %c0_i32, %arg2 : i32, i32
  }
  func.func @transform_3(%arg0: i32, %arg1: i32, %arg2: i32) -> (i32, i32, i32, i32) {
    %c0_i32 = arith.constant 0 : i32
    %c0_i32_0 = arith.constant 0 : i32
    return %arg0, %arg1, %c0_i32, %arg2 : i32, i32, i32, i32
  }
}

</mosaic_0001>

<llo_original>
// kernel: tpu_custom_call.1
$region0: #{tpu_custom_call.1}
  #allocation0 [shape = 'u32[]', space=smem, size = 0x4, offset = 0x4, fixed_abs, tag = 'smem constant byte address 0x4 - core index']
  #allocation1 [shape = 'u32[144,128]{1,0:T(1,128)}', space=vmem, size = 0x12000, scoped, tag = 'internal scratch']
  #allocation2 [shape = 'bf16[3,80,384]{2,1,0:T(8,128)(2,1)}', space=vmem, size = 0x2d000, scoped, tag = 'scratch operand']
  %s0 = inlined_call_operand.vmem [shape: bf16[2,10,10,10,128], index: 0, kind: input, shape index: {}]
  %s1 = inlined_call_operand.vmem [shape: bf16[1,3,3,384,128], index: 1, kind: input, shape index: {}]
  %s2 = inlined_call_operand.vmem [shape: f32[1,128], index: 2, kind: input, shape index: {}]
  %s3 = inlined_call_operand.hbm [shape: f32[2,8,64,128], index: 3, kind: output, shape index: {}]
  %s4 = sld [smem:[#allocation0]]
  $region49: #{tpu_custom_call.1} parent=0
    _
  %s6 = ssub.s32 1, %s4
  %s7 = scalar_select 0, %s6, %s4
  $region1: #{tpu_custom_call.1} parent=0
    #allocation3 [shape = 'u8[65536]{0}', space=vmem, size = 0x10000, scoped, tag = 'output window, operand 0']
    #allocation4 [shape = 's32[2]{0}', space=sflag, size = 0x8, scoped, tag = 'scoped memory for tpu_custom_call.1']
    %8 = vsyncpa [#allocation4], 0
    %s9 = scalar_lea.sflag [#allocation4], 1
    %10 = vsyncpa %s9, 0
    loop: start=0, step=1, limit=18
    $region2: #{tpu_custom_call.1} parent=1 // loop_pre_header
      _
    $region3: #{tpu_custom_call.1} parent=1 // loop_header
      %s12 = sphi 0, %s16
      %p13 = scmp.ge.s32.totalorder %s12, 18
      %s19 = sphi 0, %s38
      %s20 = sphi 0, %s34
      %s21 = sphi 0, %s30
      %s22 = sphi 0, %s19
      %s23 = sphi 0, %s20
      %s24 = sphi 0, %s21
      %s25 = sphi 0, %s22
      %s26 = sphi 0, %s23
      %s27 = sphi 0, %s24
      %s41 = sphi 0, %s43
      %s44 = sphi 0, %s41
      %s45 = sphi 0, %s44
      %s61 = sphi 0, %s45
      %s65 = sphi 0, %s65
      %s67 = sphi 0, %s65
      %s68 = sphi 0, %s67
      %s82 = sphi 0, %s68
      %s88 = sphi 0, %s90
      %s91 = sphi 0, %s88
      %s92 = sphi 0, %s91
      %s108 = sphi 0, %s92
      %s118 = sphi 0, %s120
      %s121 = sphi 0, %s118
      %s122 = sphi 0, %s121
      %s138 = sphi 0, %s122
    $region4: #{tpu_custom_call.1} parent=1 // loop_header_branch
      %15 = sbr.rel (%p13) target = $region8
    $region5: #{tpu_custom_call.1} parent=1 // loop_body
      %s17 = ssub.s32 %s12, 1
      %s18 = ssub.s32 %s12, 2
      %s28 = sadd.s32 1, %s21
      %p29 = scmp.ge.s32.totalorder %s28, 1
      %s30 = scalar_select %p29, 0, %s28
      %s31 = sadd.s32 1, %s20
      %s32 = scalar_select %p29, %s31, %s20
      %p33 = scmp.ge.s32.totalorder %s32, 8
      %s34 = scalar_select %p33, 0, %s32
      %s35 = sadd.s32 1, %s19
      %s36 = scalar_select %p33, %s35, %s19
      %p37 = scmp.ge.s32.totalorder %s36, 2
      %s38 = scalar_select %p37, 0, %s36
      %s39 = ssub.s32 %s19, %s38
      %p40 = scmp.eq.s32.totalorder %s39, 0
      %s42 = sadd.s32 %s41, 1
      %s43 = scalar_select %p40, %s41, %s42
      %p46 = pneg %p40
      %p47 = scmp.eq.s32.totalorder %s12, 15
      %p48 = por %p46, %p47
      %p49 = scmp.ne.s32.totalorder %s41, %s44
      %p50 = scmp.eq.s32.totalorder %s12, 0
      %p51 = por %p49, %p50
      %p52 = scmp.ne.s32.totalorder %s41, %s44
      %p53 = scmp.eq.s32.totalorder %s17, 15
      %p54 = por %p52, %p53
      %p55 = scmp.ne.s32.totalorder %s44, %s45
      %p56 = scmp.eq.s32.totalorder %s17, 0
      %p57 = por %p55, %p56
      %p58 = scmp.ne.s32.totalorder %s44, %s45
      %p59 = scmp.eq.s32.totalorder %s18, 15
      %p60 = por %p58, %p59
      %p62 = scmp.ne.s32.totalorder %s45, %s61
      %p63 = scmp.eq.s32.totalorder %s18, 0
      %p64 = por %p62, %p63
      %s66 = sadd.s32 %s65, 1
      %p69 = scmp.eq.s32.totalorder %s12, 15
      %p70 = scmp.ne.s32.totalorder %s65, %s67
      %p71 = scmp.eq.s32.totalorder %s12, 0
      %p72 = por %p70, %p71
      %p73 = scmp.ne.s32.totalorder %s65, %s67
      %p74 = scmp.eq.s32.totalorder %s17, 15
      %p75 = por %p73, %p74
      %p76 = scmp.ne.s32.totalorder %s67, %s68
      %p77 = scmp.eq.s32.totalorder %s17, 0
      %p78 = por %p76, %p77
      %p79 = scmp.ne.s32.totalorder %s67, %s68
      %p80 = scmp.eq.s32.totalorder %s18, 15
      %p81 = por %p79, %p80
      %p83 = scmp.ne.s32.totalorder %s68, %s82
      %p84 = scmp.eq.s32.totalorder %s18, 0
      %p85 = por %p83, %p84
      %s86 = ssub.s32 %s21, %s30
      %p87 = scmp.eq.s32.totalorder %s86, 0
      %s89 = sadd.s32 %s88, 1
      %s90 = scalar_select %p87, %s88, %s89
      %p93 = pneg %p87
      %p94 = scmp.eq.s32.totalorder %s12, 15
      %p95 = por %p93, %p94
      %p96 = scmp.ne.s32.totalorder %s88, %s91
      %p97 = scmp.eq.s32.totalorder %s12, 0
      %p98 = por %p96, %p97
      %p99 = scmp.ne.s32.totalorder %s88, %s91
      %p100 = scmp.eq.s32.totalorder %s17, 15
      %p101 = por %p99, %p100
      %p102 = scmp.ne.s32.totalorder %s91, %s92
      %p103 = scmp.eq.s32.totalorder %s17, 0
      %p104 = por %p102, %p103
      %p105 = scmp.ne.s32.totalorder %s91, %s92
      %p106 = scmp.eq.s32.totalorder %s18, 15
      %p107 = por %p105, %p106
      %p109 = scmp.ne.s32.totalorder %s92, %s108
      %p110 = scmp.eq.s32.totalorder %s18, 0
      %p111 = por %p109, %p110
      %s112 = ssub.s32 %s19, %s38
      %s113 = ssub.s32 %s20, %s34
      %s114 = sor.u32 %s112, %s113
      %s115 = ssub.s32 %s21, %s30
      %s116 = sor.u32 %s114, %s115
      %p117 = scmp.eq.s32.totalorder %s116, 0
      %s119 = sadd.s32 %s118, 1
      %s120 = scalar_select %p117, %s118, %s119
      %p123 = pneg %p117
      %p124 = scmp.eq.s32.totalorder %s12, 15
      %p125 = por %p123, %p124
      %p126 = scmp.ne.s32.totalorder %s118, %s121
      %p127 = scmp.eq.s32.totalorder %s12, 0
      %p128 = por %p126, %p127
      %p129 = scmp.ne.s32.totalorder %s118, %s121
      %p130 = scmp.eq.s32.totalorder %s17, 15
      %p131 = por %p129, %p130
      %p132 = scmp.ne.s32.totalorder %s121, %s122
      %p133 = scmp.eq.s32.totalorder %s17, 0
      %p134 = por %p132, %p133
      %p135 = scmp.ne.s32.totalorder %s121, %s122
      %p136 = scmp.eq.s32.totalorder %s18, 15
      %p137 = por %p135, %p136
      %p139 = scmp.ne.s32.totalorder %s122, %s138
      %p140 = scmp.eq.s32.totalorder %s18, 0
      %p141 = por %p139, %p140
      %p142 = scmp.le.s32.totalorder 1, %s12
      %p143 = scmp.lt.s32.totalorder %s12, 17
      %p144 = pnand %p142, %p143
      %p145 = pneg %p144
      // Predicated region
      $region9: #{tpu_custom_call.1} parent=5 // pred_check
        _
      $region10: #{tpu_custom_call.1} parent=5 // pred_check_branch
        %147 = sbr.rel (%p144) target = $region12
      $region11: #{tpu_custom_call.1} parent=5 // pred_region
        %s148 = ssub.s32 %s12, 1
        // Predicated region
        $region13: #{tpu_custom_call.1} parent=11 // pred_check
          %p149 = pneg %p78
        $region14: #{tpu_custom_call.1} parent=11 // pred_check_branch
          %151 = sbr.rel (%p149) target = $region16
        $region15: #{tpu_custom_call.1} parent=11 // pred_region
          _
        $region16: #{tpu_custom_call.1} parent=11 // pred_fallthru
          _
        // Predicated region
        $region17: #{tpu_custom_call.1} parent=11 // pred_check
          %p152 = pneg %p104
        $region18: #{tpu_custom_call.1} parent=11 // pred_check_branch
          %154 = sbr.rel (%p152) target = $region20
        $region19: #{tpu_custom_call.1} parent=11 // pred_region
          %p155 = scmp.lt.s32.totalorder %s24, 0
          %s156 = scalar_select %p155, %s24, 0
          %s157 = scalar_lea.vmem %s2, %s156
        $region20: #{tpu_custom_call.1} parent=11 // pred_fallthru
          _
      $region12: #{tpu_custom_call.1} parent=5 // pred_fallthru
        _
      %p158 = scmp.lt.s32.totalorder %s12, 16
      // Predicated region
      $region21: #{tpu_custom_call.1} parent=5 // pred_check
        %p159 = pneg %p158
      $region22: #{tpu_custom_call.1} parent=5 // pred_check_branch
        %161 = sbr.rel (%p159) target = $region24
      $region23: #{tpu_custom_call.1} parent=5 // pred_region
        // Predicated region
        $region25: #{tpu_custom_call.1} parent=23 // pred_check
          %p162 = pneg %p51
        $region26: #{tpu_custom_call.1} parent=23 // pred_check_branch
          %164 = sbr.rel (%p162) target = $region28
        $region27: #{tpu_custom_call.1} parent=23 // pred_region
          %p165 = scmp.lt.s32.totalorder %s19, 1
          %s166 = scalar_select %p165, %s19, 1
          %s167 = smul.addr %s166, 200
          %s168 = smul.addr %s167, 4
          %s169 = scalar_lea.vmem %s0, %s168
        $region28: #{tpu_custom_call.1} parent=23 // pred_fallthru
          _
      $region24: #{tpu_custom_call.1} parent=5 // pred_fallthru
        _
      %p170 = scmp.le.s32.totalorder 1, %s12
      %p171 = scmp.lt.s32.totalorder %s12, 17
      %p172 = pnand %p170, %p171
      %p173 = pneg %p172
      // Predicated region
      $region29: #{tpu_custom_call.1} parent=5 // pred_check
        _
      $region30: #{tpu_custom_call.1} parent=5 // pred_check_branch
        %175 = sbr.rel (%p172) target = $region32
      $region31: #{tpu_custom_call.1} parent=5 // pred_region
        %s176 = ssub.s32 %s12, 1
        %p177 = scmp.lt.s32.totalorder %s22, 1
        %s178 = scalar_select %p177, %s22, 1
        %s179 = smul.addr %s178, 200
        %s180 = smul.addr %s179, 4
        %s181 = scalar_lea.vmem %s0, %s180
        %p182 = pneg %p57
        %p183 = pneg %p54
        %p184 = pneg %p78
        %p185 = pneg %p75
        %p186 = scmp.lt.s32.totalorder %s24, 0
        %s187 = scalar_select %p186, %s24, 0
        %s188 = scalar_lea.vmem %s2, %s187
        %p189 = pneg %p104
        %p190 = pneg %p101
        %p191 = pneg %p134
        %p192 = pneg %p131
        %s193 = sand.u32 %s121, 1
        %s194 = scalar_lea.sflag [#allocation4], %s193
        %s195 = sand.u32 %s121, 1
        %s196 = smul.addr %s195, 64
        %s197 = scalar_lea.vmem [#allocation3], %s196
        %p198 = scmp.lt.s32.totalorder %s22, 1
        %s199 = scalar_select %p198, %s22, 1
        %s200 = smul.addr %s199, 200
        %s201 = smul.addr %s200, 4
        %s202 = scalar_lea.vmem %s0, %s201
        %p203 = scmp.lt.s32.totalorder %s24, 0
        %s204 = scalar_select %p203, %s24, 0
        %s205 = scalar_lea.vmem %s2, %s204
        %p207 = scmp.eq.s32.totalorder %s24, 0
        // Predicated region
        $region33: #{tpu_custom_call.1} parent=31 // pred_check
          %p208 = pneg %p207
        $region34: #{tpu_custom_call.1} parent=31 // pred_check_branch
          %210 = sbr.rel (%p208) target = $region36
        $region35: #{tpu_custom_call.1} parent=31 // pred_region
          %s211 = smul.u32 %s23, 20
          %s212 = smul.addr %s211, 4
          %s213 = scalar_lea.vmem %s202, %s212
          %v214 = vld [vmem:[%s213] sm:$0xf]
          %v215 = vld [vmem:[%s213 + $0x4] sm:$0x1]
          %v216 = vld [vmem:[%s213 + $0x8] sm:$0xf]
          %v217 = vld [vmem:[%s213 + $0xc] sm:$0x1]
          %v218 = vld [vmem:[%s213 + $0x10] sm:$0xf]
          %v219 = vld [vmem:[%s213 + $0x14] sm:$0x1]
          %v220 = vld [vmem:[%s213 + $0x18] sm:$0xf]
          %v221 = vld [vmem:[%s213 + $0x1c] sm:$0x1]
          %v222 = vld [vmem:[%s213 + $0x20] sm:$0xf]
          %v223 = vld [vmem:[%s213 + $0x24] sm:$0x1]
          %v224 = vld [vmem:[%s213 + $0x28] sm:$0xf]
          %v225 = vld [vmem:[%s213 + $0x2c] sm:$0x1]
          %v226 = vld [vmem:[%s213 + $0x30] sm:$0xf]
          %v227 = vld [vmem:[%s213 + $0x34] sm:$0x1]
          %v228 = vld [vmem:[%s213 + $0x38] sm:$0xf]
          %v229 = vld [vmem:[%s213 + $0x3c] sm:$0x1]
          %v230 = vld [vmem:[%s213 + $0x40] sm:$0xf]
          %v231 = vld [vmem:[%s213 + $0x44] sm:$0x1]
          %v232 = vld [vmem:[%s213 + $0x48] sm:$0xf]
          %v233 = vld [vmem:[%s213 + $0x4c] sm:$0x1]
          %234 = vst [vmem:[#allocation2] sm:$0xf] %v214
          %235 = vst [vmem:[#allocation2 + $0xc] sm:$0xf] %v216
          %236 = vst [vmem:[#allocation2 + $0x18] sm:$0xf] %v218
          %237 = vst [vmem:[#allocation2 + $0x24] sm:$0xf] %v220
          %238 = vst [vmem:[#allocation2 + $0x30] sm:$0xf] %v222
          %239 = vst [vmem:[#allocation2 + $0x3c] sm:$0xf] %v224
          %240 = vst [vmem:[#allocation2 + $0x48] sm:$0xf] %v226
          %241 = vst [vmem:[#allocation2 + $0x54] sm:$0xf] %v228
          %242 = vst [vmem:[#allocation2 + $0x60] sm:$0xf] %v230
          %243 = vst [vmem:[#allocation2 + $0x6c] sm:$0xf] %v232
          %vm244 = vsmask.f32 3328
          %vm245 = vsmask.f32 7440
          %vm246 = vmor %vm244, %vm245
          %v248 = vshrl.u32 %v214, 16
          %v250 = vrot.slane %v248, 4
          %v251 = vshll.u32 %v214, 16
          %v253 = vrot.slane %v251, 5
          %v254 = vor.u32 %v250, %v253
          %v255 = vrot.slane %v254, 4
          %v257 = vshll.u32 %v215, 16
          %v259 = vrot.slane %v257, 5
          %v260 = vsel %vm246, %v255, %v259
          %v262 = vshrl.u32 %v216, 16
          %v264 = vrot.slane %v262, 4
          %v265 = vshll.u32 %v216, 16
          %v267 = vrot.slane %v265, 5
          %v268 = vor.u32 %v264, %v267
          %v269 = vrot.slane %v268, 4
          %v271 = vshll.u32 %v217, 16
          %v273 = vrot.slane %v271, 5
          %v274 = vsel %vm246, %v269, %v273
          %v276 = vshrl.u32 %v218, 16
          %v278 = vrot.slane %v276, 4
          %v279 = vshll.u32 %v218, 16
          %v281 = vrot.slane %v279, 5
          %v282 = vor.u32 %v278, %v281
          %v283 = vrot.slane %v282, 4
          %v285 = vshll.u32 %v219, 16
          %v287 = vrot.slane %v285, 5
          %v288 = vsel %vm246, %v283, %v287
          %v290 = vshrl.u32 %v220, 16
          %v292 = vrot.slane %v290, 4
          %v293 = vshll.u32 %v220, 16
          %v295 = vrot.slane %v293, 5
          %v296 = vor.u32 %v292, %v295
          %v297 = vrot.slane %v296, 4
          %v299 = vshll.u32 %v221, 16
          %v301 = vrot.slane %v299, 5
          %v302 = vsel %vm246, %v297, %v301
          %v304 = vshrl.u32 %v222, 16
          %v306 = vrot.slane %v304, 4
          %v307 = vshll.u32 %v222, 16
          %v309 = vrot.slane %v307, 5
          %v310 = vor.u32 %v306, %v309
          %v311 = vrot.slane %v310, 4
          %v313 = vshll.u32 %v223, 16
          %v315 = vrot.slane %v313, 5
          %v316 = vsel %vm246, %v311, %v315
          %v318 = vshrl.u32 %v224, 16
          %v320 = vrot.slane %v318, 4
          %v321 = vshll.u32 %v224, 16
          %v323 = vrot.slane %v321, 5
          %v324 = vor.u32 %v320, %v323
          %v325 = vrot.slane %v324, 4
          %v327 = vshll.u32 %v225, 16
          %v329 = vrot.slane %v327, 5
          %v330 = vsel %vm246, %v325, %v329
          %v332 = vshrl.u32 %v226, 16
          %v334 = vrot.slane %v332, 4
          %v335 = vshll.u32 %v226, 16
          %v337 = vrot.slane %v335, 5
          %v338 = vor.u32 %v334, %v337
          %v339 = vrot.slane %v338, 4
          %v341 = vshll.u32 %v227, 16
          %v343 = vrot.slane %v341, 5
          %v344 = vsel %vm246, %v339, %v343
          %v346 = vshrl.u32 %v228, 16
          %v348 = vrot.slane %v346, 4
          %v349 = vshll.u32 %v228, 16
          %v351 = vrot.slane %v349, 5
          %v352 = vor.u32 %v348, %v351
          %v353 = vrot.slane %v352, 4
          %v355 = vshll.u32 %v229, 16
          %v357 = vrot.slane %v355, 5
          %v358 = vsel %vm246, %v353, %v357
          %v360 = vshrl.u32 %v230, 16
          %v362 = vrot.slane %v360, 4
          %v363 = vshll.u32 %v230, 16
          %v365 = vrot.slane %v363, 5
          %v366 = vor.u32 %v362, %v365
          %v367 = vrot.slane %v366, 4
          %v369 = vshll.u32 %v231, 16
          %v371 = vrot.slane %v369, 5
          %v372 = vsel %vm246, %v367, %v371
          %v374 = vshrl.u32 %v232, 16
          %v376 = vrot.slane %v374, 4
          %v377 = vshll.u32 %v232, 16
          %v379 = vrot.slane %v377, 5
          %v380 = vor.u32 %v376, %v379
          %v381 = vrot.slane %v380, 4
          %v383 = vshll.u32 %v233, 16
          %v385 = vrot.slane %v383, 5
          %v386 = vsel %vm246, %v381, %v385
          %397 = vst [vmem:[#allocation2 + $0x4] sm:$0xf] %v260
          %398 = vst [vmem:[#allocation2 + $0x10] sm:$0xf] %v274
          %399 = vst [vmem:[#allocation2 + $0x1c] sm:$0xf] %v288
          %400 = vst [vmem:[#allocation2 + $0x28] sm:$0xf] %v302
          %401 = vst [vmem:[#allocation2 + $0x34] sm:$0xf] %v316
          %402 = vst [vmem:[#allocation2 + $0x40] sm:$0xf] %v330
          %403 = vst [vmem:[#allocation2 + $0x4c] sm:$0xf] %v344
          %404 = vst [vmem:[#allocation2 + $0x58] sm:$0xf] %v358
          %405 = vst [vmem:[#allocation2 + $0x64] sm:$0xf] %v372
          %406 = vst [vmem:[#allocation2 + $0x70] sm:$0xf] %v386
          %vm427 = vcmask 1042432
          %vm428 = vcmask 1046532
          %vm429 = vmor %vm427, %vm428
          %v430 = vrot.slane %v214, 5
          %v431 = vrot.slane %v430, 4
          %v432 = vrot.slane %v215, 5
          %v433 = vsel %vm429, %v431, %v432
          %v434 = vrot.slane %v216, 5
          %v435 = vrot.slane %v434, 4
          %v436 = vrot.slane %v217, 5
          %v437 = vsel %vm429, %v435, %v436
          %v438 = vrot.slane %v218, 5
          %v439 = vrot.slane %v438, 4
          %v440 = vrot.slane %v219, 5
          %v441 = vsel %vm429, %v439, %v440
          %v442 = vrot.slane %v220, 5
          %v443 = vrot.slane %v442, 4
          %v444 = vrot.slane %v221, 5
          %v445 = vsel %vm429, %v443, %v444
          %v446 = vrot.slane %v222, 5
          %v447 = vrot.slane %v446, 4
          %v448 = vrot.slane %v223, 5
          %v449 = vsel %vm429, %v447, %v448
          %v450 = vrot.slane %v224, 5
          %v451 = vrot.slane %v450, 4
          %v452 = vrot.slane %v225, 5
          %v453 = vsel %vm429, %v451, %v452
          %v454 = vrot.slane %v226, 5
          %v455 = vrot.slane %v454, 4
          %v456 = vrot.slane %v227, 5
          %v457 = vsel %vm429, %v455, %v456
          %v458 = vrot.slane %v228, 5
          %v459 = vrot.slane %v458, 4
          %v460 = vrot.slane %v229, 5
          %v461 = vsel %vm429, %v459, %v460
          %v462 = vrot.slane %v230, 5
          %v463 = vrot.slane %v462, 4
          %v464 = vrot.slane %v231, 5
          %v465 = vsel %vm429, %v463, %v464
          %v466 = vrot.slane %v232, 5
          %v467 = vrot.slane %v466, 4
          %v468 = vrot.slane %v233, 5
          %v469 = vsel %vm429, %v467, %v468
          %480 = vst [vmem:[#allocation2 + $0x8] sm:$0xf] %v433
          %481 = vst [vmem:[#allocation2 + $0x14] sm:$0xf] %v437
          %482 = vst [vmem:[#allocation2 + $0x20] sm:$0xf] %v441
          %483 = vst [vmem:[#allocation2 + $0x2c] sm:$0xf] %v445
          %484 = vst [vmem:[#allocation2 + $0x38] sm:$0xf] %v449
          %485 = vst [vmem:[#allocation2 + $0x44] sm:$0xf] %v453
          %486 = vst [vmem:[#allocation2 + $0x50] sm:$0xf] %v457
          %487 = vst [vmem:[#allocation2 + $0x5c] sm:$0xf] %v461
          %488 = vst [vmem:[#allocation2 + $0x68] sm:$0xf] %v465
          %489 = vst [vmem:[#allocation2 + $0x74] sm:$0xf] %v469
          %s490 = sadd.s32 %s23, 1
          %s491 = smul.u32 %s490, 20
          %s492 = smul.addr %s491, 4
          %s493 = scalar_lea.vmem %s202, %s492
          %v494 = vld [vmem:[%s493] sm:$0xf]
          %v495 = vld [vmem:[%s493 + $0x4] sm:$0x1]
          %v496 = vld [vmem:[%s493 + $0x8] sm:$0xf]
          %v497 = vld [vmem:[%s493 + $0xc] sm:$0x1]
          %v498 = vld [vmem:[%s493 + $0x10] sm:$0xf]
          %v499 = vld [vmem:[%s493 + $0x14] sm:$0x1]
          %v500 = vld [vmem:[%s493 + $0x18] sm:$0xf]
          %v501 = vld [vmem:[%s493 + $0x1c] sm:$0x1]
          %v502 = vld [vmem:[%s493 + $0x20] sm:$0xf]
          %v503 = vld [vmem:[%s493 + $0x24] sm:$0x1]
          %v504 = vld [vmem:[%s493 + $0x28] sm:$0xf]
          %v505 = vld [vmem:[%s493 + $0x2c] sm:$0x1]
          %v506 = vld [vmem:[%s493 + $0x30] sm:$0xf]
          %v507 = vld [vmem:[%s493 + $0x34] sm:$0x1]
          %v508 = vld [vmem:[%s493 + $0x38] sm:$0xf]
          %v509 = vld [vmem:[%s493 + $0x3c] sm:$0x1]
          %v510 = vld [vmem:[%s493 + $0x40] sm:$0xf]
          %v511 = vld [vmem:[%s493 + $0x44] sm:$0x1]
          %v512 = vld [vmem:[%s493 + $0x48] sm:$0xf]
          %v513 = vld [vmem:[%s493 + $0x4c] sm:$0x1]
          %s514 = scalar_lea.vmem [#allocation2], 120
          %515 = vst [vmem:[%s514] sm:$0xf] %v494
          %516 = vst [vmem:[%s514 + $0xc] sm:$0xf] %v496
          %517 = vst [vmem:[%s514 + $0x18] sm:$0xf] %v498
          %518 = vst [vmem:[%s514 + $0x24] sm:$0xf] %v500
          %519 = vst [vmem:[%s514 + $0x30] sm:$0xf] %v502
          %520 = vst [vmem:[%s514 + $0x3c] sm:$0xf] %v504
          %521 = vst [vmem:[%s514 + $0x48] sm:$0xf] %v506
          %522 = vst [vmem:[%s514 + $0x54] sm:$0xf] %v508
          %523 = vst [vmem:[%s514 + $0x60] sm:$0xf] %v510
          %524 = vst [vmem:[%s514 + $0x6c] sm:$0xf] %v512
          %v526 = vshrl.u32 %v494, 16
          %v528 = vrot.slane %v526, 4
          %v529 = vshll.u32 %v494, 16
          %v531 = vrot.slane %v529, 5
          %v532 = vor.u32 %v528, %v531
          %v533 = vrot.slane %v532, 4
          %v535 = vshll.u32 %v495, 16
          %v537 = vrot.slane %v535, 5
          %v538 = vsel %vm246, %v533, %v537
          %v540 = vshrl.u32 %v496, 16
          %v542 = vrot.slane %v540, 4
          %v543 = vshll.u32 %v496, 16
          %v545 = vrot.slane %v543, 5
          %v546 = vor.u32 %v542, %v545
          %v547 = vrot.slane %v546, 4
          %v549 = vshll.u32 %v497, 16
          %v551 = vrot.slane %v549, 5
          %v552 = vsel %vm246, %v547, %v551
          %v554 = vshrl.u32 %v498, 16
          %v556 = vrot.slane %v554, 4
          %v557 = vshll.u32 %v498, 16
          %v559 = vrot.slane %v557, 5
          %v560 = vor.u32 %v556, %v559
          %v561 = vrot.slane %v560, 4
          %v563 = vshll.u32 %v499, 16
          %v565 = vrot.slane %v563, 5
          %v566 = vsel %vm246, %v561, %v565
          %v568 = vshrl.u32 %v500, 16
          %v570 = vrot.slane %v568, 4
          %v571 = vshll.u32 %v500, 16
          %v573 = vrot.slane %v571, 5
          %v574 = vor.u32 %v570, %v573
          %v575 = vrot.slane %v574, 4
          %v577 = vshll.u32 %v501, 16
          %v579 = vrot.slane %v577, 5
          %v580 = vsel %vm246, %v575, %v579
          %v582 = vshrl.u32 %v502, 16
          %v584 = vrot.slane %v582, 4
          %v585 = vshll.u32 %v502, 16
          %v587 = vrot.slane %v585, 5
          %v588 = vor.u32 %v584, %v587
          %v589 = vrot.slane %v588, 4
          %v591 = vshll.u32 %v503, 16
          %v593 = vrot.slane %v591, 5
          %v594 = vsel %vm246, %v589, %v593
          %v596 = vshrl.u32 %v504, 16
          %v598 = vrot.slane %v596, 4
          %v599 = vshll.u32 %v504, 16
          %v601 = vrot.slane %v599, 5
          %v602 = vor.u32 %v598, %v601
          %v603 = vrot.slane %v602, 4
          %v605 = vshll.u32 %v505, 16
          %v607 = vrot.slane %v605, 5
          %v608 = vsel %vm246, %v603, %v607
          %v610 = vshrl.u32 %v506, 16
          %v612 = vrot.slane %v610, 4
          %v613 = vshll.u32 %v506, 16
          %v615 = vrot.slane %v613, 5
          %v616 = vor.u32 %v612, %v615
          %v617 = vrot.slane %v616, 4
          %v619 = vshll.u32 %v507, 16
          %v621 = vrot.slane %v619, 5
          %v622 = vsel %vm246, %v617, %v621
          %v624 = vshrl.u32 %v508, 16
          %v626 = vrot.slane %v624, 4
          %v627 = vshll.u32 %v508, 16
          %v629 = vrot.slane %v627, 5
          %v630 = vor.u32 %v626, %v629
          %v631 = vrot.slane %v630, 4
          %v633 = vshll.u32 %v509, 16
          %v635 = vrot.slane %v633, 5
          %v636 = vsel %vm246, %v631, %v635
          %v638 = vshrl.u32 %v510, 16
          %v640 = vrot.slane %v638, 4
          %v641 = vshll.u32 %v510, 16
          %v643 = vrot.slane %v641, 5
          %v644 = vor.u32 %v640, %v643
          %v645 = vrot.slane %v644, 4
          %v647 = vshll.u32 %v511, 16
          %v649 = vrot.slane %v647, 5
          %v650 = vsel %vm246, %v645, %v649
          %v652 = vshrl.u32 %v512, 16
          %v654 = vrot.slane %v652, 4
          %v655 = vshll.u32 %v512, 16
          %v657 = vrot.slane %v655, 5
          %v658 = vor.u32 %v654, %v657
          %v659 = vrot.slane %v658, 4
          %v661 = vshll.u32 %v513, 16
          %v663 = vrot.slane %v661, 5
          %v664 = vsel %vm246, %v659, %v663
          %675 = vst [vmem:[%s514 + $0x4] sm:$0xf] %v538
          %676 = vst [vmem:[%s514 + $0x10] sm:$0xf] %v552
          %677 = vst [vmem:[%s514 + $0x1c] sm:$0xf] %v566
          %678 = vst [vmem:[%s514 + $0x28] sm:$0xf] %v580
          %679 = vst [vmem:[%s514 + $0x34] sm:$0xf] %v594
          %680 = vst [vmem:[%s514 + $0x40] sm:$0xf] %v608
          %681 = vst [vmem:[%s514 + $0x4c] sm:$0xf] %v622
          %682 = vst [vmem:[%s514 + $0x58] sm:$0xf] %v636
          %683 = vst [vmem:[%s514 + $0x64] sm:$0xf] %v650
          %684 = vst [vmem:[%s514 + $0x70] sm:$0xf] %v664
          %v705 = vrot.slane %v494, 5
          %v706 = vrot.slane %v705, 4
          %v707 = vrot.slane %v495, 5
          %v708 = vsel %vm429, %v706, %v707
          %v709 = vrot.slane %v496, 5
          %v710 = vrot.slane %v709, 4
          %v711 = vrot.slane %v497, 5
          %v712 = vsel %vm429, %v710, %v711
          %v713 = vrot.slane %v498, 5
          %v714 = vrot.slane %v713, 4
          %v715 = vrot.slane %v499, 5
          %v716 = vsel %vm429, %v714, %v715
          %v717 = vrot.slane %v500, 5
          %v718 = vrot.slane %v717, 4
          %v719 = vrot.slane %v501, 5
          %v720 = vsel %vm429, %v718, %v719
          %v721 = vrot.slane %v502, 5
          %v722 = vrot.slane %v721, 4
          %v723 = vrot.slane %v503, 5
          %v724 = vsel %vm429, %v722, %v723
          %v725 = vrot.slane %v504, 5
          %v726 = vrot.slane %v725, 4
          %v727 = vrot.slane %v505, 5
          %v728 = vsel %vm429, %v726, %v727
          %v729 = vrot.slane %v506, 5
          %v730 = vrot.slane %v729, 4
          %v731 = vrot.slane %v507, 5
          %v732 = vsel %vm429, %v730, %v731
          %v733 = vrot.slane %v508, 5
          %v734 = vrot.slane %v733, 4
          %v735 = vrot.slane %v509, 5
          %v736 = vsel %vm429, %v734, %v735
          %v737 = vrot.slane %v510, 5
          %v738 = vrot.slane %v737, 4
          %v739 = vrot.slane %v511, 5
          %v740 = vsel %vm429, %v738, %v739
          %v741 = vrot.slane %v512, 5
          %v742 = vrot.slane %v741, 4
          %v743 = vrot.slane %v513, 5
          %v744 = vsel %vm429, %v742, %v743
          %755 = vst [vmem:[%s514 + $0x8] sm:$0xf] %v708
          %756 = vst [vmem:[%s514 + $0x14] sm:$0xf] %v712
          %757 = vst [vmem:[%s514 + $0x20] sm:$0xf] %v716
          %758 = vst [vmem:[%s514 + $0x2c] sm:$0xf] %v720
          %759 = vst [vmem:[%s514 + $0x38] sm:$0xf] %v724
          %760 = vst [vmem:[%s514 + $0x44] sm:$0xf] %v728
          %761 = vst [vmem:[%s514 + $0x50] sm:$0xf] %v732
          %762 = vst [vmem:[%s514 + $0x5c] sm:$0xf] %v736
          %763 = vst [vmem:[%s514 + $0x68] sm:$0xf] %v740
          %764 = vst [vmem:[%s514 + $0x74] sm:$0xf] %v744
          %s765 = sadd.s32 %s23, 2
          %s766 = smul.u32 %s765, 20
          %s767 = smul.addr %s766, 4
          %s768 = scalar_lea.vmem %s202, %s767
          %v769 = vld [vmem:[%s768] sm:$0xf]
          %v770 = vld [vmem:[%s768 + $0x4] sm:$0x1]
          %v771 = vld [vmem:[%s768 + $0x8] sm:$0xf]
          %v772 = vld [vmem:[%s768 + $0xc] sm:$0x1]
          %v773 = vld [vmem:[%s768 + $0x10] sm:$0xf]
          %v774 = vld [vmem:[%s768 + $0x14] sm:$0x1]
          %v775 = vld [vmem:[%s768 + $0x18] sm:$0xf]
          %v776 = vld [vmem:[%s768 + $0x1c] sm:$0x1]
          %v777 = vld [vmem:[%s768 + $0x20] sm:$0xf]
          %v778 = vld [vmem:[%s768 + $0x24] sm:$0x1]
          %v779 = vld [vmem:[%s768 + $0x28] sm:$0xf]
          %v780 = vld [vmem:[%s768 + $0x2c] sm:$0x1]
          %v781 = vld [vmem:[%s768 + $0x30] sm:$0xf]
          %v782 = vld [vmem:[%s768 + $0x34] sm:$0x1]
          %v783 = vld [vmem:[%s768 + $0x38] sm:$0xf]
          %v784 = vld [vmem:[%s768 + $0x3c] sm:$0x1]
          %v785 = vld [vmem:[%s768 + $0x40] sm:$0xf]
          %v786 = vld [vmem:[%s768 + $0x44] sm:$0x1]
          %v787 = vld [vmem:[%s768 + $0x48] sm:$0xf]
          %v788 = vld [vmem:[%s768 + $0x4c] sm:$0x1]
          %s789 = scalar_lea.vmem [#allocation2], 240
          %790 = vst [vmem:[%s789] sm:$0xf] %v769
          %791 = vst [vmem:[%s789 + $0xc] sm:$0xf] %v771
          %792 = vst [vmem:[%s789 + $0x18] sm:$0xf] %v773
          %793 = vst [vmem:[%s789 + $0x24] sm:$0xf] %v775
          %794 = vst [vmem:[%s789 + $0x30] sm:$0xf] %v777
          %795 = vst [vmem:[%s789 + $0x3c] sm:$0xf] %v779
          %796 = vst [vmem:[%s789 + $0x48] sm:$0xf] %v781
          %797 = vst [vmem:[%s789 + $0x54] sm:$0xf] %v783
          %798 = vst [vmem:[%s789 + $0x60] sm:$0xf] %v785
          %799 = vst [vmem:[%s789 + $0x6c] sm:$0xf] %v787
          %v801 = vshrl.u32 %v769, 16
          %v803 = vrot.slane %v801, 4
          %v804 = vshll.u32 %v769, 16
          %v806 = vrot.slane %v804, 5
          %v807 = vor.u32 %v803, %v806
          %v808 = vrot.slane %v807, 4
          %v810 = vshll.u32 %v770, 16
          %v812 = vrot.slane %v810, 5
          %v813 = vsel %vm246, %v808, %v812
          %v815 = vshrl.u32 %v771, 16
          %v817 = vrot.slane %v815, 4
          %v818 = vshll.u32 %v771, 16
          %v820 = vrot.slane %v818, 5
          %v821 = vor.u32 %v817, %v820
          %v822 = vrot.slane %v821, 4
          %v824 = vshll.u32 %v772, 16
          %v826 = vrot.slane %v824, 5
          %v827 = vsel %vm246, %v822, %v826
          %v829 = vshrl.u32 %v773, 16
          %v831 = vrot.slane %v829, 4
          %v832 = vshll.u32 %v773, 16
          %v834 = vrot.slane %v832, 5
          %v835 = vor.u32 %v831, %v834
          %v836 = vrot.slane %v835, 4
          %v838 = vshll.u32 %v774, 16
          %v840 = vrot.slane %v838, 5
          %v841 = vsel %vm246, %v836, %v840
          %v843 = vshrl.u32 %v775, 16
          %v845 = vrot.slane %v843, 4
          %v846 = vshll.u32 %v775, 16
          %v848 = vrot.slane %v846, 5
          %v849 = vor.u32 %v845, %v848
          %v850 = vrot.slane %v849, 4
          %v852 = vshll.u32 %v776, 16
          %v854 = vrot.slane %v852, 5
          %v855 = vsel %vm246, %v850, %v854
          %v857 = vshrl.u32 %v777, 16
          %v859 = vrot.slane %v857, 4
          %v860 = vshll.u32 %v777, 16
          %v862 = vrot.slane %v860, 5
          %v863 = vor.u32 %v859, %v862
          %v864 = vrot.slane %v863, 4
          %v866 = vshll.u32 %v778, 16
          %v868 = vrot.slane %v866, 5
          %v869 = vsel %vm246, %v864, %v868
          %v871 = vshrl.u32 %v779, 16
          %v873 = vrot.slane %v871, 4
          %v874 = vshll.u32 %v779, 16
          %v876 = vrot.slane %v874, 5
          %v877 = vor.u32 %v873, %v876
          %v878 = vrot.slane %v877, 4
          %v880 = vshll.u32 %v780, 16
          %v882 = vrot.slane %v880, 5
          %v883 = vsel %vm246, %v878, %v882
          %v885 = vshrl.u32 %v781, 16
          %v887 = vrot.slane %v885, 4
          %v888 = vshll.u32 %v781, 16
          %v890 = vrot.slane %v888, 5
          %v891 = vor.u32 %v887, %v890
          %v892 = vrot.slane %v891, 4
          %v894 = vshll.u32 %v782, 16
          %v896 = vrot.slane %v894, 5
          %v897 = vsel %vm246, %v892, %v896
          %v899 = vshrl.u32 %v783, 16
          %v901 = vrot.slane %v899, 4
          %v902 = vshll.u32 %v783, 16
          %v904 = vrot.slane %v902, 5
          %v905 = vor.u32 %v901, %v904
          %v906 = vrot.slane %v905, 4
          %v908 = vshll.u32 %v784, 16
          %v910 = vrot.slane %v908, 5
          %v911 = vsel %vm246, %v906, %v910
          %v913 = vshrl.u32 %v785, 16
          %v915 = vrot.slane %v913, 4
          %v916 = vshll.u32 %v785, 16
          %v918 = vrot.slane %v916, 5
          %v919 = vor.u32 %v915, %v918
          %v920 = vrot.slane %v919, 4
          %v922 = vshll.u32 %v786, 16
          %v924 = vrot.slane %v922, 5
          %v925 = vsel %vm246, %v920, %v924
          %v927 = vshrl.u32 %v787, 16
          %v929 = vrot.slane %v927, 4
          %v930 = vshll.u32 %v787, 16
          %v932 = vrot.slane %v930, 5
          %v933 = vor.u32 %v929, %v932
          %v934 = vrot.slane %v933, 4
          %v936 = vshll.u32 %v788, 16
          %v938 = vrot.slane %v936, 5
          %v939 = vsel %vm246, %v934, %v938
          %950 = vst [vmem:[%s789 + $0x4] sm:$0xf] %v813
          %951 = vst [vmem:[%s789 + $0x10] sm:$0xf] %v827
          %952 = vst [vmem:[%s789 + $0x1c] sm:$0xf] %v841
          %953 = vst [vmem:[%s789 + $0x28] sm:$0xf] %v855
          %954 = vst [vmem:[%s789 + $0x34] sm:$0xf] %v869
          %955 = vst [vmem:[%s789 + $0x40] sm:$0xf] %v883
          %956 = vst [vmem:[%s789 + $0x4c] sm:$0xf] %v897
          %957 = vst [vmem:[%s789 + $0x58] sm:$0xf] %v911
          %958 = vst [vmem:[%s789 + $0x64] sm:$0xf] %v925
          %959 = vst [vmem:[%s789 + $0x70] sm:$0xf] %v939
          %v980 = vrot.slane %v769, 5
          %v981 = vrot.slane %v980, 4
          %v982 = vrot.slane %v770, 5
          %v983 = vsel %vm429, %v981, %v982
          %v984 = vrot.slane %v771, 5
          %v985 = vrot.slane %v984, 4
          %v986 = vrot.slane %v772, 5
          %v987 = vsel %vm429, %v985, %v986
          %v988 = vrot.slane %v773, 5
          %v989 = vrot.slane %v988, 4
          %v990 = vrot.slane %v774, 5
          %v991 = vsel %vm429, %v989, %v990
          %v992 = vrot.slane %v775, 5
          %v993 = vrot.slane %v992, 4
          %v994 = vrot.slane %v776, 5
          %v995 = vsel %vm429, %v993, %v994
          %v996 = vrot.slane %v777, 5
          %v997 = vrot.slane %v996, 4
          %v998 = vrot.slane %v778, 5
          %v999 = vsel %vm429, %v997, %v998
          %v1000 = vrot.slane %v779, 5
          %v1001 = vrot.slane %v1000, 4
          %v1002 = vrot.slane %v780, 5
          %v1003 = vsel %vm429, %v1001, %v1002
          %v1004 = vrot.slane %v781, 5
          %v1005 = vrot.slane %v1004, 4
          %v1006 = vrot.slane %v782, 5
          %v1007 = vsel %vm429, %v1005, %v1006
          %v1008 = vrot.slane %v783, 5
          %v1009 = vrot.slane %v1008, 4
          %v1010 = vrot.slane %v784, 5
          %v1011 = vsel %vm429, %v1009, %v1010
          %v1012 = vrot.slane %v785, 5
          %v1013 = vrot.slane %v1012, 4
          %v1014 = vrot.slane %v786, 5
          %v1015 = vsel %vm429, %v1013, %v1014
          %v1016 = vrot.slane %v787, 5
          %v1017 = vrot.slane %v1016, 4
          %v1018 = vrot.slane %v788, 5
          %v1019 = vsel %vm429, %v1017, %v1018
          %1030 = vst [vmem:[%s789 + $0x8] sm:$0xf] %v983
          %1031 = vst [vmem:[%s789 + $0x14] sm:$0xf] %v987
          %1032 = vst [vmem:[%s789 + $0x20] sm:$0xf] %v991
          %1033 = vst [vmem:[%s789 + $0x2c] sm:$0xf] %v995
          %1034 = vst [vmem:[%s789 + $0x38] sm:$0xf] %v999
          %1035 = vst [vmem:[%s789 + $0x44] sm:$0xf] %v1003
          %1036 = vst [vmem:[%s789 + $0x50] sm:$0xf] %v1007
          %1037 = vst [vmem:[%s789 + $0x5c] sm:$0xf] %v1011
          %1038 = vst [vmem:[%s789 + $0x68] sm:$0xf] %v1015
          %1039 = vst [vmem:[%s789 + $0x74] sm:$0xf] %v1019
        $region36: #{tpu_custom_call.1} parent=31 // pred_fallthru
          _
        %v1040 = vld [vmem:[#allocation2] sm:$0xff]
        %v1041 = vld [vmem:[#allocation2 + $0x8] sm:$0xf]
        %v1042 = vld [vmem:[#allocation2 + $0xc] sm:$0xff]
        %v1043 = vld [vmem:[#allocation2 + $0x14] sm:$0xf]
        %v1044 = vld [vmem:[#allocation2 + $0x18] sm:$0xff]
        %v1045 = vld [vmem:[#allocation2 + $0x20] sm:$0xf]
        %v1046 = vld [vmem:[#allocation2 + $0x24] sm:$0xff]
        %v1047 = vld [vmem:[#allocation2 + $0x2c] sm:$0xf]
        %v1048 = vld [vmem:[#allocation2 + $0x30] sm:$0xff]
        %v1049 = vld [vmem:[#allocation2 + $0x38] sm:$0xf]
        %v1050 = vld [vmem:[#allocation2 + $0x3c] sm:$0xff]
        %v1051 = vld [vmem:[#allocation2 + $0x44] sm:$0xf]
        %v1052 = vld [vmem:[#allocation2 + $0x48] sm:$0xff]
        %v1053 = vld [vmem:[#allocation2 + $0x50] sm:$0xf]
        %v1054 = vld [vmem:[#allocation2 + $0x54] sm:$0xff]
        %v1055 = vld [vmem:[#allocation2 + $0x5c] sm:$0xf]
        %s1056 = smul.u32 %s24, 432
        %s1057 = smul.addr %s1056, 4
        %s1058 = scalar_lea.vmem %s1, %s1057
        %v1059 = vld [vmem:[%s1058] sm:$0xf]
        %v1060 = vld [vmem:[%s1058 + $0x4] sm:$0xf]
        %v1061 = vld [vmem:[%s1058 + $0x8] sm:$0xf]
        %v1062 = vld [vmem:[%s1058 + $0xc] sm:$0xf]
        %v1063 = vld [vmem:[%s1058 + $0x10] sm:$0xf]
        %v1064 = vld [vmem:[%s1058 + $0x14] sm:$0xf]
        %v1065 = vld [vmem:[%s1058 + $0x18] sm:$0xf]
        %v1066 = vld [vmem:[%s1058 + $0x1c] sm:$0xf]
        %v1067 = vld [vmem:[%s1058 + $0x20] sm:$0xf]
        %v1068 = vld [vmem:[%s1058 + $0x24] sm:$0xf]
        %v1069 = vld [vmem:[%s1058 + $0x28] sm:$0xf]
        %v1070 = vld [vmem:[%s1058 + $0x2c] sm:$0xf]
        %v1071 = vld [vmem:[%s1058 + $0x30] sm:$0xf]
        %v1072 = vld [vmem:[%s1058 + $0x34] sm:$0xf]
        %v1073 = vld [vmem:[%s1058 + $0x38] sm:$0xf]
        %v1074 = vld [vmem:[%s1058 + $0x3c] sm:$0xf]
        %v1075 = vld [vmem:[%s1058 + $0x40] sm:$0xf]
        %v1076 = vld [vmem:[%s1058 + $0x44] sm:$0xf]
        %v1077 = vld [vmem:[%s1058 + $0x48] sm:$0xf]
        %v1078 = vld [vmem:[%s1058 + $0x4c] sm:$0xf]
        %v1079 = vld [vmem:[%s1058 + $0x50] sm:$0xf]
        %v1080 = vld [vmem:[%s1058 + $0x54] sm:$0xf]
        %v1081 = vld [vmem:[%s1058 + $0x58] sm:$0xf]
        %v1082 = vld [vmem:[%s1058 + $0x5c] sm:$0xf]
        %v1083 = vld [vmem:[%s1058 + $0x60] sm:$0xf]
        %v1084 = vld [vmem:[%s1058 + $0x64] sm:$0xf]
        %v1085 = vld [vmem:[%s1058 + $0x68] sm:$0xf]
        %v1086 = vld [vmem:[%s1058 + $0x6c] sm:$0xf]
        %v1087 = vld [vmem:[%s1058 + $0x70] sm:$0xf]
        %v1088 = vld [vmem:[%s1058 + $0x74] sm:$0xf]
        %v1089 = vld [vmem:[%s1058 + $0x78] sm:$0xf]
        %v1090 = vld [vmem:[%s1058 + $0x7c] sm:$0xf]
        %v1091 = vld [vmem:[%s1058 + $0x80] sm:$0xf]
        %v1092 = vld [vmem:[%s1058 + $0x84] sm:$0xf]
        %v1093 = vld [vmem:[%s1058 + $0x88] sm:$0xf]
        %v1094 = vld [vmem:[%s1058 + $0x8c] sm:$0xf]
        %v1095 = vld [vmem:[%s1058 + $0x90] sm:$0xf]
        %v1096 = vld [vmem:[%s1058 + $0x94] sm:$0xf]
        %v1097 = vld [vmem:[%s1058 + $0x98] sm:$0xf]
        %v1098 = vld [vmem:[%s1058 + $0x9c] sm:$0xf]
        %v1099 = vld [vmem:[%s1058 + $0xa0] sm:$0xf]
        %v1100 = vld [vmem:[%s1058 + $0xa4] sm:$0xf]
        %v1101 = vld [vmem:[%s1058 + $0xa8] sm:$0xf]
        %v1102 = vld [vmem:[%s1058 + $0xac] sm:$0xf]
        %v1103 = vld [vmem:[%s1058 + $0xb0] sm:$0xf]
        %v1104 = vld [vmem:[%s1058 + $0xb4] sm:$0xf]
        %v1105 = vld [vmem:[%s1058 + $0xb8] sm:$0xf]
        %v1106 = vld [vmem:[%s1058 + $0xbc] sm:$0xf]
        %v1107 = vld [vmem:[#allocation2 + $0x60] sm:$0xff]
        %v1108 = vld [vmem:[#allocation2 + $0x68] sm:$0xf]
        %s1109 = sadd.s32 48, %s1056
        %s1110 = smul.addr %s1109, 4
        %s1111 = scalar_lea.vmem %s1, %s1110
        %v1112 = vld [vmem:[%s1111] sm:$0xf]
        %v1113 = vld [vmem:[%s1111 + $0x4] sm:$0xf]
        %v1114 = vld [vmem:[%s1111 + $0x8] sm:$0xf]
        %v1115 = vld [vmem:[%s1111 + $0xc] sm:$0xf]
        %v1116 = vld [vmem:[%s1111 + $0x10] sm:$0xf]
        %v1117 = vld [vmem:[%s1111 + $0x14] sm:$0xf]
        %v1118 = vld [vmem:[%s1111 + $0x18] sm:$0xf]
        %v1119 = vld [vmem:[%s1111 + $0x1c] sm:$0xf]
        %v1120 = vld [vmem:[%s1111 + $0x20] sm:$0xf]
        %v1121 = vld [vmem:[%s1111 + $0x24] sm:$0xf]
        %v1122 = vld [vmem:[%s1111 + $0x28] sm:$0xf]
        %v1123 = vld [vmem:[%s1111 + $0x2c] sm:$0xf]
        %v1124 = vld [vmem:[%s1111 + $0x30] sm:$0xf]
        %v1125 = vld [vmem:[%s1111 + $0x34] sm:$0xf]
        %v1126 = vld [vmem:[%s1111 + $0x38] sm:$0xf]
        %v1127 = vld [vmem:[%s1111 + $0x3c] sm:$0xf]
        %v1128 = vld [vmem:[%s1111 + $0x40] sm:$0xf]
        %v1129 = vld [vmem:[%s1111 + $0x44] sm:$0xf]
        %v1130 = vld [vmem:[%s1111 + $0x48] sm:$0xf]
        %v1131 = vld [vmem:[%s1111 + $0x4c] sm:$0xf]
        %v1132 = vld [vmem:[%s1111 + $0x50] sm:$0xf]
        %v1133 = vld [vmem:[%s1111 + $0x54] sm:$0xf]
        %v1134 = vld [vmem:[%s1111 + $0x58] sm:$0xf]
        %v1135 = vld [vmem:[%s1111 + $0x5c] sm:$0xf]
        %v1136 = vld [vmem:[%s1111 + $0x60] sm:$0xf]
        %v1137 = vld [vmem:[%s1111 + $0x64] sm:$0xf]
        %v1138 = vld [vmem:[%s1111 + $0x68] sm:$0xf]
        %v1139 = vld [vmem:[%s1111 + $0x6c] sm:$0xf]
        %v1140 = vld [vmem:[%s1111 + $0x70] sm:$0xf]
        %v1141 = vld [vmem:[%s1111 + $0x74] sm:$0xf]
        %v1142 = vld [vmem:[%s1111 + $0x78] sm:$0xf]
        %v1143 = vld [vmem:[%s1111 + $0x7c] sm:$0xf]
        %v1144 = vld [vmem:[%s1111 + $0x80] sm:$0xf]
        %v1145 = vld [vmem:[%s1111 + $0x84] sm:$0xf]
        %v1146 = vld [vmem:[%s1111 + $0x88] sm:$0xf]
        %v1147 = vld [vmem:[%s1111 + $0x8c] sm:$0xf]
        %v1148 = vld [vmem:[%s1111 + $0x90] sm:$0xf]
        %v1149 = vld [vmem:[%s1111 + $0x94] sm:$0xf]
        %v1150 = vld [vmem:[%s1111 + $0x98] sm:$0xf]
        %v1151 = vld [vmem:[%s1111 + $0x9c] sm:$0xf]
        %v1152 = vld [vmem:[%s1111 + $0xa0] sm:$0xf]
        %v1153 = vld [vmem:[%s1111 + $0xa4] sm:$0xf]
        %v1154 = vld [vmem:[%s1111 + $0xa8] sm:$0xf]
        %v1155 = vld [vmem:[%s1111 + $0xac] sm:$0xf]
        %v1156 = vld [vmem:[%s1111 + $0xb0] sm:$0xf]
        %v1157 = vld [vmem:[%s1111 + $0xb4] sm:$0xf]
        %v1158 = vld [vmem:[%s1111 + $0xb8] sm:$0xf]
        %v1159 = vld [vmem:[%s1111 + $0xbc] sm:$0xf]
        %v1176 = vunpack.c.l.b16 %v1042
        %v1177 = vunpack.c.h.b16 %v1042
        %v1178 = vunpack.c.l.b16 %v1043
        %v1179 = vunpack.c.l.b16 %v1044
        %v1180 = vunpack.c.h.b16 %v1044
        %v1181 = vunpack.c.l.b16 %v1045
        %v1182 = vunpack.c.l.b16 %v1046
        %v1183 = vunpack.c.h.b16 %v1046
        %v1184 = vunpack.c.l.b16 %v1047
        %v1185 = vunpack.c.l.b16 %v1048
        %v1186 = vunpack.c.h.b16 %v1048
        %v1187 = vunpack.c.l.b16 %v1049
        %v1188 = vunpack.c.l.b16 %v1050
        %v1189 = vunpack.c.h.b16 %v1050
        %v1190 = vunpack.c.l.b16 %v1051
        %v1191 = vunpack.c.l.b16 %v1052
        %v1192 = vunpack.c.h.b16 %v1052
        %v1193 = vunpack.c.l.b16 %v1053
        %v1194 = vunpack.c.l.b16 %v1054
        %v1195 = vunpack.c.h.b16 %v1054
        %v1196 = vunpack.c.l.b16 %v1055
        %v1197 = vunpack.c.l.b16 %v1107
        %v1198 = vunpack.c.h.b16 %v1107
        %v1199 = vunpack.c.l.b16 %v1108
        %v1200 = vpack.c.b16 %v1179, %v1176
        %v1201 = vpack.c.b16 %v1180, %v1177
        %v1202 = vpack.c.b16 %v1181, %v1178
        %v1203 = vpack.c.b16 %v1185, %v1182
        %v1204 = vpack.c.b16 %v1186, %v1183
        %v1205 = vpack.c.b16 %v1187, %v1184
        %v1206 = vpack.c.b16 %v1191, %v1188
        %v1207 = vpack.c.b16 %v1192, %v1189
        %v1208 = vpack.c.b16 %v1193, %v1190
        %v1209 = vpack.c.b16 %v1197, %v1194
        %v1210 = vpack.c.b16 %v1198, %v1195
        %v1211 = vpack.c.b16 %v1199, %v1196
        %v1272 = vunpack.c.l.b16 %v1112
        %v1273 = vunpack.c.l.b16 %v1113
        %v1274 = vunpack.c.l.b16 %v1114
        %v1275 = vunpack.c.l.b16 %v1115
        %v1276 = vunpack.c.l.b16 %v1116
        %v1277 = vunpack.c.l.b16 %v1117
        %v1278 = vunpack.c.l.b16 %v1118
        %v1279 = vunpack.c.l.b16 %v1119
        %v1280 = vunpack.c.l.b16 %v1120
        %v1281 = vunpack.c.l.b16 %v1121
        %v1282 = vunpack.c.l.b16 %v1122
        %v1283 = vunpack.c.l.b16 %v1123
        %v1284 = vunpack.c.l.b16 %v1124
        %v1285 = vunpack.c.l.b16 %v1125
        %v1286 = vunpack.c.l.b16 %v1126
        %v1287 = vunpack.c.l.b16 %v1127
        %v1288 = vunpack.c.l.b16 %v1128
        %v1289 = vunpack.c.l.b16 %v1129
        %v1290 = vunpack.c.l.b16 %v1130
        %v1291 = vunpack.c.l.b16 %v1131
        %v1292 = vunpack.c.l.b16 %v1132
        %v1293 = vunpack.c.l.b16 %v1133
        %v1294 = vunpack.c.l.b16 %v1134
        %v1295 = vunpack.c.l.b16 %v1135
        %v1296 = vunpack.c.l.b16 %v1136
        %v1297 = vunpack.c.l.b16 %v1137
        %v1298 = vunpack.c.l.b16 %v1138
        %v1299 = vunpack.c.l.b16 %v1139
        %v1300 = vunpack.c.l.b16 %v1140
        %v1301 = vunpack.c.l.b16 %v1141
        %v1302 = vunpack.c.l.b16 %v1142
        %v1303 = vunpack.c.l.b16 %v1143
        %v1304 = vunpack.c.l.b16 %v1144
        %v1305 = vunpack.c.l.b16 %v1145
        %v1306 = vunpack.c.l.b16 %v1146
        %v1307 = vunpack.c.l.b16 %v1147
        %v1308 = vunpack.c.l.b16 %v1148
        %v1309 = vunpack.c.l.b16 %v1149
        %v1310 = vunpack.c.l.b16 %v1150
        %v1311 = vunpack.c.l.b16 %v1151
        %v1312 = vunpack.c.l.b16 %v1152
        %v1313 = vunpack.c.l.b16 %v1153
        %v1314 = vunpack.c.l.b16 %v1154
        %v1315 = vunpack.c.l.b16 %v1155
        %v1316 = vunpack.c.l.b16 %v1156
        %v1317 = vunpack.c.l.b16 %v1157
        %v1318 = vunpack.c.l.b16 %v1158
        %v1319 = vunpack.c.l.b16 %v1159
        %v1320 = vpack.c.b16 %v1273, %v1272
        %v1321 = vpack.c.b16 %v1275, %v1274
        %v1322 = vpack.c.b16 %v1277, %v1276
        %v1323 = vpack.c.b16 %v1279, %v1278
        %v1324 = vpack.c.b16 %v1281, %v1280
        %v1325 = vpack.c.b16 %v1283, %v1282
        %v1326 = vpack.c.b16 %v1285, %v1284
        %v1327 = vpack.c.b16 %v1287, %v1286
        %v1328 = vpack.c.b16 %v1289, %v1288
        %v1329 = vpack.c.b16 %v1291, %v1290
        %v1330 = vpack.c.b16 %v1293, %v1292
        %v1331 = vpack.c.b16 %v1295, %v1294
        %v1332 = vpack.c.b16 %v1297, %v1296
        %v1333 = vpack.c.b16 %v1299, %v1298
        %v1334 = vpack.c.b16 %v1301, %v1300
        %v1335 = vpack.c.b16 %v1303, %v1302
        %v1336 = vpack.c.b16 %v1305, %v1304
        %v1337 = vpack.c.b16 %v1307, %v1306
        %v1338 = vpack.c.b16 %v1309, %v1308
        %v1339 = vpack.c.b16 %v1311, %v1310
        %v1340 = vpack.c.b16 %v1313, %v1312
        %v1341 = vpack.c.b16 %v1315, %v1314
        %v1342 = vpack.c.b16 %v1317, %v1316
        %v1343 = vpack.c.b16 %v1319, %v1318
        %1368 = vmatprep.subr.bf16.mxu0 0
        %1369 = vmatpush1.bf16.msra.mxu0 %v1327
        %1370 = vmatprep.subr.bf16.mxu0 0
        %1371 = vmatpush1.bf16.msra.mxu0 %v1326
        %1372 = vmatprep.subr.bf16.mxu0 0
        %1373 = vmatpush1.bf16.msra.mxu0 %v1325
        %1374 = vmatprep.subr.bf16.mxu0 0
        %1375 = vmatpush1.bf16.msra.mxu0 %v1324
        %1376 = vmatprep.subr.bf16.mxu0 0
        %1377 = vmatpush1.bf16.msra.mxu0 %v1323
        %1378 = vmatprep.subr.bf16.mxu0 0
        %1379 = vmatpush1.bf16.msra.mxu0 %v1322
        %1380 = vmatprep.subr.bf16.mxu0 0
        %1381 = vmatpush1.bf16.msra.mxu0 %v1321
        %1382 = vmatprep.subr.bf16.mxu0 0
        %1383 = vmatpush1.bf16.msra.mxu0 %v1320
        %1384 = vmatprep.subr.bf16.mxu0 0
        %1385 = vmatpush2.bf16.msra.mxu0 %v1335
        %1386 = vmatprep.subr.bf16.mxu0 0
        %1387 = vmatpush2.bf16.msra.mxu0 %v1334
        %1388 = vmatprep.subr.bf16.mxu0 0
        %1389 = vmatpush2.bf16.msra.mxu0 %v1333
        %1390 = vmatprep.subr.bf16.mxu0 0
        %1391 = vmatpush2.bf16.msra.mxu0 %v1332
        %1392 = vmatprep.subr.bf16.mxu0 0
        %1393 = vmatpush2.bf16.msra.mxu0 %v1331
        %1394 = vmatprep.subr.bf16.mxu0 0
        %1395 = vmatpush2.bf16.msra.mxu0 %v1330
        %1396 = vmatprep.subr.bf16.mxu0 0
        %1397 = vmatpush2.bf16.msra.mxu0 %v1329
        %1398 = vmatprep.subr.bf16.mxu0 0
        %1399 = vmatpush2.bf16.msra.mxu0 %v1328
        %1400 = vmatprep.mubr.bf16.mxu0 %v1201
        %1401 = vmatmul.mubr.bf16.gmra.mxu0 %v1200
        %v1402 = vpop.f32.mrf.mxu0
        %v1403 = vadd.f32 0.0, %v1402
        %v1404 = vpop.f32.mrf.mxu0
        %v1405 = vpop.f32.mrf.mxu0
        %v1406 = vadd.f32 0.0, %v1405
        %v1407 = vpop.f32.mrf.mxu0
        %1408 = vmatprep.mubr.bf16.mxu0 %v1204
        %1409 = vmatmul.mubr.bf16.gmra.mxu0 %v1203
        %v1410 = vpop.f32.mrf.mxu0
        %v1411 = vadd.f32 0.0, %v1410
        %v1412 = vpop.f32.mrf.mxu0
        %v1413 = vpop.f32.mrf.mxu0
        %v1414 = vadd.f32 0.0, %v1413
        %v1415 = vpop.f32.mrf.mxu0
        %1416 = vmatprep.mubr.bf16.mxu0 %v1207
        %1417 = vmatmul.mubr.bf16.gmra.mxu0 %v1206
        %v1418 = vpop.f32.mrf.mxu0
        %v1419 = vadd.f32 0.0, %v1418
        %v1420 = vpop.f32.mrf.mxu0
        %v1421 = vpop.f32.mrf.mxu0
        %v1422 = vadd.f32 0.0, %v1421
        %v1423 = vpop.f32.mrf.mxu0
        %1424 = vmatprep.mubr.bf16.mxu0 %v1210
        %1425 = vmatmul.mubr.bf16.gmra.mxu0 %v1209
        %v1426 = vpop.f32.mrf.mxu0
        %v1427 = vadd.f32 0.0, %v1426
        %v1428 = vpop.f32.mrf.mxu0
        %v1429 = vpop.f32.mrf.mxu0
        %v1430 = vadd.f32 0.0, %v1429
        %v1431 = vpop.f32.mrf.mxu0
        %1432 = vdwg.mxu0
        %1433 = vmatprep.subr.bf16.mxu0 0
        %1434 = vmatpush1.bf16.msra.mxu0 %v1343
        %1435 = vmatprep.subr.bf16.mxu0 0
        %1436 = vmatpush1.bf16.msra.mxu0 %v1342
        %1437 = vmatprep.subr.bf16.mxu0 0
        %1438 = vmatpush1.bf16.msra.mxu0 %v1341
        %1439 = vmatprep.subr.bf16.mxu0 0
        %1440 = vmatpush1.bf16.msra.mxu0 %v1340
        %1441 = vmatprep.subr.bf16.mxu0 0
        %1442 = vmatpush1.bf16.msra.mxu0 %v1339
        %1443 = vmatprep.subr.bf16.mxu0 0
        %1444 = vmatpush1.bf16.msra.mxu0 %v1338
        %1445 = vmatprep.subr.bf16.mxu0 0
        %1446 = vmatpush1.bf16.msra.mxu0 %v1337
        %1447 = vmatprep.subr.bf16.mxu0 0
        %1448 = vmatpush1.bf16.msra.mxu0 %v1336
        %1449 = vmatprep.subr.bf16.mxu0 0
        %1450 = vmatpush2.bf16.msra.mxu0 0
        %1451 = vmatprep.subr.bf16.mxu0 0
        %1452 = vmatpush2.bf16.msra.mxu0 0
        %1453 = vmatprep.subr.bf16.mxu0 0
        %1454 = vmatpush2.bf16.msra.mxu0 0
        %1455 = vmatprep.subr.bf16.mxu0 0
        %1456 = vmatpush2.bf16.msra.mxu0 0
        %1457 = vmatprep.subr.bf16.mxu0 0
        %1458 = vmatpush2.bf16.msra.mxu0 0
        %1459 = vmatprep.subr.bf16.mxu0 0
        %1460 = vmatpush2.bf16.msra.mxu0 0
        %1461 = vmatprep.subr.bf16.mxu0 0
        %1462 = vmatpush2.bf16.msra.mxu0 0
        %1463 = vmatprep.subr.bf16.mxu0 0
        %1464 = vmatpush2.bf16.msra.mxu0 0
        %1465 = vmatprep.mubr.bf16.mxu0 0
        %1466 = vmatmul.mubr.bf16.gmra.mxu0 %v1202
        %v1467 = vpop.f32.mrf.mxu0
        %v1468 = vadd.f32 %v1403, %v1467
        %v1469 = vpop.f32.mrf.mxu0
        %v1470 = vpop.f32.mrf.mxu0
        %v1471 = vadd.f32 %v1406, %v1470
        %v1472 = vpop.f32.mrf.mxu0
        %1473 = vmatprep.mubr.bf16.mxu0 0
        %1474 = vmatmul.mubr.bf16.gmra.mxu0 %v1205
        %v1475 = vpop.f32.mrf.mxu0
        %v1476 = vadd.f32 %v1411, %v1475
        %v1477 = vpop.f32.mrf.mxu0
        %v1478 = vpop.f32.mrf.mxu0
        %v1479 = vadd.f32 %v1414, %v1478
        %v1480 = vpop.f32.mrf.mxu0
        %1481 = vmatprep.mubr.bf16.mxu0 0
        %1482 = vmatmul.mubr.bf16.gmra.mxu0 %v1208
        %v1483 = vpop.f32.mrf.mxu0
        %v1484 = vadd.f32 %v1419, %v1483
        %v1485 = vpop.f32.mrf.mxu0
        %v1486 = vpop.f32.mrf.mxu0
        %v1487 = vadd.f32 %v1422, %v1486
        %v1488 = vpop.f32.mrf.mxu0
        %1489 = vmatprep.mubr.bf16.mxu0 0
        %1490 = vmatmul.mubr.bf16.gmra.mxu0 %v1211
        %v1491 = vpop.f32.mrf.mxu0
        %v1492 = vadd.f32 %v1427, %v1491
        %v1493 = vpop.f32.mrf.mxu0
        %v1494 = vpop.f32.mrf.mxu0
        %v1495 = vadd.f32 %v1430, %v1494
        %v1496 = vpop.f32.mrf.mxu0
        %1497 = vdwg.mxu0
        %v1500 = vunpack.c.l.b16 %v1040
        %v1501 = vunpack.c.h.b16 %v1040
        %v1502 = vunpack.c.l.b16 %v1041
        %v1503 = vpack.c.b16 %v1176, %v1500
        %v1504 = vpack.c.b16 %v1177, %v1501
        %v1505 = vpack.c.b16 %v1178, %v1502
        %v1506 = vpack.c.b16 %v1182, %v1179
        %v1507 = vpack.c.b16 %v1183, %v1180
        %v1508 = vpack.c.b16 %v1184, %v1181
        %v1509 = vpack.c.b16 %v1188, %v1185
        %v1510 = vpack.c.b16 %v1189, %v1186
        %v1511 = vpack.c.b16 %v1190, %v1187
        %v1512 = vpack.c.b16 %v1194, %v1191
        %v1513 = vpack.c.b16 %v1195, %v1192
        %v1514 = vpack.c.b16 %v1196, %v1193
        %v1575 = vunpack.c.l.b16 %v1059
        %v1576 = vunpack.c.l.b16 %v1060
        %v1577 = vunpack.c.l.b16 %v1061
        %v1578 = vunpack.c.l.b16 %v1062
        %v1579 = vunpack.c.l.b16 %v1063
        %v1580 = vunpack.c.l.b16 %v1064
        %v1581 = vunpack.c.l.b16 %v1065
        %v1582 = vunpack.c.l.b16 %v1066
        %v1583 = vunpack.c.l.b16 %v1067
        %v1584 = vunpack.c.l.b16 %v1068
        %v1585 = vunpack.c.l.b16 %v1069
        %v1586 = vunpack.c.l.b16 %v1070
        %v1587 = vunpack.c.l.b16 %v1071
        %v1588 = vunpack.c.l.b16 %v1072
        %v1589 = vunpack.c.l.b16 %v1073
        %v1590 = vunpack.c.l.b16 %v1074
        %v1591 = vunpack.c.l.b16 %v1075
        %v1592 = vunpack.c.l.b16 %v1076
        %v1593 = vunpack.c.l.b16 %v1077
        %v1594 = vunpack.c.l.b16 %v1078
        %v1595 = vunpack.c.l.b16 %v1079
        %v1596 = vunpack.c.l.b16 %v1080
        %v1597 = vunpack.c.l.b16 %v1081
        %v1598 = vunpack.c.l.b16 %v1082
        %v1599 = vunpack.c.l.b16 %v1083
        %v1600 = vunpack.c.l.b16 %v1084
        %v1601 = vunpack.c.l.b16 %v1085
        %v1602 = vunpack.c.l.b16 %v1086
        %v1603 = vunpack.c.l.b16 %v1087
        %v1604 = vunpack.c.l.b16 %v1088
        %v1605 = vunpack.c.l.b16 %v1089
        %v1606 = vunpack.c.l.b16 %v1090
        %v1607 = vunpack.c.l.b16 %v1091
        %v1608 = vunpack.c.l.b16 %v1092
        %v1609 = vunpack.c.l.b16 %v1093
        %v1610 = vunpack.c.l.b16 %v1094
        %v1611 = vunpack.c.l.b16 %v1095
        %v1612 = vunpack.c.l.b16 %v1096
        %v1613 = vunpack.c.l.b16 %v1097
        %v1614 = vunpack.c.l.b16 %v1098
        %v1615 = vunpack.c.l.b16 %v1099
        %v1616 = vunpack.c.l.b16 %v1100
        %v1617 = vunpack.c.l.b16 %v1101
        %v1618 = vunpack.c.l.b16 %v1102
        %v1619 = vunpack.c.l.b16 %v1103
        %v1620 = vunpack.c.l.b16 %v1104
        %v1621 = vunpack.c.l.b16 %v1105
        %v1622 = vunpack.c.l.b16 %v1106
        %v1623 = vpack.c.b16 %v1576, %v1575
        %v1624 = vpack.c.b16 %v1578, %v1577
        %v1625 = vpack.c.b16 %v1580, %v1579
        %v1626 = vpack.c.b16 %v1582, %v1581
        %v1627 = vpack.c.b16 %v1584, %v1583
        %v1628 = vpack.c.b16 %v1586, %v1585
        %v1629 = vpack.c.b16 %v1588, %v1587
        %v1630 = vpack.c.b16 %v1590, %v1589
        %v1631 = vpack.c.b16 %v1592, %v1591
        %v1632 = vpack.c.b16 %v1594, %v1593
        %v1633 = vpack.c.b16 %v1596, %v1595
        %v1634 = vpack.c.b16 %v1598, %v1597
        %v1635 = vpack.c.b16 %v1600, %v1599
        %v1636 = vpack.c.b16 %v1602, %v1601
        %v1637 = vpack.c.b16 %v1604, %v1603
        %v1638 = vpack.c.b16 %v1606, %v1605
        %v1639 = vpack.c.b16 %v1608, %v1607
        %v1640 = vpack.c.b16 %v1610, %v1609
        %v1641 = vpack.c.b16 %v1612, %v1611
        %v1642 = vpack.c.b16 %v1614, %v1613
        %v1643 = vpack.c.b16 %v1616, %v1615
        %v1644 = vpack.c.b16 %v1618, %v1617
        %v1645 = vpack.c.b16 %v1620, %v1619
        %v1646 = vpack.c.b16 %v1622, %v1621
        %1671 = vmatprep.subr.bf16.mxu0 0
        %1672 = vmatpush1.bf16.msra.mxu0 %v1630
        %1673 = vmatprep.subr.bf16.mxu0 0
        %1674 = vmatpush1.bf16.msra.mxu0 %v1629
        %1675 = vmatprep.subr.bf16.mxu0 0
        %1676 = vmatpush1.bf16.msra.mxu0 %v1628
        %1677 = vmatprep.subr.bf16.mxu0 0
        %1678 = vmatpush1.bf16.msra.mxu0 %v1627
        %1679 = vmatprep.subr.bf16.mxu0 0
        %1680 = vmatpush1.bf16.msra.mxu0 %v1626
        %1681 = vmatprep.subr.bf16.mxu0 0
        %1682 = vmatpush1.bf16.msra.mxu0 %v1625
        %1683 = vmatprep.subr.bf16.mxu0 0
        %1684 = vmatpush1.bf16.msra.mxu0 %v1624
        %1685 = vmatprep.subr.bf16.mxu0 0
        %1686 = vmatpush1.bf16.msra.mxu0 %v1623
        %1687 = vmatprep.subr.bf16.mxu0 0
        %1688 = vmatpush2.bf16.msra.mxu0 %v1638
        %1689 = vmatprep.subr.bf16.mxu0 0
        %1690 = vmatpush2.bf16.msra.mxu0 %v1637
        %1691 = vmatprep.subr.bf16.mxu0 0
        %1692 = vmatpush2.bf16.msra.mxu0 %v1636
        %1693 = vmatprep.subr.bf16.mxu0 0
        %1694 = vmatpush2.bf16.msra.mxu0 %v1635
        %1695 = vmatprep.subr.bf16.mxu0 0
        %1696 = vmatpush2.bf16.msra.mxu0 %v1634
        %1697 = vmatprep.subr.bf16.mxu0 0
        %1698 = vmatpush2.bf16.msra.mxu0 %v1633
        %1699 = vmatprep.subr.bf16.mxu0 0
        %1700 = vmatpush2.bf16.msra.mxu0 %v1632
        %1701 = vmatprep.subr.bf16.mxu0 0
        %1702 = vmatpush2.bf16.msra.mxu0 %v1631
        %1703 = vmatprep.mubr.bf16.mxu0 %v1504
        %1704 = vmatmul.mubr.bf16.gmra.mxu0 %v1503
        %v1705 = vpop.f32.mrf.mxu0
        %v1706 = vadd.f32 %v1468, %v1705
        %v1707 = vpop.f32.mrf.mxu0
        %v1708 = vpop.f32.mrf.mxu0
        %v1709 = vadd.f32 %v1471, %v1708
        %v1710 = vpop.f32.mrf.mxu0
        %1711 = vmatprep.mubr.bf16.mxu0 %v1507
        %1712 = vmatmul.mubr.bf16.gmra.mxu0 %v1506
        %v1713 = vpop.f32.mrf.mxu0
        %v1714 = vadd.f32 %v1476, %v1713
        %v1715 = vpop.f32.mrf.mxu0
        %v1716 = vpop.f32.mrf.mxu0
        %v1717 = vadd.f32 %v1479, %v1716
        %v1718 = vpop.f32.mrf.mxu0
        %1719 = vmatprep.mubr.bf16.mxu0 %v1510
        %1720 = vmatmul.mubr.bf16.gmra.mxu0 %v1509
        %v1721 = vpop.f32.mrf.mxu0
        %v1722 = vadd.f32 %v1484, %v1721
        %v1723 = vpop.f32.mrf.mxu0
        %v1724 = vpop.f32.mrf.mxu0
        %v1725 = vadd.f32 %v1487, %v1724
        %v1726 = vpop.f32.mrf.mxu0
        %1727 = vmatprep.mubr.bf16.mxu0 %v1513
        %1728 = vmatmul.mubr.bf16.gmra.mxu0 %v1512
        %v1729 = vpop.f32.mrf.mxu0
        %v1730 = vadd.f32 %v1492, %v1729
        %v1731 = vpop.f32.mrf.mxu0
        %v1732 = vpop.f32.mrf.mxu0
        %v1733 = vadd.f32 %v1495, %v1732
        %v1734 = vpop.f32.mrf.mxu0
        %1735 = vdwg.mxu0
        %1736 = vmatprep.subr.bf16.mxu0 0
        %1737 = vmatpush1.bf16.msra.mxu0 %v1646
        %1738 = vmatprep.subr.bf16.mxu0 0
        %1739 = vmatpush1.bf16.msra.mxu0 %v1645
        %1740 = vmatprep.subr.bf16.mxu0 0
        %1741 = vmatpush1.bf16.msra.mxu0 %v1644
        %1742 = vmatprep.subr.bf16.mxu0 0
        %1743 = vmatpush1.bf16.msra.mxu0 %v1643
        %1744 = vmatprep.subr.bf16.mxu0 0
        %1745 = vmatpush1.bf16.msra.mxu0 %v1642
        %1746 = vmatprep.subr.bf16.mxu0 0
        %1747 = vmatpush1.bf16.msra.mxu0 %v1641
        %1748 = vmatprep.subr.bf16.mxu0 0
        %1749 = vmatpush1.bf16.msra.mxu0 %v1640
        %1750 = vmatprep.subr.bf16.mxu0 0
        %1751 = vmatpush1.bf16.msra.mxu0 %v1639
        %1752 = vmatprep.subr.bf16.mxu0 0
        %1753 = vmatpush2.bf16.msra.mxu0 0
        %1754 = vmatprep.subr.bf16.mxu0 0
        %1755 = vmatpush2.bf16.msra.mxu0 0
        %1756 = vmatprep.subr.bf16.mxu0 0
        %1757 = vmatpush2.bf16.msra.mxu0 0
        %1758 = vmatprep.subr.bf16.mxu0 0
        %1759 = vmatpush2.bf16.msra.mxu0 0
        %1760 = vmatprep.subr.bf16.mxu0 0
        %1761 = vmatpush2.bf16.msra.mxu0 0
        %1762 = vmatprep.subr.bf16.mxu0 0
        %1763 = vmatpush2.bf16.msra.mxu0 0
        %1764 = vmatprep.subr.bf16.mxu0 0
        %1765 = vmatpush2.bf16.msra.mxu0 0
        %1766 = vmatprep.subr.bf16.mxu0 0
        %1767 = vmatpush2.bf16.msra.mxu0 0
        %1768 = vmatprep.mubr.bf16.mxu0 0
        %1769 = vmatmul.mubr.bf16.gmra.mxu0 %v1505
        %v1770 = vpop.f32.mrf.mxu0
        %v1771 = vadd.f32 %v1706, %v1770
        %v1772 = vpop.f32.mrf.mxu0
        %v1773 = vpop.f32.mrf.mxu0
        %v1774 = vadd.f32 %v1709, %v1773
        %v1775 = vpop.f32.mrf.mxu0
        %1776 = vmatprep.mubr.bf16.mxu0 0
        %1777 = vmatmul.mubr.bf16.gmra.mxu0 %v1508
        %v1778 = vpop.f32.mrf.mxu0
        %v1779 = vadd.f32 %v1714, %v1778
        %v1780 = vpop.f32.mrf.mxu0
        %v1781 = vpop.f32.mrf.mxu0
        %v1782 = vadd.f32 %v1717, %v1781
        %v1783 = vpop.f32.mrf.mxu0
        %1784 = vmatprep.mubr.bf16.mxu0 0
        %1785 = vmatmul.mubr.bf16.gmra.mxu0 %v1511
        %v1786 = vpop.f32.mrf.mxu0
        %v1787 = vadd.f32 %v1722, %v1786
        %v1788 = vpop.f32.mrf.mxu0
        %v1789 = vpop.f32.mrf.mxu0
        %v1790 = vadd.f32 %v1725, %v1789
        %v1791 = vpop.f32.mrf.mxu0
        %1792 = vmatprep.mubr.bf16.mxu0 0
        %1793 = vmatmul.mubr.bf16.gmra.mxu0 %v1514
        %v1794 = vpop.f32.mrf.mxu0
        %v1795 = vadd.f32 %v1730, %v1794
        %v1796 = vpop.f32.mrf.mxu0
        %v1797 = vpop.f32.mrf.mxu0
        %v1798 = vadd.f32 %v1733, %v1797
        %v1799 = vpop.f32.mrf.mxu0
        %1800 = vdwg.mxu0
        %v1801 = vld [vmem:[#allocation2 + $0x18] sm:$0xff]
        %v1802 = vld [vmem:[#allocation2 + $0x20] sm:$0xf]
        %v1803 = vld [vmem:[#allocation2 + $0x24] sm:$0xff]
        %v1804 = vld [vmem:[#allocation2 + $0x2c] sm:$0xf]
        %v1805 = vld [vmem:[#allocation2 + $0x30] sm:$0xff]
        %v1806 = vld [vmem:[#allocation2 + $0x38] sm:$0xf]
        %v1807 = vld [vmem:[#allocation2 + $0x3c] sm:$0xff]
        %v1808 = vld [vmem:[#allocation2 + $0x44] sm:$0xf]
        %v1809 = vld [vmem:[#allocation2 + $0x48] sm:$0xff]
        %v1810 = vld [vmem:[#allocation2 + $0x50] sm:$0xf]
        %v1811 = vld [vmem:[#allocation2 + $0x54] sm:$0xff]
        %v1812 = vld [vmem:[#allocation2 + $0x5c] sm:$0xf]
        %v1813 = vld [vmem:[#allocation2 + $0x60] sm:$0xff]
        %v1814 = vld [vmem:[#allocation2 + $0x68] sm:$0xf]
        %v1815 = vld [vmem:[#allocation2 + $0x6c] sm:$0xff]
        %v1816 = vld [vmem:[#allocation2 + $0x74] sm:$0xf]
        %s1817 = sadd.s32 96, %s1056
        %s1818 = smul.addr %s1817, 4
        %s1819 = scalar_lea.vmem %s1, %s1818
        %v1820 = vld [vmem:[%s1819] sm:$0xf]
        %v1821 = vld [vmem:[%s1819 + $0x4] sm:$0xf]
        %v1822 = vld [vmem:[%s1819 + $0x8] sm:$0xf]
        %v1823 = vld [vmem:[%s1819 + $0xc] sm:$0xf]
        %v1824 = vld [vmem:[%s1819 + $0x10] sm:$0xf]
        %v1825 = vld [vmem:[%s1819 + $0x14] sm:$0xf]
        %v1826 = vld [vmem:[%s1819 + $0x18] sm:$0xf]
        %v1827 = vld [vmem:[%s1819 + $0x1c] sm:$0xf]
        %v1828 = vld [vmem:[%s1819 + $0x20] sm:$0xf]
        %v1829 = vld [vmem:[%s1819 + $0x24] sm:$0xf]
        %v1830 = vld [vmem:[%s1819 + $0x28] sm:$0xf]
        %v1831 = vld [vmem:[%s1819 + $0x2c] sm:$0xf]
        %v1832 = vld [vmem:[%s1819 + $0x30] sm:$0xf]
        %v1833 = vld [vmem:[%s1819 + $0x34] sm:$0xf]
        %v1834 = vld [vmem:[%s1819 + $0x38] sm:$0xf]
        %v1835 = vld [vmem:[%s1819 + $0x3c] sm:$0xf]
        %v1836 = vld [vmem:[%s1819 + $0x40] sm:$0xf]
        %v1837 = vld [vmem:[%s1819 + $0x44] sm:$0xf]
        %v1838 = vld [vmem:[%s1819 + $0x48] sm:$0xf]
        %v1839 = vld [vmem:[%s1819 + $0x4c] sm:$0xf]
        %v1840 = vld [vmem:[%s1819 + $0x50] sm:$0xf]
        %v1841 = vld [vmem:[%s1819 + $0x54] sm:$0xf]
        %v1842 = vld [vmem:[%s1819 + $0x58] sm:$0xf]
        %v1843 = vld [vmem:[%s1819 + $0x5c] sm:$0xf]
        %v1844 = vld [vmem:[%s1819 + $0x60] sm:$0xf]
        %v1845 = vld [vmem:[%s1819 + $0x64] sm:$0xf]
        %v1846 = vld [vmem:[%s1819 + $0x68] sm:$0xf]
        %v1847 = vld [vmem:[%s1819 + $0x6c] sm:$0xf]
        %v1848 = vld [vmem:[%s1819 + $0x70] sm:$0xf]
        %v1849 = vld [vmem:[%s1819 + $0x74] sm:$0xf]
        %v1850 = vld [vmem:[%s1819 + $0x78] sm:$0xf]
        %v1851 = vld [vmem:[%s1819 + $0x7c] sm:$0xf]
        %v1852 = vld [vmem:[%s1819 + $0x80] sm:$0xf]
        %v1853 = vld [vmem:[%s1819 + $0x84] sm:$0xf]
        %v1854 = vld [vmem:[%s1819 + $0x88] sm:$0xf]
        %v1855 = vld [vmem:[%s1819 + $0x8c] sm:$0xf]
        %v1856 = vld [vmem:[%s1819 + $0x90] sm:$0xf]
        %v1857 = vld [vmem:[%s1819 + $0x94] sm:$0xf]
        %v1858 = vld [vmem:[%s1819 + $0x98] sm:$0xf]
        %v1859 = vld [vmem:[%s1819 + $0x9c] sm:$0xf]
        %v1860 = vld [vmem:[%s1819 + $0xa0] sm:$0xf]
        %v1861 = vld [vmem:[%s1819 + $0xa4] sm:$0xf]
        %v1862 = vld [vmem:[%s1819 + $0xa8] sm:$0xf]
        %v1863 = vld [vmem:[%s1819 + $0xac] sm:$0xf]
        %v1864 = vld [vmem:[%s1819 + $0xb0] sm:$0xf]
        %v1865 = vld [vmem:[%s1819 + $0xb4] sm:$0xf]
        %v1866 = vld [vmem:[%s1819 + $0xb8] sm:$0xf]
        %v1867 = vld [vmem:[%s1819 + $0xbc] sm:$0xf]
        %v1884 = vunpack.c.l.b16 %v1801
        %v1885 = vunpack.c.h.b16 %v1801
        %v1886 = vunpack.c.l.b16 %v1802
        %v1887 = vunpack.c.l.b16 %v1803
        %v1888 = vunpack.c.h.b16 %v1803
        %v1889 = vunpack.c.l.b16 %v1804
        %v1890 = vunpack.c.l.b16 %v1805
        %v1891 = vunpack.c.h.b16 %v1805
        %v1892 = vunpack.c.l.b16 %v1806
        %v1893 = vunpack.c.l.b16 %v1807
        %v1894 = vunpack.c.h.b16 %v1807
        %v1895 = vunpack.c.l.b16 %v1808
        %v1896 = vunpack.c.l.b16 %v1809
        %v1897 = vunpack.c.h.b16 %v1809
        %v1898 = vunpack.c.l.b16 %v1810
        %v1899 = vunpack.c.l.b16 %v1811
        %v1900 = vunpack.c.h.b16 %v1811
        %v1901 = vunpack.c.l.b16 %v1812
        %v1902 = vunpack.c.l.b16 %v1813
        %v1903 = vunpack.c.h.b16 %v1813
        %v1904 = vunpack.c.l.b16 %v1814
        %v1905 = vunpack.c.l.b16 %v1815
        %v1906 = vunpack.c.h.b16 %v1815
        %v1907 = vunpack.c.l.b16 %v1816
        %v1908 = vpack.c.b16 %v1887, %v1884
        %v1909 = vpack.c.b16 %v1888, %v1885
        %v1910 = vpack.c.b16 %v1889, %v1886
        %v1911 = vpack.c.b16 %v1893, %v1890
        %v1912 = vpack.c.b16 %v1894, %v1891
        %v1913 = vpack.c.b16 %v1895, %v1892
        %v1914 = vpack.c.b16 %v1899, %v1896
        %v1915 = vpack.c.b16 %v1900, %v1897
        %v1916 = vpack.c.b16 %v1901, %v1898
        %v1917 = vpack.c.b16 %v1905, %v1902
        %v1918 = vpack.c.b16 %v1906, %v1903
        %v1919 = vpack.c.b16 %v1907, %v1904
        %v1980 = vunpack.c.l.b16 %v1820
        %v1981 = vunpack.c.l.b16 %v1821
        %v1982 = vunpack.c.l.b16 %v1822
        %v1983 = vunpack.c.l.b16 %v1823
        %v1984 = vunpack.c.l.b16 %v1824
        %v1985 = vunpack.c.l.b16 %v1825
        %v1986 = vunpack.c.l.b16 %v1826
        %v1987 = vunpack.c.l.b16 %v1827
        %v1988 = vunpack.c.l.b16 %v1828
        %v1989 = vunpack.c.l.b16 %v1829
        %v1990 = vunpack.c.l.b16 %v1830
        %v1991 = vunpack.c.l.b16 %v1831
        %v1992 = vunpack.c.l.b16 %v1832
        %v1993 = vunpack.c.l.b16 %v1833
        %v1994 = vunpack.c.l.b16 %v1834
        %v1995 = vunpack.c.l.b16 %v1835
        %v1996 = vunpack.c.l.b16 %v1836
        %v1997 = vunpack.c.l.b16 %v1837
        %v1998 = vunpack.c.l.b16 %v1838
        %v1999 = vunpack.c.l.b16 %v1839
        %v2000 = vunpack.c.l.b16 %v1840
        %v2001 = vunpack.c.l.b16 %v1841
        %v2002 = vunpack.c.l.b16 %v1842
        %v2003 = vunpack.c.l.b16 %v1843
        %v2004 = vunpack.c.l.b16 %v1844
        %v2005 = vunpack.c.l.b16 %v1845
        %v2006 = vunpack.c.l.b16 %v1846
        %v2007 = vunpack.c.l.b16 %v1847
        %v2008 = vunpack.c.l.b16 %v1848
        %v2009 = vunpack.c.l.b16 %v1849
        %v2010 = vunpack.c.l.b16 %v1850
        %v2011 = vunpack.c.l.b16 %v1851
        %v2012 = vunpack.c.l.b16 %v1852
        %v2013 = vunpack.c.l.b16 %v1853
        %v2014 = vunpack.c.l.b16 %v1854
        %v2015 = vunpack.c.l.b16 %v1855
        %v2016 = vunpack.c.l.b16 %v1856
        %v2017 = vunpack.c.l.b16 %v1857
        %v2018 = vunpack.c.l.b16 %v1858
        %v2019 = vunpack.c.l.b16 %v1859
        %v2020 = vunpack.c.l.b16 %v1860
        %v2021 = vunpack.c.l.b16 %v1861
        %v2022 = vunpack.c.l.b16 %v1862
        %v2023 = vunpack.c.l.b16 %v1863
        %v2024 = vunpack.c.l.b16 %v1864
        %v2025 = vunpack.c.l.b16 %v1865
        %v2026 = vunpack.c.l.b16 %v1866
        %v2027 = vunpack.c.l.b16 %v1867
        %v2028 = vpack.c.b16 %v1981, %v1980
        %v2029 = vpack.c.b16 %v1983, %v1982
        %v2030 = vpack.c.b16 %v1985, %v1984
        %v2031 = vpack.c.b16 %v1987, %v1986
        %v2032 = vpack.c.b16 %v1989, %v1988
        %v2033 = vpack.c.b16 %v1991, %v1990
        %v2034 = vpack.c.b16 %v1993, %v1992
        %v2035 = vpack.c.b16 %v1995, %v1994
        %v2036 = vpack.c.b16 %v1997, %v1996
        %v2037 = vpack.c.b16 %v1999, %v1998
        %v2038 = vpack.c.b16 %v2001, %v2000
        %v2039 = vpack.c.b16 %v2003, %v2002
        %v2040 = vpack.c.b16 %v2005, %v2004
        %v2041 = vpack.c.b16 %v2007, %v2006
        %v2042 = vpack.c.b16 %v2009, %v2008
        %v2043 = vpack.c.b16 %v2011, %v2010
        %v2044 = vpack.c.b16 %v2013, %v2012
        %v2045 = vpack.c.b16 %v2015, %v2014
        %v2046 = vpack.c.b16 %v2017, %v2016
        %v2047 = vpack.c.b16 %v2019, %v2018
        %v2048 = vpack.c.b16 %v2021, %v2020
        %v2049 = vpack.c.b16 %v2023, %v2022
        %v2050 = vpack.c.b16 %v2025, %v2024
        %v2051 = vpack.c.b16 %v2027, %v2026
        %2076 = vmatprep.subr.bf16.mxu0 0
        %2077 = vmatpush1.bf16.msra.mxu0 %v2035
        %2078 = vmatprep.subr.bf16.mxu0 0
        %2079 = vmatpush1.bf16.msra.mxu0 %v2034
        %2080 = vmatprep.subr.bf16.mxu0 0
        %2081 = vmatpush1.bf16.msra.mxu0 %v2033
        %2082 = vmatprep.subr.bf16.mxu0 0
        %2083 = vmatpush1.bf16.msra.mxu0 %v2032
        %2084 = vmatprep.subr.bf16.mxu0 0
        %2085 = vmatpush1.bf16.msra.mxu0 %v2031
        %2086 = vmatprep.subr.bf16.mxu0 0
        %2087 = vmatpush1.bf16.msra.mxu0 %v2030
        %2088 = vmatprep.subr.bf16.mxu0 0
        %2089 = vmatpush1.bf16.msra.mxu0 %v2029
        %2090 = vmatprep.subr.bf16.mxu0 0
        %2091 = vmatpush1.bf16.msra.mxu0 %v2028
        %2092 = vmatprep.subr.bf16.mxu0 0
        %2093 = vmatpush2.bf16.msra.mxu0 %v2043
        %2094 = vmatprep.subr.bf16.mxu0 0
        %2095 = vmatpush2.bf16.msra.mxu0 %v2042
        %2096 = vmatprep.subr.bf16.mxu0 0
        %2097 = vmatpush2.bf16.msra.mxu0 %v2041
        %2098 = vmatprep.subr.bf16.mxu0 0
        %2099 = vmatpush2.bf16.msra.mxu0 %v2040
        %2100 = vmatprep.subr.bf16.mxu0 0
        %2101 = vmatpush2.bf16.msra.mxu0 %v2039
        %2102 = vmatprep.subr.bf16.mxu0 0
        %2103 = vmatpush2.bf16.msra.mxu0 %v2038
        %2104 = vmatprep.subr.bf16.mxu0 0
        %2105 = vmatpush2.bf16.msra.mxu0 %v2037
        %2106 = vmatprep.subr.bf16.mxu0 0
        %2107 = vmatpush2.bf16.msra.mxu0 %v2036
        %2108 = vmatprep.mubr.bf16.mxu0 %v1909
        %2109 = vmatmul.mubr.bf16.gmra.mxu0 %v1908
        %v2110 = vpop.f32.mrf.mxu0
        %v2111 = vadd.f32 0.0, %v2110
        %v2112 = vpop.f32.mrf.mxu0
        %v2113 = vpop.f32.mrf.mxu0
        %v2114 = vadd.f32 0.0, %v2113
        %v2115 = vpop.f32.mrf.mxu0
        %2116 = vmatprep.mubr.bf16.mxu0 %v1912
        %2117 = vmatmul.mubr.bf16.gmra.mxu0 %v1911
        %v2118 = vpop.f32.mrf.mxu0
        %v2119 = vadd.f32 0.0, %v2118
        %v2120 = vpop.f32.mrf.mxu0
        %v2121 = vpop.f32.mrf.mxu0
        %v2122 = vadd.f32 0.0, %v2121
        %v2123 = vpop.f32.mrf.mxu0
        %2124 = vmatprep.mubr.bf16.mxu0 %v1915
        %2125 = vmatmul.mubr.bf16.gmra.mxu0 %v1914
        %v2126 = vpop.f32.mrf.mxu0
        %v2127 = vadd.f32 0.0, %v2126
        %v2128 = vpop.f32.mrf.mxu0
        %v2129 = vpop.f32.mrf.mxu0
        %v2130 = vadd.f32 0.0, %v2129
        %v2131 = vpop.f32.mrf.mxu0
        %2132 = vmatprep.mubr.bf16.mxu0 %v1918
        %2133 = vmatmul.mubr.bf16.gmra.mxu0 %v1917
        %v2134 = vpop.f32.mrf.mxu0
        %v2135 = vadd.f32 0.0, %v2134
        %v2136 = vpop.f32.mrf.mxu0
        %v2137 = vpop.f32.mrf.mxu0
        %v2138 = vadd.f32 0.0, %v2137
        %v2139 = vpop.f32.mrf.mxu0
        %2140 = vdwg.mxu0
        %2141 = vmatprep.subr.bf16.mxu0 0
        %2142 = vmatpush1.bf16.msra.mxu0 %v2051
        %2143 = vmatprep.subr.bf16.mxu0 0
        %2144 = vmatpush1.bf16.msra.mxu0 %v2050
        %2145 = vmatprep.subr.bf16.mxu0 0
        %2146 = vmatpush1.bf16.msra.mxu0 %v2049
        %2147 = vmatprep.subr.bf16.mxu0 0
        %2148 = vmatpush1.bf16.msra.mxu0 %v2048
        %2149 = vmatprep.subr.bf16.mxu0 0
        %2150 = vmatpush1.bf16.msra.mxu0 %v2047
        %2151 = vmatprep.subr.bf16.mxu0 0
        %2152 = vmatpush1.bf16.msra.mxu0 %v2046
        %2153 = vmatprep.subr.bf16.mxu0 0
        %2154 = vmatpush1.bf16.msra.mxu0 %v2045
        %2155 = vmatprep.subr.bf16.mxu0 0
        %2156 = vmatpush1.bf16.msra.mxu0 %v2044
        %2157 = vmatprep.subr.bf16.mxu0 0
        %2158 = vmatpush2.bf16.msra.mxu0 0
        %2159 = vmatprep.subr.bf16.mxu0 0
        %2160 = vmatpush2.bf16.msra.mxu0 0
        %2161 = vmatprep.subr.bf16.mxu0 0
        %2162 = vmatpush2.bf16.msra.mxu0 0
        %2163 = vmatprep.subr.bf16.mxu0 0
        %2164 = vmatpush2.bf16.msra.mxu0 0
        %2165 = vmatprep.subr.bf16.mxu0 0
        %2166 = vmatpush2.bf16.msra.mxu0 0
        %2167 = vmatprep.subr.bf16.mxu0 0
        %2168 = vmatpush2.bf16.msra.mxu0 0
        %2169 = vmatprep.subr.bf16.mxu0 0
        %2170 = vmatpush2.bf16.msra.mxu0 0
        %2171 = vmatprep.subr.bf16.mxu0 0
        %2172 = vmatpush2.bf16.msra.mxu0 0
        %2173 = vmatprep.mubr.bf16.mxu0 0
        %2174 = vmatmul.mubr.bf16.gmra.mxu0 %v1910
        %v2175 = vpop.f32.mrf.mxu0
        %v2176 = vadd.f32 %v2111, %v2175
        %v2177 = vpop.f32.mrf.mxu0
        %v2178 = vpop.f32.mrf.mxu0
        %v2179 = vadd.f32 %v2114, %v2178
        %v2180 = vpop.f32.mrf.mxu0
        %2181 = vmatprep.mubr.bf16.mxu0 0
        %2182 = vmatmul.mubr.bf16.gmra.mxu0 %v1913
        %v2183 = vpop.f32.mrf.mxu0
        %v2184 = vadd.f32 %v2119, %v2183
        %v2185 = vpop.f32.mrf.mxu0
        %v2186 = vpop.f32.mrf.mxu0
        %v2187 = vadd.f32 %v2122, %v2186
        %v2188 = vpop.f32.mrf.mxu0
        %2189 = vmatprep.mubr.bf16.mxu0 0
        %2190 = vmatmul.mubr.bf16.gmra.mxu0 %v1916
        %v2191 = vpop.f32.mrf.mxu0
        %v2192 = vadd.f32 %v2127, %v2191
        %v2193 = vpop.f32.mrf.mxu0
        %v2194 = vpop.f32.mrf.mxu0
        %v2195 = vadd.f32 %v2130, %v2194
        %v2196 = vpop.f32.mrf.mxu0
        %2197 = vmatprep.mubr.bf16.mxu0 0
        %2198 = vmatmul.mubr.bf16.gmra.mxu0 %v1919
        %v2199 = vpop.f32.mrf.mxu0
        %v2200 = vadd.f32 %v2135, %v2199
        %v2201 = vpop.f32.mrf.mxu0
        %v2202 = vpop.f32.mrf.mxu0
        %v2203 = vadd.f32 %v2138, %v2202
        %v2204 = vpop.f32.mrf.mxu0
        %2205 = vdwg.mxu0
        %v2206 = vadd.f32 %v1771, %v2176
        %v2207 = vadd.f32 %v1774, %v2179
        %v2208 = vadd.f32 %v1779, %v2184
        %v2209 = vadd.f32 %v1782, %v2187
        %v2210 = vadd.f32 %v1787, %v2192
        %v2211 = vadd.f32 %v1790, %v2195
        %v2212 = vadd.f32 %v1795, %v2200
        %v2213 = vadd.f32 %v1798, %v2203
        %s2214 = scalar_lea.vmem [#allocation2], 120
        %v2215 = vld [vmem:[%s2214] sm:$0xff]
        %v2216 = vld [vmem:[%s2214 + $0x8] sm:$0xf]
        %v2217 = vld [vmem:[%s2214 + $0xc] sm:$0xff]
        %v2218 = vld [vmem:[%s2214 + $0x14] sm:$0xf]
        %v2219 = vld [vmem:[%s2214 + $0x18] sm:$0xff]
        %v2220 = vld [vmem:[%s2214 + $0x20] sm:$0xf]
        %v2221 = vld [vmem:[%s2214 + $0x24] sm:$0xff]
        %v2222 = vld [vmem:[%s2214 + $0x2c] sm:$0xf]
        %v2223 = vld [vmem:[%s2214 + $0x30] sm:$0xff]
        %v2224 = vld [vmem:[%s2214 + $0x38] sm:$0xf]
        %v2225 = vld [vmem:[%s2214 + $0x3c] sm:$0xff]
        %v2226 = vld [vmem:[%s2214 + $0x44] sm:$0xf]
        %v2227 = vld [vmem:[%s2214 + $0x48] sm:$0xff]
        %v2228 = vld [vmem:[%s2214 + $0x50] sm:$0xf]
        %v2229 = vld [vmem:[%s2214 + $0x54] sm:$0xff]
        %v2230 = vld [vmem:[%s2214 + $0x5c] sm:$0xf]
        %s2231 = sadd.s32 144, %s1056
        %s2232 = smul.addr %s2231, 4
        %s2233 = scalar_lea.vmem %s1, %s2232
        %v2234 = vld [vmem:[%s2233] sm:$0xf]
        %v2235 = vld [vmem:[%s2233 + $0x4] sm:$0xf]
        %v2236 = vld [vmem:[%s2233 + $0x8] sm:$0xf]
        %v2237 = vld [vmem:[%s2233 + $0xc] sm:$0xf]
        %v2238 = vld [vmem:[%s2233 + $0x10] sm:$0xf]
        %v2239 = vld [vmem:[%s2233 + $0x14] sm:$0xf]
        %v2240 = vld [vmem:[%s2233 + $0x18] sm:$0xf]
        %v2241 = vld [vmem:[%s2233 + $0x1c] sm:$0xf]
        %v2242 = vld [vmem:[%s2233 + $0x20] sm:$0xf]
        %v2243 = vld [vmem:[%s2233 + $0x24] sm:$0xf]
        %v2244 = vld [vmem:[%s2233 + $0x28] sm:$0xf]
        %v2245 = vld [vmem:[%s2233 + $0x2c] sm:$0xf]
        %v2246 = vld [vmem:[%s2233 + $0x30] sm:$0xf]
        %v2247 = vld [vmem:[%s2233 + $0x34] sm:$0xf]
        %v2248 = vld [vmem:[%s2233 + $0x38] sm:$0xf]
        %v2249 = vld [vmem:[%s2233 + $0x3c] sm:$0xf]
        %v2250 = vld [vmem:[%s2233 + $0x40] sm:$0xf]
        %v2251 = vld [vmem:[%s2233 + $0x44] sm:$0xf]
        %v2252 = vld [vmem:[%s2233 + $0x48] sm:$0xf]
        %v2253 = vld [vmem:[%s2233 + $0x4c] sm:$0xf]
        %v2254 = vld [vmem:[%s2233 + $0x50] sm:$0xf]
        %v2255 = vld [vmem:[%s2233 + $0x54] sm:$0xf]
        %v2256 = vld [vmem:[%s2233 + $0x58] sm:$0xf]
        %v2257 = vld [vmem:[%s2233 + $0x5c] sm:$0xf]
        %v2258 = vld [vmem:[%s2233 + $0x60] sm:$0xf]
        %v2259 = vld [vmem:[%s2233 + $0x64] sm:$0xf]
        %v2260 = vld [vmem:[%s2233 + $0x68] sm:$0xf]
        %v2261 = vld [vmem:[%s2233 + $0x6c] sm:$0xf]
        %v2262 = vld [vmem:[%s2233 + $0x70] sm:$0xf]
        %v2263 = vld [vmem:[%s2233 + $0x74] sm:$0xf]
        %v2264 = vld [vmem:[%s2233 + $0x78] sm:$0xf]
        %v2265 = vld [vmem:[%s2233 + $0x7c] sm:$0xf]
        %v2266 = vld [vmem:[%s2233 + $0x80] sm:$0xf]
        %v2267 = vld [vmem:[%s2233 + $0x84] sm:$0xf]
        %v2268 = vld [vmem:[%s2233 + $0x88] sm:$0xf]
        %v2269 = vld [vmem:[%s2233 + $0x8c] sm:$0xf]
        %v2270 = vld [vmem:[%s2233 + $0x90] sm:$0xf]
        %v2271 = vld [vmem:[%s2233 + $0x94] sm:$0xf]
        %v2272 = vld [vmem:[%s2233 + $0x98] sm:$0xf]
        %v2273 = vld [vmem:[%s2233 + $0x9c] sm:$0xf]
        %v2274 = vld [vmem:[%s2233 + $0xa0] sm:$0xf]
        %v2275 = vld [vmem:[%s2233 + $0xa4] sm:$0xf]
        %v2276 = vld [vmem:[%s2233 + $0xa8] sm:$0xf]
        %v2277 = vld [vmem:[%s2233 + $0xac] sm:$0xf]
        %v2278 = vld [vmem:[%s2233 + $0xb0] sm:$0xf]
        %v2279 = vld [vmem:[%s2233 + $0xb4] sm:$0xf]
        %v2280 = vld [vmem:[%s2233 + $0xb8] sm:$0xf]
        %v2281 = vld [vmem:[%s2233 + $0xbc] sm:$0xf]
        %v2298 = vunpack.c.l.b16 %v2215
        %v2299 = vunpack.c.h.b16 %v2215
        %v2300 = vunpack.c.l.b16 %v2216
        %v2301 = vunpack.c.l.b16 %v2217
        %v2302 = vunpack.c.h.b16 %v2217
        %v2303 = vunpack.c.l.b16 %v2218
        %v2304 = vunpack.c.l.b16 %v2219
        %v2305 = vunpack.c.h.b16 %v2219
        %v2306 = vunpack.c.l.b16 %v2220
        %v2307 = vunpack.c.l.b16 %v2221
        %v2308 = vunpack.c.h.b16 %v2221
        %v2309 = vunpack.c.l.b16 %v2222
        %v2310 = vunpack.c.l.b16 %v2223
        %v2311 = vunpack.c.h.b16 %v2223
        %v2312 = vunpack.c.l.b16 %v2224
        %v2313 = vunpack.c.l.b16 %v2225
        %v2314 = vunpack.c.h.b16 %v2225
        %v2315 = vunpack.c.l.b16 %v2226
        %v2316 = vunpack.c.l.b16 %v2227
        %v2317 = vunpack.c.h.b16 %v2227
        %v2318 = vunpack.c.l.b16 %v2228
        %v2319 = vunpack.c.l.b16 %v2229
        %v2320 = vunpack.c.h.b16 %v2229
        %v2321 = vunpack.c.l.b16 %v2230
        %v2322 = vpack.c.b16 %v2301, %v2298
        %v2323 = vpack.c.b16 %v2302, %v2299
        %v2324 = vpack.c.b16 %v2303, %v2300
        %v2325 = vpack.c.b16 %v2307, %v2304
        %v2326 = vpack.c.b16 %v2308, %v2305
        %v2327 = vpack.c.b16 %v2309, %v2306
        %v2328 = vpack.c.b16 %v2313, %v2310
        %v2329 = vpack.c.b16 %v2314, %v2311
        %v2330 = vpack.c.b16 %v2315, %v2312
        %v2331 = vpack.c.b16 %v2319, %v2316
        %v2332 = vpack.c.b16 %v2320, %v2317
        %v2333 = vpack.c.b16 %v2321, %v2318
        %v2394 = vunpack.c.l.b16 %v2234
        %v2395 = vunpack.c.l.b16 %v2235
        %v2396 = vunpack.c.l.b16 %v2236
        %v2397 = vunpack.c.l.b16 %v2237
        %v2398 = vunpack.c.l.b16 %v2238
        %v2399 = vunpack.c.l.b16 %v2239
        %v2400 = vunpack.c.l.b16 %v2240
        %v2401 = vunpack.c.l.b16 %v2241
        %v2402 = vunpack.c.l.b16 %v2242
        %v2403 = vunpack.c.l.b16 %v2243
        %v2404 = vunpack.c.l.b16 %v2244
        %v2405 = vunpack.c.l.b16 %v2245
        %v2406 = vunpack.c.l.b16 %v2246
        %v2407 = vunpack.c.l.b16 %v2247
        %v2408 = vunpack.c.l.b16 %v2248
        %v2409 = vunpack.c.l.b16 %v2249
        %v2410 = vunpack.c.l.b16 %v2250
        %v2411 = vunpack.c.l.b16 %v2251
        %v2412 = vunpack.c.l.b16 %v2252
        %v2413 = vunpack.c.l.b16 %v2253
        %v2414 = vunpack.c.l.b16 %v2254
        %v2415 = vunpack.c.l.b16 %v2255
        %v2416 = vunpack.c.l.b16 %v2256
        %v2417 = vunpack.c.l.b16 %v2257
        %v2418 = vunpack.c.l.b16 %v2258
        %v2419 = vunpack.c.l.b16 %v2259
        %v2420 = vunpack.c.l.b16 %v2260
        %v2421 = vunpack.c.l.b16 %v2261
        %v2422 = vunpack.c.l.b16 %v2262
        %v2423 = vunpack.c.l.b16 %v2263
        %v2424 = vunpack.c.l.b16 %v2264
        %v2425 = vunpack.c.l.b16 %v2265
        %v2426 = vunpack.c.l.b16 %v2266
        %v2427 = vunpack.c.l.b16 %v2267
        %v2428 = vunpack.c.l.b16 %v2268
        %v2429 = vunpack.c.l.b16 %v2269
        %v2430 = vunpack.c.l.b16 %v2270
        %v2431 = vunpack.c.l.b16 %v2271
        %v2432 = vunpack.c.l.b16 %v2272
        %v2433 = vunpack.c.l.b16 %v2273
        %v2434 = vunpack.c.l.b16 %v2274
        %v2435 = vunpack.c.l.b16 %v2275
        %v2436 = vunpack.c.l.b16 %v2276
        %v2437 = vunpack.c.l.b16 %v2277
        %v2438 = vunpack.c.l.b16 %v2278
        %v2439 = vunpack.c.l.b16 %v2279
        %v2440 = vunpack.c.l.b16 %v2280
        %v2441 = vunpack.c.l.b16 %v2281
        %v2442 = vpack.c.b16 %v2395, %v2394
        %v2443 = vpack.c.b16 %v2397, %v2396
        %v2444 = vpack.c.b16 %v2399, %v2398
        %v2445 = vpack.c.b16 %v2401, %v2400
        %v2446 = vpack.c.b16 %v2403, %v2402
        %v2447 = vpack.c.b16 %v2405, %v2404
        %v2448 = vpack.c.b16 %v2407, %v2406
        %v2449 = vpack.c.b16 %v2409, %v2408
        %v2450 = vpack.c.b16 %v2411, %v2410
        %v2451 = vpack.c.b16 %v2413, %v2412
        %v2452 = vpack.c.b16 %v2415, %v2414
        %v2453 = vpack.c.b16 %v2417, %v2416
        %v2454 = vpack.c.b16 %v2419, %v2418
        %v2455 = vpack.c.b16 %v2421, %v2420
        %v2456 = vpack.c.b16 %v2423, %v2422
        %v2457 = vpack.c.b16 %v2425, %v2424
        %v2458 = vpack.c.b16 %v2427, %v2426
        %v2459 = vpack.c.b16 %v2429, %v2428
        %v2460 = vpack.c.b16 %v2431, %v2430
        %v2461 = vpack.c.b16 %v2433, %v2432
        %v2462 = vpack.c.b16 %v2435, %v2434
        %v2463 = vpack.c.b16 %v2437, %v2436
        %v2464 = vpack.c.b16 %v2439, %v2438
        %v2465 = vpack.c.b16 %v2441, %v2440
        %2490 = vmatprep.subr.bf16.mxu0 0
        %2491 = vmatpush1.bf16.msra.mxu0 %v2449
        %2492 = vmatprep.subr.bf16.mxu0 0
        %2493 = vmatpush1.bf16.msra.mxu0 %v2448
        %2494 = vmatprep.subr.bf16.mxu0 0
        %2495 = vmatpush1.bf16.msra.mxu0 %v2447
        %2496 = vmatprep.subr.bf16.mxu0 0
        %2497 = vmatpush1.bf16.msra.mxu0 %v2446
        %2498 = vmatprep.subr.bf16.mxu0 0
        %2499 = vmatpush1.bf16.msra.mxu0 %v2445
        %2500 = vmatprep.subr.bf16.mxu0 0
        %2501 = vmatpush1.bf16.msra.mxu0 %v2444
        %2502 = vmatprep.subr.bf16.mxu0 0
        %2503 = vmatpush1.bf16.msra.mxu0 %v2443
        %2504 = vmatprep.subr.bf16.mxu0 0
        %2505 = vmatpush1.bf16.msra.mxu0 %v2442
        %2506 = vmatprep.subr.bf16.mxu0 0
        %2507 = vmatpush2.bf16.msra.mxu0 %v2457
        %2508 = vmatprep.subr.bf16.mxu0 0
        %2509 = vmatpush2.bf16.msra.mxu0 %v2456
        %2510 = vmatprep.subr.bf16.mxu0 0
        %2511 = vmatpush2.bf16.msra.mxu0 %v2455
        %2512 = vmatprep.subr.bf16.mxu0 0
        %2513 = vmatpush2.bf16.msra.mxu0 %v2454
        %2514 = vmatprep.subr.bf16.mxu0 0
        %2515 = vmatpush2.bf16.msra.mxu0 %v2453
        %2516 = vmatprep.subr.bf16.mxu0 0
        %2517 = vmatpush2.bf16.msra.mxu0 %v2452
        %2518 = vmatprep.subr.bf16.mxu0 0
        %2519 = vmatpush2.bf16.msra.mxu0 %v2451
        %2520 = vmatprep.subr.bf16.mxu0 0
        %2521 = vmatpush2.bf16.msra.mxu0 %v2450
        %2522 = vmatprep.mubr.bf16.mxu0 %v2323
        %2523 = vmatmul.mubr.bf16.gmra.mxu0 %v2322
        %v2524 = vpop.f32.mrf.mxu0
        %v2525 = vadd.f32 0.0, %v2524
        %v2526 = vpop.f32.mrf.mxu0
        %v2527 = vpop.f32.mrf.mxu0
        %v2528 = vadd.f32 0.0, %v2527
        %v2529 = vpop.f32.mrf.mxu0
        %2530 = vmatprep.mubr.bf16.mxu0 %v2326
        %2531 = vmatmul.mubr.bf16.gmra.mxu0 %v2325
        %v2532 = vpop.f32.mrf.mxu0
        %v2533 = vadd.f32 0.0, %v2532
        %v2534 = vpop.f32.mrf.mxu0
        %v2535 = vpop.f32.mrf.mxu0
        %v2536 = vadd.f32 0.0, %v2535
        %v2537 = vpop.f32.mrf.mxu0
        %2538 = vmatprep.mubr.bf16.mxu0 %v2329
        %2539 = vmatmul.mubr.bf16.gmra.mxu0 %v2328
        %v2540 = vpop.f32.mrf.mxu0
        %v2541 = vadd.f32 0.0, %v2540
        %v2542 = vpop.f32.mrf.mxu0
        %v2543 = vpop.f32.mrf.mxu0
        %v2544 = vadd.f32 0.0, %v2543
        %v2545 = vpop.f32.mrf.mxu0
        %2546 = vmatprep.mubr.bf16.mxu0 %v2332
        %2547 = vmatmul.mubr.bf16.gmra.mxu0 %v2331
        %v2548 = vpop.f32.mrf.mxu0
        %v2549 = vadd.f32 0.0, %v2548
        %v2550 = vpop.f32.mrf.mxu0
        %v2551 = vpop.f32.mrf.mxu0
        %v2552 = vadd.f32 0.0, %v2551
        %v2553 = vpop.f32.mrf.mxu0
        %2554 = vdwg.mxu0
        %2555 = vmatprep.subr.bf16.mxu0 0
        %2556 = vmatpush1.bf16.msra.mxu0 %v2465
        %2557 = vmatprep.subr.bf16.mxu0 0
        %2558 = vmatpush1.bf16.msra.mxu0 %v2464
        %2559 = vmatprep.subr.bf16.mxu0 0
        %2560 = vmatpush1.bf16.msra.mxu0 %v2463
        %2561 = vmatprep.subr.bf16.mxu0 0
        %2562 = vmatpush1.bf16.msra.mxu0 %v2462
        %2563 = vmatprep.subr.bf16.mxu0 0
        %2564 = vmatpush1.bf16.msra.mxu0 %v2461
        %2565 = vmatprep.subr.bf16.mxu0 0
        %2566 = vmatpush1.bf16.msra.mxu0 %v2460
        %2567 = vmatprep.subr.bf16.mxu0 0
        %2568 = vmatpush1.bf16.msra.mxu0 %v2459
        %2569 = vmatprep.subr.bf16.mxu0 0
        %2570 = vmatpush1.bf16.msra.mxu0 %v2458
        %2571 = vmatprep.subr.bf16.mxu0 0
        %2572 = vmatpush2.bf16.msra.mxu0 0
        %2573 = vmatprep.subr.bf16.mxu0 0
        %2574 = vmatpush2.bf16.msra.mxu0 0
        %2575 = vmatprep.subr.bf16.mxu0 0
        %2576 = vmatpush2.bf16.msra.mxu0 0
        %2577 = vmatprep.subr.bf16.mxu0 0
        %2578 = vmatpush2.bf16.msra.mxu0 0
        %2579 = vmatprep.subr.bf16.mxu0 0
        %2580 = vmatpush2.bf16.msra.mxu0 0
        %2581 = vmatprep.subr.bf16.mxu0 0
        %2582 = vmatpush2.bf16.msra.mxu0 0
        %2583 = vmatprep.subr.bf16.mxu0 0
        %2584 = vmatpush2.bf16.msra.mxu0 0
        %2585 = vmatprep.subr.bf16.mxu0 0
        %2586 = vmatpush2.bf16.msra.mxu0 0
        %2587 = vmatprep.mubr.bf16.mxu0 0
        %2588 = vmatmul.mubr.bf16.gmra.mxu0 %v2324
        %v2589 = vpop.f32.mrf.mxu0
        %v2590 = vadd.f32 %v2525, %v2589
        %v2591 = vpop.f32.mrf.mxu0
        %v2592 = vpop.f32.mrf.mxu0
        %v2593 = vadd.f32 %v2528, %v2592
        %v2594 = vpop.f32.mrf.mxu0
        %2595 = vmatprep.mubr.bf16.mxu0 0
        %2596 = vmatmul.mubr.bf16.gmra.mxu0 %v2327
        %v2597 = vpop.f32.mrf.mxu0
        %v2598 = vadd.f32 %v2533, %v2597
        %v2599 = vpop.f32.mrf.mxu0
        %v2600 = vpop.f32.mrf.mxu0
        %v2601 = vadd.f32 %v2536, %v2600
        %v2602 = vpop.f32.mrf.mxu0
        %2603 = vmatprep.mubr.bf16.mxu0 0
        %2604 = vmatmul.mubr.bf16.gmra.mxu0 %v2330
        %v2605 = vpop.f32.mrf.mxu0
        %v2606 = vadd.f32 %v2541, %v2605
        %v2607 = vpop.f32.mrf.mxu0
        %v2608 = vpop.f32.mrf.mxu0
        %v2609 = vadd.f32 %v2544, %v2608
        %v2610 = vpop.f32.mrf.mxu0
        %2611 = vmatprep.mubr.bf16.mxu0 0
        %2612 = vmatmul.mubr.bf16.gmra.mxu0 %v2333
        %v2613 = vpop.f32.mrf.mxu0
        %v2614 = vadd.f32 %v2549, %v2613
        %v2615 = vpop.f32.mrf.mxu0
        %v2616 = vpop.f32.mrf.mxu0
        %v2617 = vadd.f32 %v2552, %v2616
        %v2618 = vpop.f32.mrf.mxu0
        %2619 = vdwg.mxu0
        %v2620 = vadd.f32 %v2206, %v2590
        %v2621 = vadd.f32 %v2207, %v2593
        %v2622 = vadd.f32 %v2208, %v2598
        %v2623 = vadd.f32 %v2209, %v2601
        %v2624 = vadd.f32 %v2210, %v2606
        %v2625 = vadd.f32 %v2211, %v2609
        %v2626 = vadd.f32 %v2212, %v2614
        %v2627 = vadd.f32 %v2213, %v2617
        %v2628 = vld [vmem:[%s2214 + $0xc] sm:$0xff]
        %v2629 = vld [vmem:[%s2214 + $0x14] sm:$0xf]
        %v2630 = vld [vmem:[%s2214 + $0x18] sm:$0xff]
        %v2631 = vld [vmem:[%s2214 + $0x20] sm:$0xf]
        %v2632 = vld [vmem:[%s2214 + $0x24] sm:$0xff]
        %v2633 = vld [vmem:[%s2214 + $0x2c] sm:$0xf]
        %v2634 = vld [vmem:[%s2214 + $0x30] sm:$0xff]
        %v2635 = vld [vmem:[%s2214 + $0x38] sm:$0xf]
        %v2636 = vld [vmem:[%s2214 + $0x3c] sm:$0xff]
        %v2637 = vld [vmem:[%s2214 + $0x44] sm:$0xf]
        %v2638 = vld [vmem:[%s2214 + $0x48] sm:$0xff]
        %v2639 = vld [vmem:[%s2214 + $0x50] sm:$0xf]
        %v2640 = vld [vmem:[%s2214 + $0x54] sm:$0xff]
        %v2641 = vld [vmem:[%s2214 + $0x5c] sm:$0xf]
        %v2642 = vld [vmem:[%s2214 + $0x60] sm:$0xff]
        %v2643 = vld [vmem:[%s2214 + $0x68] sm:$0xf]
        %s2644 = sadd.s32 192, %s1056
        %s2645 = smul.addr %s2644, 4
        %s2646 = scalar_lea.vmem %s1, %s2645
        %v2647 = vld [vmem:[%s2646] sm:$0xf]
        %v2648 = vld [vmem:[%s2646 + $0x4] sm:$0xf]
        %v2649 = vld [vmem:[%s2646 + $0x8] sm:$0xf]
        %v2650 = vld [vmem:[%s2646 + $0xc] sm:$0xf]
        %v2651 = vld [vmem:[%s2646 + $0x10] sm:$0xf]
        %v2652 = vld [vmem:[%s2646 + $0x14] sm:$0xf]
        %v2653 = vld [vmem:[%s2646 + $0x18] sm:$0xf]
        %v2654 = vld [vmem:[%s2646 + $0x1c] sm:$0xf]
        %v2655 = vld [vmem:[%s2646 + $0x20] sm:$0xf]
        %v2656 = vld [vmem:[%s2646 + $0x24] sm:$0xf]
        %v2657 = vld [vmem:[%s2646 + $0x28] sm:$0xf]
        %v2658 = vld [vmem:[%s2646 + $0x2c] sm:$0xf]
        %v2659 = vld [vmem:[%s2646 + $0x30] sm:$0xf]
        %v2660 = vld [vmem:[%s2646 + $0x34] sm:$0xf]
        %v2661 = vld [vmem:[%s2646 + $0x38] sm:$0xf]
        %v2662 = vld [vmem:[%s2646 + $0x3c] sm:$0xf]
        %v2663 = vld [vmem:[%s2646 + $0x40] sm:$0xf]
        %v2664 = vld [vmem:[%s2646 + $0x44] sm:$0xf]
        %v2665 = vld [vmem:[%s2646 + $0x48] sm:$0xf]
        %v2666 = vld [vmem:[%s2646 + $0x4c] sm:$0xf]
        %v2667 = vld [vmem:[%s2646 + $0x50] sm:$0xf]
        %v2668 = vld [vmem:[%s2646 + $0x54] sm:$0xf]
        %v2669 = vld [vmem:[%s2646 + $0x58] sm:$0xf]
        %v2670 = vld [vmem:[%s2646 + $0x5c] sm:$0xf]
        %v2671 = vld [vmem:[%s2646 + $0x60] sm:$0xf]
        %v2672 = vld [vmem:[%s2646 + $0x64] sm:$0xf]
        %v2673 = vld [vmem:[%s2646 + $0x68] sm:$0xf]
        %v2674 = vld [vmem:[%s2646 + $0x6c] sm:$0xf]
        %v2675 = vld [vmem:[%s2646 + $0x70] sm:$0xf]
        %v2676 = vld [vmem:[%s2646 + $0x74] sm:$0xf]
        %v2677 = vld [vmem:[%s2646 + $0x78] sm:$0xf]
        %v2678 = vld [vmem:[%s2646 + $0x7c] sm:$0xf]
        %v2679 = vld [vmem:[%s2646 + $0x80] sm:$0xf]
        %v2680 = vld [vmem:[%s2646 + $0x84] sm:$0xf]
        %v2681 = vld [vmem:[%s2646 + $0x88] sm:$0xf]
        %v2682 = vld [vmem:[%s2646 + $0x8c] sm:$0xf]
        %v2683 = vld [vmem:[%s2646 + $0x90] sm:$0xf]
        %v2684 = vld [vmem:[%s2646 + $0x94] sm:$0xf]
        %v2685 = vld [vmem:[%s2646 + $0x98] sm:$0xf]
        %v2686 = vld [vmem:[%s2646 + $0x9c] sm:$0xf]
        %v2687 = vld [vmem:[%s2646 + $0xa0] sm:$0xf]
        %v2688 = vld [vmem:[%s2646 + $0xa4] sm:$0xf]
        %v2689 = vld [vmem:[%s2646 + $0xa8] sm:$0xf]
        %v2690 = vld [vmem:[%s2646 + $0xac] sm:$0xf]
        %v2691 = vld [vmem:[%s2646 + $0xb0] sm:$0xf]
        %v2692 = vld [vmem:[%s2646 + $0xb4] sm:$0xf]
        %v2693 = vld [vmem:[%s2646 + $0xb8] sm:$0xf]
        %v2694 = vld [vmem:[%s2646 + $0xbc] sm:$0xf]
        %v2711 = vunpack.c.l.b16 %v2628
        %v2712 = vunpack.c.h.b16 %v2628
        %v2713 = vunpack.c.l.b16 %v2629
        %v2714 = vunpack.c.l.b16 %v2630
        %v2715 = vunpack.c.h.b16 %v2630
        %v2716 = vunpack.c.l.b16 %v2631
        %v2717 = vunpack.c.l.b16 %v2632
        %v2718 = vunpack.c.h.b16 %v2632
        %v2719 = vunpack.c.l.b16 %v2633
        %v2720 = vunpack.c.l.b16 %v2634
        %v2721 = vunpack.c.h.b16 %v2634
        %v2722 = vunpack.c.l.b16 %v2635
        %v2723 = vunpack.c.l.b16 %v2636
        %v2724 = vunpack.c.h.b16 %v2636
        %v2725 = vunpack.c.l.b16 %v2637
        %v2726 = vunpack.c.l.b16 %v2638
        %v2727 = vunpack.c.h.b16 %v2638
        %v2728 = vunpack.c.l.b16 %v2639
        %v2729 = vunpack.c.l.b16 %v2640
        %v2730 = vunpack.c.h.b16 %v2640
        %v2731 = vunpack.c.l.b16 %v2641
        %v2732 = vunpack.c.l.b16 %v2642
        %v2733 = vunpack.c.h.b16 %v2642
        %v2734 = vunpack.c.l.b16 %v2643
        %v2735 = vpack.c.b16 %v2714, %v2711
        %v2736 = vpack.c.b16 %v2715, %v2712
        %v2737 = vpack.c.b16 %v2716, %v2713
        %v2738 = vpack.c.b16 %v2720, %v2717
        %v2739 = vpack.c.b16 %v2721, %v2718
        %v2740 = vpack.c.b16 %v2722, %v2719
        %v2741 = vpack.c.b16 %v2726, %v2723
        %v2742 = vpack.c.b16 %v2727, %v2724
        %v2743 = vpack.c.b16 %v2728, %v2725
        %v2744 = vpack.c.b16 %v2732, %v2729
        %v2745 = vpack.c.b16 %v2733, %v2730
        %v2746 = vpack.c.b16 %v2734, %v2731
        %v2807 = vunpack.c.l.b16 %v2647
        %v2808 = vunpack.c.l.b16 %v2648
        %v2809 = vunpack.c.l.b16 %v2649
        %v2810 = vunpack.c.l.b16 %v2650
        %v2811 = vunpack.c.l.b16 %v2651
        %v2812 = vunpack.c.l.b16 %v2652
        %v2813 = vunpack.c.l.b16 %v2653
        %v2814 = vunpack.c.l.b16 %v2654
        %v2815 = vunpack.c.l.b16 %v2655
        %v2816 = vunpack.c.l.b16 %v2656
        %v2817 = vunpack.c.l.b16 %v2657
        %v2818 = vunpack.c.l.b16 %v2658
        %v2819 = vunpack.c.l.b16 %v2659
        %v2820 = vunpack.c.l.b16 %v2660
        %v2821 = vunpack.c.l.b16 %v2661
        %v2822 = vunpack.c.l.b16 %v2662
        %v2823 = vunpack.c.l.b16 %v2663
        %v2824 = vunpack.c.l.b16 %v2664
        %v2825 = vunpack.c.l.b16 %v2665
        %v2826 = vunpack.c.l.b16 %v2666
        %v2827 = vunpack.c.l.b16 %v2667
        %v2828 = vunpack.c.l.b16 %v2668
        %v2829 = vunpack.c.l.b16 %v2669
        %v2830 = vunpack.c.l.b16 %v2670
        %v2831 = vunpack.c.l.b16 %v2671
        %v2832 = vunpack.c.l.b16 %v2672
        %v2833 = vunpack.c.l.b16 %v2673
        %v2834 = vunpack.c.l.b16 %v2674
        %v2835 = vunpack.c.l.b16 %v2675
        %v2836 = vunpack.c.l.b16 %v2676
        %v2837 = vunpack.c.l.b16 %v2677
        %v2838 = vunpack.c.l.b16 %v2678
        %v2839 = vunpack.c.l.b16 %v2679
        %v2840 = vunpack.c.l.b16 %v2680
        %v2841 = vunpack.c.l.b16 %v2681
        %v2842 = vunpack.c.l.b16 %v2682
        %v2843 = vunpack.c.l.b16 %v2683
        %v2844 = vunpack.c.l.b16 %v2684
        %v2845 = vunpack.c.l.b16 %v2685
        %v2846 = vunpack.c.l.b16 %v2686
        %v2847 = vunpack.c.l.b16 %v2687
        %v2848 = vunpack.c.l.b16 %v2688
        %v2849 = vunpack.c.l.b16 %v2689
        %v2850 = vunpack.c.l.b16 %v2690
        %v2851 = vunpack.c.l.b16 %v2691
        %v2852 = vunpack.c.l.b16 %v2692
        %v2853 = vunpack.c.l.b16 %v2693
        %v2854 = vunpack.c.l.b16 %v2694
        %v2855 = vpack.c.b16 %v2808, %v2807
        %v2856 = vpack.c.b16 %v2810, %v2809
        %v2857 = vpack.c.b16 %v2812, %v2811
        %v2858 = vpack.c.b16 %v2814, %v2813
        %v2859 = vpack.c.b16 %v2816, %v2815
        %v2860 = vpack.c.b16 %v2818, %v2817
        %v2861 = vpack.c.b16 %v2820, %v2819
        %v2862 = vpack.c.b16 %v2822, %v2821
        %v2863 = vpack.c.b16 %v2824, %v2823
        %v2864 = vpack.c.b16 %v2826, %v2825
        %v2865 = vpack.c.b16 %v2828, %v2827
        %v2866 = vpack.c.b16 %v2830, %v2829
        %v2867 = vpack.c.b16 %v2832, %v2831
        %v2868 = vpack.c.b16 %v2834, %v2833
        %v2869 = vpack.c.b16 %v2836, %v2835
        %v2870 = vpack.c.b16 %v2838, %v2837
        %v2871 = vpack.c.b16 %v2840, %v2839
        %v2872 = vpack.c.b16 %v2842, %v2841
        %v2873 = vpack.c.b16 %v2844, %v2843
        %v2874 = vpack.c.b16 %v2846, %v2845
        %v2875 = vpack.c.b16 %v2848, %v2847
        %v2876 = vpack.c.b16 %v2850, %v2849
        %v2877 = vpack.c.b16 %v2852, %v2851
        %v2878 = vpack.c.b16 %v2854, %v2853
        %2903 = vmatprep.subr.bf16.mxu0 0
        %2904 = vmatpush1.bf16.msra.mxu0 %v2862
        %2905 = vmatprep.subr.bf16.mxu0 0
        %2906 = vmatpush1.bf16.msra.mxu0 %v2861
        %2907 = vmatprep.subr.bf16.mxu0 0
        %2908 = vmatpush1.bf16.msra.mxu0 %v2860
        %2909 = vmatprep.subr.bf16.mxu0 0
        %2910 = vmatpush1.bf16.msra.mxu0 %v2859
        %2911 = vmatprep.subr.bf16.mxu0 0
        %2912 = vmatpush1.bf16.msra.mxu0 %v2858
        %2913 = vmatprep.subr.bf16.mxu0 0
        %2914 = vmatpush1.bf16.msra.mxu0 %v2857
        %2915 = vmatprep.subr.bf16.mxu0 0
        %2916 = vmatpush1.bf16.msra.mxu0 %v2856
        %2917 = vmatprep.subr.bf16.mxu0 0
        %2918 = vmatpush1.bf16.msra.mxu0 %v2855
        %2919 = vmatprep.subr.bf16.mxu0 0
        %2920 = vmatpush2.bf16.msra.mxu0 %v2870
        %2921 = vmatprep.subr.bf16.mxu0 0
        %2922 = vmatpush2.bf16.msra.mxu0 %v2869
        %2923 = vmatprep.subr.bf16.mxu0 0
        %2924 = vmatpush2.bf16.msra.mxu0 %v2868
        %2925 = vmatprep.subr.bf16.mxu0 0
        %2926 = vmatpush2.bf16.msra.mxu0 %v2867
        %2927 = vmatprep.subr.bf16.mxu0 0
        %2928 = vmatpush2.bf16.msra.mxu0 %v2866
        %2929 = vmatprep.subr.bf16.mxu0 0
        %2930 = vmatpush2.bf16.msra.mxu0 %v2865
        %2931 = vmatprep.subr.bf16.mxu0 0
        %2932 = vmatpush2.bf16.msra.mxu0 %v2864
        %2933 = vmatprep.subr.bf16.mxu0 0
        %2934 = vmatpush2.bf16.msra.mxu0 %v2863
        %2935 = vmatprep.mubr.bf16.mxu0 %v2736
        %2936 = vmatmul.mubr.bf16.gmra.mxu0 %v2735
        %v2937 = vpop.f32.mrf.mxu0
        %v2938 = vadd.f32 0.0, %v2937
        %v2939 = vpop.f32.mrf.mxu0
        %v2940 = vpop.f32.mrf.mxu0
        %v2941 = vadd.f32 0.0, %v2940
        %v2942 = vpop.f32.mrf.mxu0
        %2943 = vmatprep.mubr.bf16.mxu0 %v2739
        %2944 = vmatmul.mubr.bf16.gmra.mxu0 %v2738
        %v2945 = vpop.f32.mrf.mxu0
        %v2946 = vadd.f32 0.0, %v2945
        %v2947 = vpop.f32.mrf.mxu0
        %v2948 = vpop.f32.mrf.mxu0
        %v2949 = vadd.f32 0.0, %v2948
        %v2950 = vpop.f32.mrf.mxu0
        %2951 = vmatprep.mubr.bf16.mxu0 %v2742
        %2952 = vmatmul.mubr.bf16.gmra.mxu0 %v2741
        %v2953 = vpop.f32.mrf.mxu0
        %v2954 = vadd.f32 0.0, %v2953
        %v2955 = vpop.f32.mrf.mxu0
        %v2956 = vpop.f32.mrf.mxu0
        %v2957 = vadd.f32 0.0, %v2956
        %v2958 = vpop.f32.mrf.mxu0
        %2959 = vmatprep.mubr.bf16.mxu0 %v2745
        %2960 = vmatmul.mubr.bf16.gmra.mxu0 %v2744
        %v2961 = vpop.f32.mrf.mxu0
        %v2962 = vadd.f32 0.0, %v2961
        %v2963 = vpop.f32.mrf.mxu0
        %v2964 = vpop.f32.mrf.mxu0
        %v2965 = vadd.f32 0.0, %v2964
        %v2966 = vpop.f32.mrf.mxu0
        %2967 = vdwg.mxu0
        %2968 = vmatprep.subr.bf16.mxu0 0
        %2969 = vmatpush1.bf16.msra.mxu0 %v2878
        %2970 = vmatprep.subr.bf16.mxu0 0
        %2971 = vmatpush1.bf16.msra.mxu0 %v2877
        %2972 = vmatprep.subr.bf16.mxu0 0
        %2973 = vmatpush1.bf16.msra.mxu0 %v2876
        %2974 = vmatprep.subr.bf16.mxu0 0
        %2975 = vmatpush1.bf16.msra.mxu0 %v2875
        %2976 = vmatprep.subr.bf16.mxu0 0
        %2977 = vmatpush1.bf16.msra.mxu0 %v2874
        %2978 = vmatprep.subr.bf16.mxu0 0
        %2979 = vmatpush1.bf16.msra.mxu0 %v2873
        %2980 = vmatprep.subr.bf16.mxu0 0
        %2981 = vmatpush1.bf16.msra.mxu0 %v2872
        %2982 = vmatprep.subr.bf16.mxu0 0
        %2983 = vmatpush1.bf16.msra.mxu0 %v2871
        %2984 = vmatprep.subr.bf16.mxu0 0
        %2985 = vmatpush2.bf16.msra.mxu0 0
        %2986 = vmatprep.subr.bf16.mxu0 0
        %2987 = vmatpush2.bf16.msra.mxu0 0
        %2988 = vmatprep.subr.bf16.mxu0 0
        %2989 = vmatpush2.bf16.msra.mxu0 0
        %2990 = vmatprep.subr.bf16.mxu0 0
        %2991 = vmatpush2.bf16.msra.mxu0 0
        %2992 = vmatprep.subr.bf16.mxu0 0
        %2993 = vmatpush2.bf16.msra.mxu0 0
        %2994 = vmatprep.subr.bf16.mxu0 0
        %2995 = vmatpush2.bf16.msra.mxu0 0
        %2996 = vmatprep.subr.bf16.mxu0 0
        %2997 = vmatpush2.bf16.msra.mxu0 0
        %2998 = vmatprep.subr.bf16.mxu0 0
        %2999 = vmatpush2.bf16.msra.mxu0 0
        %3000 = vmatprep.mubr.bf16.mxu0 0
        %3001 = vmatmul.mubr.bf16.gmra.mxu0 %v2737
        %v3002 = vpop.f32.mrf.mxu0
        %v3003 = vadd.f32 %v2938, %v3002
        %v3004 = vpop.f32.mrf.mxu0
        %v3005 = vpop.f32.mrf.mxu0
        %v3006 = vadd.f32 %v2941, %v3005
        %v3007 = vpop.f32.mrf.mxu0
        %3008 = vmatprep.mubr.bf16.mxu0 0
        %3009 = vmatmul.mubr.bf16.gmra.mxu0 %v2740
        %v3010 = vpop.f32.mrf.mxu0
        %v3011 = vadd.f32 %v2946, %v3010
        %v3012 = vpop.f32.mrf.mxu0
        %v3013 = vpop.f32.mrf.mxu0
        %v3014 = vadd.f32 %v2949, %v3013
        %v3015 = vpop.f32.mrf.mxu0
        %3016 = vmatprep.mubr.bf16.mxu0 0
        %3017 = vmatmul.mubr.bf16.gmra.mxu0 %v2743
        %v3018 = vpop.f32.mrf.mxu0
        %v3019 = vadd.f32 %v2954, %v3018
        %v3020 = vpop.f32.mrf.mxu0
        %v3021 = vpop.f32.mrf.mxu0
        %v3022 = vadd.f32 %v2957, %v3021
        %v3023 = vpop.f32.mrf.mxu0
        %3024 = vmatprep.mubr.bf16.mxu0 0
        %3025 = vmatmul.mubr.bf16.gmra.mxu0 %v2746
        %v3026 = vpop.f32.mrf.mxu0
        %v3027 = vadd.f32 %v2962, %v3026
        %v3028 = vpop.f32.mrf.mxu0
        %v3029 = vpop.f32.mrf.mxu0
        %v3030 = vadd.f32 %v2965, %v3029
        %v3031 = vpop.f32.mrf.mxu0
        %3032 = vdwg.mxu0
        %v3033 = vadd.f32 %v2620, %v3003
        %v3034 = vadd.f32 %v2621, %v3006
        %v3035 = vadd.f32 %v2622, %v3011
        %v3036 = vadd.f32 %v2623, %v3014
        %v3037 = vadd.f32 %v2624, %v3019
        %v3038 = vadd.f32 %v2625, %v3022
        %v3039 = vadd.f32 %v2626, %v3027
        %v3040 = vadd.f32 %v2627, %v3030
        %v3041 = vld [vmem:[%s2214 + $0x18] sm:$0xff]
        %v3042 = vld [vmem:[%s2214 + $0x20] sm:$0xf]
        %v3043 = vld [vmem:[%s2214 + $0x24] sm:$0xff]
        %v3044 = vld [vmem:[%s2214 + $0x2c] sm:$0xf]
        %v3045 = vld [vmem:[%s2214 + $0x30] sm:$0xff]
        %v3046 = vld [vmem:[%s2214 + $0x38] sm:$0xf]
        %v3047 = vld [vmem:[%s2214 + $0x3c] sm:$0xff]
        %v3048 = vld [vmem:[%s2214 + $0x44] sm:$0xf]
        %v3049 = vld [vmem:[%s2214 + $0x48] sm:$0xff]
        %v3050 = vld [vmem:[%s2214 + $0x50] sm:$0xf]
        %v3051 = vld [vmem:[%s2214 + $0x54] sm:$0xff]
        %v3052 = vld [vmem:[%s2214 + $0x5c] sm:$0xf]
        %v3053 = vld [vmem:[%s2214 + $0x60] sm:$0xff]
        %v3054 = vld [vmem:[%s2214 + $0x68] sm:$0xf]
        %v3055 = vld [vmem:[%s2214 + $0x6c] sm:$0xff]
        %v3056 = vld [vmem:[%s2214 + $0x74] sm:$0xf]
        %s3057 = sadd.s32 240, %s1056
        %s3058 = smul.addr %s3057, 4
        %s3059 = scalar_lea.vmem %s1, %s3058
        %v3060 = vld [vmem:[%s3059] sm:$0xf]
        %v3061 = vld [vmem:[%s3059 + $0x4] sm:$0xf]
        %v3062 = vld [vmem:[%s3059 + $0x8] sm:$0xf]
        %v3063 = vld [vmem:[%s3059 + $0xc] sm:$0xf]
        %v3064 = vld [vmem:[%s3059 + $0x10] sm:$0xf]
        %v3065 = vld [vmem:[%s3059 + $0x14] sm:$0xf]
        %v3066 = vld [vmem:[%s3059 + $0x18] sm:$0xf]
        %v3067 = vld [vmem:[%s3059 + $0x1c] sm:$0xf]
        %v3068 = vld [vmem:[%s3059 + $0x20] sm:$0xf]
        %v3069 = vld [vmem:[%s3059 + $0x24] sm:$0xf]
        %v3070 = vld [vmem:[%s3059 + $0x28] sm:$0xf]
        %v3071 = vld [vmem:[%s3059 + $0x2c] sm:$0xf]
        %v3072 = vld [vmem:[%s3059 + $0x30] sm:$0xf]
        %v3073 = vld [vmem:[%s3059 + $0x34] sm:$0xf]
        %v3074 = vld [vmem:[%s3059 + $0x38] sm:$0xf]
        %v3075 = vld [vmem:[%s3059 + $0x3c] sm:$0xf]
        %v3076 = vld [vmem:[%s3059 + $0x40] sm:$0xf]
        %v3077 = vld [vmem:[%s3059 + $0x44] sm:$0xf]
        %v3078 = vld [vmem:[%s3059 + $0x48] sm:$0xf]
        %v3079 = vld [vmem:[%s3059 + $0x4c] sm:$0xf]
        %v3080 = vld [vmem:[%s3059 + $0x50] sm:$0xf]
        %v3081 = vld [vmem:[%s3059 + $0x54] sm:$0xf]
        %v3082 = vld [vmem:[%s3059 + $0x58] sm:$0xf]
        %v3083 = vld [vmem:[%s3059 + $0x5c] sm:$0xf]
        %v3084 = vld [vmem:[%s3059 + $0x60] sm:$0xf]
        %v3085 = vld [vmem:[%s3059 + $0x64] sm:$0xf]
        %v3086 = vld [vmem:[%s3059 + $0x68] sm:$0xf]
        %v3087 = vld [vmem:[%s3059 + $0x6c] sm:$0xf]
        %v3088 = vld [vmem:[%s3059 + $0x70] sm:$0xf]
        %v3089 = vld [vmem:[%s3059 + $0x74] sm:$0xf]
        %v3090 = vld [vmem:[%s3059 + $0x78] sm:$0xf]
        %v3091 = vld [vmem:[%s3059 + $0x7c] sm:$0xf]
        %v3092 = vld [vmem:[%s3059 + $0x80] sm:$0xf]
        %v3093 = vld [vmem:[%s3059 + $0x84] sm:$0xf]
        %v3094 = vld [vmem:[%s3059 + $0x88] sm:$0xf]
        %v3095 = vld [vmem:[%s3059 + $0x8c] sm:$0xf]
        %v3096 = vld [vmem:[%s3059 + $0x90] sm:$0xf]
        %v3097 = vld [vmem:[%s3059 + $0x94] sm:$0xf]
        %v3098 = vld [vmem:[%s3059 + $0x98] sm:$0xf]
        %v3099 = vld [vmem:[%s3059 + $0x9c] sm:$0xf]
        %v3100 = vld [vmem:[%s3059 + $0xa0] sm:$0xf]
        %v3101 = vld [vmem:[%s3059 + $0xa4] sm:$0xf]
        %v3102 = vld [vmem:[%s3059 + $0xa8] sm:$0xf]
        %v3103 = vld [vmem:[%s3059 + $0xac] sm:$0xf]
        %v3104 = vld [vmem:[%s3059 + $0xb0] sm:$0xf]
        %v3105 = vld [vmem:[%s3059 + $0xb4] sm:$0xf]
        %v3106 = vld [vmem:[%s3059 + $0xb8] sm:$0xf]
        %v3107 = vld [vmem:[%s3059 + $0xbc] sm:$0xf]
        %v3124 = vunpack.c.l.b16 %v3041
        %v3125 = vunpack.c.h.b16 %v3041
        %v3126 = vunpack.c.l.b16 %v3042
        %v3127 = vunpack.c.l.b16 %v3043
        %v3128 = vunpack.c.h.b16 %v3043
        %v3129 = vunpack.c.l.b16 %v3044
        %v3130 = vunpack.c.l.b16 %v3045
        %v3131 = vunpack.c.h.b16 %v3045
        %v3132 = vunpack.c.l.b16 %v3046
        %v3133 = vunpack.c.l.b16 %v3047
        %v3134 = vunpack.c.h.b16 %v3047
        %v3135 = vunpack.c.l.b16 %v3048
        %v3136 = vunpack.c.l.b16 %v3049
        %v3137 = vunpack.c.h.b16 %v3049
        %v3138 = vunpack.c.l.b16 %v3050
        %v3139 = vunpack.c.l.b16 %v3051
        %v3140 = vunpack.c.h.b16 %v3051
        %v3141 = vunpack.c.l.b16 %v3052
        %v3142 = vunpack.c.l.b16 %v3053
        %v3143 = vunpack.c.h.b16 %v3053
        %v3144 = vunpack.c.l.b16 %v3054
        %v3145 = vunpack.c.l.b16 %v3055
        %v3146 = vunpack.c.h.b16 %v3055
        %v3147 = vunpack.c.l.b16 %v3056
        %v3148 = vpack.c.b16 %v3127, %v3124
        %v3149 = vpack.c.b16 %v3128, %v3125
        %v3150 = vpack.c.b16 %v3129, %v3126
        %v3151 = vpack.c.b16 %v3133, %v3130
        %v3152 = vpack.c.b16 %v3134, %v3131
        %v3153 = vpack.c.b16 %v3135, %v3132
        %v3154 = vpack.c.b16 %v3139, %v3136
        %v3155 = vpack.c.b16 %v3140, %v3137
        %v3156 = vpack.c.b16 %v3141, %v3138
        %v3157 = vpack.c.b16 %v3145, %v3142
        %v3158 = vpack.c.b16 %v3146, %v3143
        %v3159 = vpack.c.b16 %v3147, %v3144
        %v3220 = vunpack.c.l.b16 %v3060
        %v3221 = vunpack.c.l.b16 %v3061
        %v3222 = vunpack.c.l.b16 %v3062
        %v3223 = vunpack.c.l.b16 %v3063
        %v3224 = vunpack.c.l.b16 %v3064
        %v3225 = vunpack.c.l.b16 %v3065
        %v3226 = vunpack.c.l.b16 %v3066
        %v3227 = vunpack.c.l.b16 %v3067
        %v3228 = vunpack.c.l.b16 %v3068
        %v3229 = vunpack.c.l.b16 %v3069
        %v3230 = vunpack.c.l.b16 %v3070
        %v3231 = vunpack.c.l.b16 %v3071
        %v3232 = vunpack.c.l.b16 %v3072
        %v3233 = vunpack.c.l.b16 %v3073
        %v3234 = vunpack.c.l.b16 %v3074
        %v3235 = vunpack.c.l.b16 %v3075
        %v3236 = vunpack.c.l.b16 %v3076
        %v3237 = vunpack.c.l.b16 %v3077
        %v3238 = vunpack.c.l.b16 %v3078
        %v3239 = vunpack.c.l.b16 %v3079
        %v3240 = vunpack.c.l.b16 %v3080
        %v3241 = vunpack.c.l.b16 %v3081
        %v3242 = vunpack.c.l.b16 %v3082
        %v3243 = vunpack.c.l.b16 %v3083
        %v3244 = vunpack.c.l.b16 %v3084
        %v3245 = vunpack.c.l.b16 %v3085
        %v3246 = vunpack.c.l.b16 %v3086
        %v3247 = vunpack.c.l.b16 %v3087
        %v3248 = vunpack.c.l.b16 %v3088
        %v3249 = vunpack.c.l.b16 %v3089
        %v3250 = vunpack.c.l.b16 %v3090
        %v3251 = vunpack.c.l.b16 %v3091
        %v3252 = vunpack.c.l.b16 %v3092
        %v3253 = vunpack.c.l.b16 %v3093
        %v3254 = vunpack.c.l.b16 %v3094
        %v3255 = vunpack.c.l.b16 %v3095
        %v3256 = vunpack.c.l.b16 %v3096
        %v3257 = vunpack.c.l.b16 %v3097
        %v3258 = vunpack.c.l.b16 %v3098
        %v3259 = vunpack.c.l.b16 %v3099
        %v3260 = vunpack.c.l.b16 %v3100
        %v3261 = vunpack.c.l.b16 %v3101
        %v3262 = vunpack.c.l.b16 %v3102
        %v3263 = vunpack.c.l.b16 %v3103
        %v3264 = vunpack.c.l.b16 %v3104
        %v3265 = vunpack.c.l.b16 %v3105
        %v3266 = vunpack.c.l.b16 %v3106
        %v3267 = vunpack.c.l.b16 %v3107
        %v3268 = vpack.c.b16 %v3221, %v3220
        %v3269 = vpack.c.b16 %v3223, %v3222
        %v3270 = vpack.c.b16 %v3225, %v3224
        %v3271 = vpack.c.b16 %v3227, %v3226
        %v3272 = vpack.c.b16 %v3229, %v3228
        %v3273 = vpack.c.b16 %v3231, %v3230
        %v3274 = vpack.c.b16 %v3233, %v3232
        %v3275 = vpack.c.b16 %v3235, %v3234
        %v3276 = vpack.c.b16 %v3237, %v3236
        %v3277 = vpack.c.b16 %v3239, %v3238
        %v3278 = vpack.c.b16 %v3241, %v3240
        %v3279 = vpack.c.b16 %v3243, %v3242
        %v3280 = vpack.c.b16 %v3245, %v3244
        %v3281 = vpack.c.b16 %v3247, %v3246
        %v3282 = vpack.c.b16 %v3249, %v3248
        %v3283 = vpack.c.b16 %v3251, %v3250
        %v3284 = vpack.c.b16 %v3253, %v3252
        %v3285 = vpack.c.b16 %v3255, %v3254
        %v3286 = vpack.c.b16 %v3257, %v3256
        %v3287 = vpack.c.b16 %v3259, %v3258
        %v3288 = vpack.c.b16 %v3261, %v3260
        %v3289 = vpack.c.b16 %v3263, %v3262
        %v3290 = vpack.c.b16 %v3265, %v3264
        %v3291 = vpack.c.b16 %v3267, %v3266
        %3316 = vmatprep.subr.bf16.mxu0 0
        %3317 = vmatpush1.bf16.msra.mxu0 %v3275
        %3318 = vmatprep.subr.bf16.mxu0 0
        %3319 = vmatpush1.bf16.msra.mxu0 %v3274
        %3320 = vmatprep.subr.bf16.mxu0 0
        %3321 = vmatpush1.bf16.msra.mxu0 %v3273
        %3322 = vmatprep.subr.bf16.mxu0 0
        %3323 = vmatpush1.bf16.msra.mxu0 %v3272
        %3324 = vmatprep.subr.bf16.mxu0 0
        %3325 = vmatpush1.bf16.msra.mxu0 %v3271
        %3326 = vmatprep.subr.bf16.mxu0 0
        %3327 = vmatpush1.bf16.msra.mxu0 %v3270
        %3328 = vmatprep.subr.bf16.mxu0 0
        %3329 = vmatpush1.bf16.msra.mxu0 %v3269
        %3330 = vmatprep.subr.bf16.mxu0 0
        %3331 = vmatpush1.bf16.msra.mxu0 %v3268
        %3332 = vmatprep.subr.bf16.mxu0 0
        %3333 = vmatpush2.bf16.msra.mxu0 %v3283
        %3334 = vmatprep.subr.bf16.mxu0 0
        %3335 = vmatpush2.bf16.msra.mxu0 %v3282
        %3336 = vmatprep.subr.bf16.mxu0 0
        %3337 = vmatpush2.bf16.msra.mxu0 %v3281
        %3338 = vmatprep.subr.bf16.mxu0 0
        %3339 = vmatpush2.bf16.msra.mxu0 %v3280
        %3340 = vmatprep.subr.bf16.mxu0 0
        %3341 = vmatpush2.bf16.msra.mxu0 %v3279
        %3342 = vmatprep.subr.bf16.mxu0 0
        %3343 = vmatpush2.bf16.msra.mxu0 %v3278
        %3344 = vmatprep.subr.bf16.mxu0 0
        %3345 = vmatpush2.bf16.msra.mxu0 %v3277
        %3346 = vmatprep.subr.bf16.mxu0 0
        %3347 = vmatpush2.bf16.msra.mxu0 %v3276
        %3348 = vmatprep.mubr.bf16.mxu0 %v3149
        %3349 = vmatmul.mubr.bf16.gmra.mxu0 %v3148
        %v3350 = vpop.f32.mrf.mxu0
        %v3351 = vadd.f32 0.0, %v3350
        %v3352 = vpop.f32.mrf.mxu0
        %v3353 = vpop.f32.mrf.mxu0
        %v3354 = vadd.f32 0.0, %v3353
        %v3355 = vpop.f32.mrf.mxu0
        %3356 = vmatprep.mubr.bf16.mxu0 %v3152
        %3357 = vmatmul.mubr.bf16.gmra.mxu0 %v3151
        %v3358 = vpop.f32.mrf.mxu0
        %v3359 = vadd.f32 0.0, %v3358
        %v3360 = vpop.f32.mrf.mxu0
        %v3361 = vpop.f32.mrf.mxu0
        %v3362 = vadd.f32 0.0, %v3361
        %v3363 = vpop.f32.mrf.mxu0
        %3364 = vmatprep.mubr.bf16.mxu0 %v3155
        %3365 = vmatmul.mubr.bf16.gmra.mxu0 %v3154
        %v3366 = vpop.f32.mrf.mxu0
        %v3367 = vadd.f32 0.0, %v3366
        %v3368 = vpop.f32.mrf.mxu0
        %v3369 = vpop.f32.mrf.mxu0
        %v3370 = vadd.f32 0.0, %v3369
        %v3371 = vpop.f32.mrf.mxu0
        %3372 = vmatprep.mubr.bf16.mxu0 %v3158
        %3373 = vmatmul.mubr.bf16.gmra.mxu0 %v3157
        %v3374 = vpop.f32.mrf.mxu0
        %v3375 = vadd.f32 0.0, %v3374
        %v3376 = vpop.f32.mrf.mxu0
        %v3377 = vpop.f32.mrf.mxu0
        %v3378 = vadd.f32 0.0, %v3377
        %v3379 = vpop.f32.mrf.mxu0
        %3380 = vdwg.mxu0
        %3381 = vmatprep.subr.bf16.mxu0 0
        %3382 = vmatpush1.bf16.msra.mxu0 %v3291
        %3383 = vmatprep.subr.bf16.mxu0 0
        %3384 = vmatpush1.bf16.msra.mxu0 %v3290
        %3385 = vmatprep.subr.bf16.mxu0 0
        %3386 = vmatpush1.bf16.msra.mxu0 %v3289
        %3387 = vmatprep.subr.bf16.mxu0 0
        %3388 = vmatpush1.bf16.msra.mxu0 %v3288
        %3389 = vmatprep.subr.bf16.mxu0 0
        %3390 = vmatpush1.bf16.msra.mxu0 %v3287
        %3391 = vmatprep.subr.bf16.mxu0 0
        %3392 = vmatpush1.bf16.msra.mxu0 %v3286
        %3393 = vmatprep.subr.bf16.mxu0 0
        %3394 = vmatpush1.bf16.msra.mxu0 %v3285
        %3395 = vmatprep.subr.bf16.mxu0 0
        %3396 = vmatpush1.bf16.msra.mxu0 %v3284
        %3397 = vmatprep.subr.bf16.mxu0 0
        %3398 = vmatpush2.bf16.msra.mxu0 0
        %3399 = vmatprep.subr.bf16.mxu0 0
        %3400 = vmatpush2.bf16.msra.mxu0 0
        %3401 = vmatprep.subr.bf16.mxu0 0
        %3402 = vmatpush2.bf16.msra.mxu0 0
        %3403 = vmatprep.subr.bf16.mxu0 0
        %3404 = vmatpush2.bf16.msra.mxu0 0
        %3405 = vmatprep.subr.bf16.mxu0 0
        %3406 = vmatpush2.bf16.msra.mxu0 0
        %3407 = vmatprep.subr.bf16.mxu0 0
        %3408 = vmatpush2.bf16.msra.mxu0 0
        %3409 = vmatprep.subr.bf16.mxu0 0
        %3410 = vmatpush2.bf16.msra.mxu0 0
        %3411 = vmatprep.subr.bf16.mxu0 0
        %3412 = vmatpush2.bf16.msra.mxu0 0
        %3413 = vmatprep.mubr.bf16.mxu0 0
        %3414 = vmatmul.mubr.bf16.gmra.mxu0 %v3150
        %v3415 = vpop.f32.mrf.mxu0
        %v3416 = vadd.f32 %v3351, %v3415
        %v3417 = vpop.f32.mrf.mxu0
        %v3418 = vpop.f32.mrf.mxu0
        %v3419 = vadd.f32 %v3354, %v3418
        %v3420 = vpop.f32.mrf.mxu0
        %3421 = vmatprep.mubr.bf16.mxu0 0
        %3422 = vmatmul.mubr.bf16.gmra.mxu0 %v3153
        %v3423 = vpop.f32.mrf.mxu0
        %v3424 = vadd.f32 %v3359, %v3423
        %v3425 = vpop.f32.mrf.mxu0
        %v3426 = vpop.f32.mrf.mxu0
        %v3427 = vadd.f32 %v3362, %v3426
        %v3428 = vpop.f32.mrf.mxu0
        %3429 = vmatprep.mubr.bf16.mxu0 0
        %3430 = vmatmul.mubr.bf16.gmra.mxu0 %v3156
        %v3431 = vpop.f32.mrf.mxu0
        %v3432 = vadd.f32 %v3367, %v3431
        %v3433 = vpop.f32.mrf.mxu0
        %v3434 = vpop.f32.mrf.mxu0
        %v3435 = vadd.f32 %v3370, %v3434
        %v3436 = vpop.f32.mrf.mxu0
        %3437 = vmatprep.mubr.bf16.mxu0 0
        %3438 = vmatmul.mubr.bf16.gmra.mxu0 %v3159
        %v3439 = vpop.f32.mrf.mxu0
        %v3440 = vadd.f32 %v3375, %v3439
        %v3441 = vpop.f32.mrf.mxu0
        %v3442 = vpop.f32.mrf.mxu0
        %v3443 = vadd.f32 %v3378, %v3442
        %v3444 = vpop.f32.mrf.mxu0
        %3445 = vdwg.mxu0
        %v3446 = vadd.f32 %v3033, %v3416
        %v3447 = vadd.f32 %v3034, %v3419
        %v3448 = vadd.f32 %v3035, %v3424
        %v3449 = vadd.f32 %v3036, %v3427
        %v3450 = vadd.f32 %v3037, %v3432
        %v3451 = vadd.f32 %v3038, %v3435
        %v3452 = vadd.f32 %v3039, %v3440
        %v3453 = vadd.f32 %v3040, %v3443
        %s3454 = scalar_lea.vmem [#allocation2], 240
        %v3455 = vld [vmem:[%s3454] sm:$0xff]
        %v3456 = vld [vmem:[%s3454 + $0x8] sm:$0xf]
        %v3457 = vld [vmem:[%s3454 + $0xc] sm:$0xff]
        %v3458 = vld [vmem:[%s3454 + $0x14] sm:$0xf]
        %v3459 = vld [vmem:[%s3454 + $0x18] sm:$0xff]
        %v3460 = vld [vmem:[%s3454 + $0x20] sm:$0xf]
        %v3461 = vld [vmem:[%s3454 + $0x24] sm:$0xff]
        %v3462 = vld [vmem:[%s3454 + $0x2c] sm:$0xf]
        %v3463 = vld [vmem:[%s3454 + $0x30] sm:$0xff]
        %v3464 = vld [vmem:[%s3454 + $0x38] sm:$0xf]
        %v3465 = vld [vmem:[%s3454 + $0x3c] sm:$0xff]
        %v3466 = vld [vmem:[%s3454 + $0x44] sm:$0xf]
        %v3467 = vld [vmem:[%s3454 + $0x48] sm:$0xff]
        %v3468 = vld [vmem:[%s3454 + $0x50] sm:$0xf]
        %v3469 = vld [vmem:[%s3454 + $0x54] sm:$0xff]
        %v3470 = vld [vmem:[%s3454 + $0x5c] sm:$0xf]
        %s3471 = sadd.s32 288, %s1056
        %s3472 = smul.addr %s3471, 4
        %s3473 = scalar_lea.vmem %s1, %s3472
        %v3474 = vld [vmem:[%s3473] sm:$0xf]
        %v3475 = vld [vmem:[%s3473 + $0x4] sm:$0xf]
        %v3476 = vld [vmem:[%s3473 + $0x8] sm:$0xf]
        %v3477 = vld [vmem:[%s3473 + $0xc] sm:$0xf]
        %v3478 = vld [vmem:[%s3473 + $0x10] sm:$0xf]
        %v3479 = vld [vmem:[%s3473 + $0x14] sm:$0xf]
        %v3480 = vld [vmem:[%s3473 + $0x18] sm:$0xf]
        %v3481 = vld [vmem:[%s3473 + $0x1c] sm:$0xf]
        %v3482 = vld [vmem:[%s3473 + $0x20] sm:$0xf]
        %v3483 = vld [vmem:[%s3473 + $0x24] sm:$0xf]
        %v3484 = vld [vmem:[%s3473 + $0x28] sm:$0xf]
        %v3485 = vld [vmem:[%s3473 + $0x2c] sm:$0xf]
        %v3486 = vld [vmem:[%s3473 + $0x30] sm:$0xf]
        %v3487 = vld [vmem:[%s3473 + $0x34] sm:$0xf]
        %v3488 = vld [vmem:[%s3473 + $0x38] sm:$0xf]
        %v3489 = vld [vmem:[%s3473 + $0x3c] sm:$0xf]
        %v3490 = vld [vmem:[%s3473 + $0x40] sm:$0xf]
        %v3491 = vld [vmem:[%s3473 + $0x44] sm:$0xf]
        %v3492 = vld [vmem:[%s3473 + $0x48] sm:$0xf]
        %v3493 = vld [vmem:[%s3473 + $0x4c] sm:$0xf]
        %v3494 = vld [vmem:[%s3473 + $0x50] sm:$0xf]
        %v3495 = vld [vmem:[%s3473 + $0x54] sm:$0xf]
        %v3496 = vld [vmem:[%s3473 + $0x58] sm:$0xf]
        %v3497 = vld [vmem:[%s3473 + $0x5c] sm:$0xf]
        %v3498 = vld [vmem:[%s3473 + $0x60] sm:$0xf]
        %v3499 = vld [vmem:[%s3473 + $0x64] sm:$0xf]
        %v3500 = vld [vmem:[%s3473 + $0x68] sm:$0xf]
        %v3501 = vld [vmem:[%s3473 + $0x6c] sm:$0xf]
        %v3502 = vld [vmem:[%s3473 + $0x70] sm:$0xf]
        %v3503 = vld [vmem:[%s3473 + $0x74] sm:$0xf]
        %v3504 = vld [vmem:[%s3473 + $0x78] sm:$0xf]
        %v3505 = vld [vmem:[%s3473 + $0x7c] sm:$0xf]
        %v3506 = vld [vmem:[%s3473 + $0x80] sm:$0xf]
        %v3507 = vld [vmem:[%s3473 + $0x84] sm:$0xf]
        %v3508 = vld [vmem:[%s3473 + $0x88] sm:$0xf]
        %v3509 = vld [vmem:[%s3473 + $0x8c] sm:$0xf]
        %v3510 = vld [vmem:[%s3473 + $0x90] sm:$0xf]
        %v3511 = vld [vmem:[%s3473 + $0x94] sm:$0xf]
        %v3512 = vld [vmem:[%s3473 + $0x98] sm:$0xf]
        %v3513 = vld [vmem:[%s3473 + $0x9c] sm:$0xf]
        %v3514 = vld [vmem:[%s3473 + $0xa0] sm:$0xf]
        %v3515 = vld [vmem:[%s3473 + $0xa4] sm:$0xf]
        %v3516 = vld [vmem:[%s3473 + $0xa8] sm:$0xf]
        %v3517 = vld [vmem:[%s3473 + $0xac] sm:$0xf]
        %v3518 = vld [vmem:[%s3473 + $0xb0] sm:$0xf]
        %v3519 = vld [vmem:[%s3473 + $0xb4] sm:$0xf]
        %v3520 = vld [vmem:[%s3473 + $0xb8] sm:$0xf]
        %v3521 = vld [vmem:[%s3473 + $0xbc] sm:$0xf]
        %v3538 = vunpack.c.l.b16 %v3455
        %v3539 = vunpack.c.h.b16 %v3455
        %v3540 = vunpack.c.l.b16 %v3456
        %v3541 = vunpack.c.l.b16 %v3457
        %v3542 = vunpack.c.h.b16 %v3457
        %v3543 = vunpack.c.l.b16 %v3458
        %v3544 = vunpack.c.l.b16 %v3459
        %v3545 = vunpack.c.h.b16 %v3459
        %v3546 = vunpack.c.l.b16 %v3460
        %v3547 = vunpack.c.l.b16 %v3461
        %v3548 = vunpack.c.h.b16 %v3461
        %v3549 = vunpack.c.l.b16 %v3462
        %v3550 = vunpack.c.l.b16 %v3463
        %v3551 = vunpack.c.h.b16 %v3463
        %v3552 = vunpack.c.l.b16 %v3464
        %v3553 = vunpack.c.l.b16 %v3465
        %v3554 = vunpack.c.h.b16 %v3465
        %v3555 = vunpack.c.l.b16 %v3466
        %v3556 = vunpack.c.l.b16 %v3467
        %v3557 = vunpack.c.h.b16 %v3467
        %v3558 = vunpack.c.l.b16 %v3468
        %v3559 = vunpack.c.l.b16 %v3469
        %v3560 = vunpack.c.h.b16 %v3469
        %v3561 = vunpack.c.l.b16 %v3470
        %v3562 = vpack.c.b16 %v3541, %v3538
        %v3563 = vpack.c.b16 %v3542, %v3539
        %v3564 = vpack.c.b16 %v3543, %v3540
        %v3565 = vpack.c.b16 %v3547, %v3544
        %v3566 = vpack.c.b16 %v3548, %v3545
        %v3567 = vpack.c.b16 %v3549, %v3546
        %v3568 = vpack.c.b16 %v3553, %v3550
        %v3569 = vpack.c.b16 %v3554, %v3551
        %v3570 = vpack.c.b16 %v3555, %v3552
        %v3571 = vpack.c.b16 %v3559, %v3556
        %v3572 = vpack.c.b16 %v3560, %v3557
        %v3573 = vpack.c.b16 %v3561, %v3558
        %v3634 = vunpack.c.l.b16 %v3474
        %v3635 = vunpack.c.l.b16 %v3475
        %v3636 = vunpack.c.l.b16 %v3476
        %v3637 = vunpack.c.l.b16 %v3477
        %v3638 = vunpack.c.l.b16 %v3478
        %v3639 = vunpack.c.l.b16 %v3479
        %v3640 = vunpack.c.l.b16 %v3480
        %v3641 = vunpack.c.l.b16 %v3481
        %v3642 = vunpack.c.l.b16 %v3482
        %v3643 = vunpack.c.l.b16 %v3483
        %v3644 = vunpack.c.l.b16 %v3484
        %v3645 = vunpack.c.l.b16 %v3485
        %v3646 = vunpack.c.l.b16 %v3486
        %v3647 = vunpack.c.l.b16 %v3487
        %v3648 = vunpack.c.l.b16 %v3488
        %v3649 = vunpack.c.l.b16 %v3489
        %v3650 = vunpack.c.l.b16 %v3490
        %v3651 = vunpack.c.l.b16 %v3491
        %v3652 = vunpack.c.l.b16 %v3492
        %v3653 = vunpack.c.l.b16 %v3493
        %v3654 = vunpack.c.l.b16 %v3494
        %v3655 = vunpack.c.l.b16 %v3495
        %v3656 = vunpack.c.l.b16 %v3496
        %v3657 = vunpack.c.l.b16 %v3497
        %v3658 = vunpack.c.l.b16 %v3498
        %v3659 = vunpack.c.l.b16 %v3499
        %v3660 = vunpack.c.l.b16 %v3500
        %v3661 = vunpack.c.l.b16 %v3501
        %v3662 = vunpack.c.l.b16 %v3502
        %v3663 = vunpack.c.l.b16 %v3503
        %v3664 = vunpack.c.l.b16 %v3504
        %v3665 = vunpack.c.l.b16 %v3505
        %v3666 = vunpack.c.l.b16 %v3506
        %v3667 = vunpack.c.l.b16 %v3507
        %v3668 = vunpack.c.l.b16 %v3508
        %v3669 = vunpack.c.l.b16 %v3509
        %v3670 = vunpack.c.l.b16 %v3510
        %v3671 = vunpack.c.l.b16 %v3511
        %v3672 = vunpack.c.l.b16 %v3512
        %v3673 = vunpack.c.l.b16 %v3513
        %v3674 = vunpack.c.l.b16 %v3514
        %v3675 = vunpack.c.l.b16 %v3515
        %v3676 = vunpack.c.l.b16 %v3516
        %v3677 = vunpack.c.l.b16 %v3517
        %v3678 = vunpack.c.l.b16 %v3518
        %v3679 = vunpack.c.l.b16 %v3519
        %v3680 = vunpack.c.l.b16 %v3520
        %v3681 = vunpack.c.l.b16 %v3521
        %v3682 = vpack.c.b16 %v3635, %v3634
        %v3683 = vpack.c.b16 %v3637, %v3636
        %v3684 = vpack.c.b16 %v3639, %v3638
        %v3685 = vpack.c.b16 %v3641, %v3640
        %v3686 = vpack.c.b16 %v3643, %v3642
        %v3687 = vpack.c.b16 %v3645, %v3644
        %v3688 = vpack.c.b16 %v3647, %v3646
        %v3689 = vpack.c.b16 %v3649, %v3648
        %v3690 = vpack.c.b16 %v3651, %v3650
        %v3691 = vpack.c.b16 %v3653, %v3652
        %v3692 = vpack.c.b16 %v3655, %v3654
        %v3693 = vpack.c.b16 %v3657, %v3656
        %v3694 = vpack.c.b16 %v3659, %v3658
        %v3695 = vpack.c.b16 %v3661, %v3660
        %v3696 = vpack.c.b16 %v3663, %v3662
        %v3697 = vpack.c.b16 %v3665, %v3664
        %v3698 = vpack.c.b16 %v3667, %v3666
        %v3699 = vpack.c.b16 %v3669, %v3668
        %v3700 = vpack.c.b16 %v3671, %v3670
        %v3701 = vpack.c.b16 %v3673, %v3672
        %v3702 = vpack.c.b16 %v3675, %v3674
        %v3703 = vpack.c.b16 %v3677, %v3676
        %v3704 = vpack.c.b16 %v3679, %v3678
        %v3705 = vpack.c.b16 %v3681, %v3680
        %3730 = vmatprep.subr.bf16.mxu0 0
        %3731 = vmatpush1.bf16.msra.mxu0 %v3689
        %3732 = vmatprep.subr.bf16.mxu0 0
        %3733 = vmatpush1.bf16.msra.mxu0 %v3688
        %3734 = vmatprep.subr.bf16.mxu0 0
        %3735 = vmatpush1.bf16.msra.mxu0 %v3687
        %3736 = vmatprep.subr.bf16.mxu0 0
        %3737 = vmatpush1.bf16.msra.mxu0 %v3686
        %3738 = vmatprep.subr.bf16.mxu0 0
        %3739 = vmatpush1.bf16.msra.mxu0 %v3685
        %3740 = vmatprep.subr.bf16.mxu0 0
        %3741 = vmatpush1.bf16.msra.mxu0 %v3684
        %3742 = vmatprep.subr.bf16.mxu0 0
        %3743 = vmatpush1.bf16.msra.mxu0 %v3683
        %3744 = vmatprep.subr.bf16.mxu0 0
        %3745 = vmatpush1.bf16.msra.mxu0 %v3682
        %3746 = vmatprep.subr.bf16.mxu0 0
        %3747 = vmatpush2.bf16.msra.mxu0 %v3697
        %3748 = vmatprep.subr.bf16.mxu0 0
        %3749 = vmatpush2.bf16.msra.mxu0 %v3696
        %3750 = vmatprep.subr.bf16.mxu0 0
        %3751 = vmatpush2.bf16.msra.mxu0 %v3695
        %3752 = vmatprep.subr.bf16.mxu0 0
        %3753 = vmatpush2.bf16.msra.mxu0 %v3694
        %3754 = vmatprep.subr.bf16.mxu0 0
        %3755 = vmatpush2.bf16.msra.mxu0 %v3693
        %3756 = vmatprep.subr.bf16.mxu0 0
        %3757 = vmatpush2.bf16.msra.mxu0 %v3692
        %3758 = vmatprep.subr.bf16.mxu0 0
        %3759 = vmatpush2.bf16.msra.mxu0 %v3691
        %3760 = vmatprep.subr.bf16.mxu0 0
        %3761 = vmatpush2.bf16.msra.mxu0 %v3690
        %3762 = vmatprep.mubr.bf16.mxu0 %v3563
        %3763 = vmatmul.mubr.bf16.gmra.mxu0 %v3562
        %v3764 = vpop.f32.mrf.mxu0
        %v3765 = vadd.f32 0.0, %v3764
        %v3766 = vpop.f32.mrf.mxu0
        %v3767 = vpop.f32.mrf.mxu0
        %v3768 = vadd.f32 0.0, %v3767
        %v3769 = vpop.f32.mrf.mxu0
        %3770 = vmatprep.mubr.bf16.mxu0 %v3566
        %3771 = vmatmul.mubr.bf16.gmra.mxu0 %v3565
        %v3772 = vpop.f32.mrf.mxu0
        %v3773 = vadd.f32 0.0, %v3772
        %v3774 = vpop.f32.mrf.mxu0
        %v3775 = vpop.f32.mrf.mxu0
        %v3776 = vadd.f32 0.0, %v3775
        %v3777 = vpop.f32.mrf.mxu0
        %3778 = vmatprep.mubr.bf16.mxu0 %v3569
        %3779 = vmatmul.mubr.bf16.gmra.mxu0 %v3568
        %v3780 = vpop.f32.mrf.mxu0
        %v3781 = vadd.f32 0.0, %v3780
        %v3782 = vpop.f32.mrf.mxu0
        %v3783 = vpop.f32.mrf.mxu0
        %v3784 = vadd.f32 0.0, %v3783
        %v3785 = vpop.f32.mrf.mxu0
        %3786 = vmatprep.mubr.bf16.mxu0 %v3572
        %3787 = vmatmul.mubr.bf16.gmra.mxu0 %v3571
        %v3788 = vpop.f32.mrf.mxu0
        %v3789 = vadd.f32 0.0, %v3788
        %v3790 = vpop.f32.mrf.mxu0
        %v3791 = vpop.f32.mrf.mxu0
        %v3792 = vadd.f32 0.0, %v3791
        %v3793 = vpop.f32.mrf.mxu0
        %3794 = vdwg.mxu0
        %3795 = vmatprep.subr.bf16.mxu0 0
        %3796 = vmatpush1.bf16.msra.mxu0 %v3705
        %3797 = vmatprep.subr.bf16.mxu0 0
        %3798 = vmatpush1.bf16.msra.mxu0 %v3704
        %3799 = vmatprep.subr.bf16.mxu0 0
        %3800 = vmatpush1.bf16.msra.mxu0 %v3703
        %3801 = vmatprep.subr.bf16.mxu0 0
        %3802 = vmatpush1.bf16.msra.mxu0 %v3702
        %3803 = vmatprep.subr.bf16.mxu0 0
        %3804 = vmatpush1.bf16.msra.mxu0 %v3701
        %3805 = vmatprep.subr.bf16.mxu0 0
        %3806 = vmatpush1.bf16.msra.mxu0 %v3700
        %3807 = vmatprep.subr.bf16.mxu0 0
        %3808 = vmatpush1.bf16.msra.mxu0 %v3699
        %3809 = vmatprep.subr.bf16.mxu0 0
        %3810 = vmatpush1.bf16.msra.mxu0 %v3698
        %3811 = vmatprep.subr.bf16.mxu0 0
        %3812 = vmatpush2.bf16.msra.mxu0 0
        %3813 = vmatprep.subr.bf16.mxu0 0
        %3814 = vmatpush2.bf16.msra.mxu0 0
        %3815 = vmatprep.subr.bf16.mxu0 0
        %3816 = vmatpush2.bf16.msra.mxu0 0
        %3817 = vmatprep.subr.bf16.mxu0 0
        %3818 = vmatpush2.bf16.msra.mxu0 0
        %3819 = vmatprep.subr.bf16.mxu0 0
        %3820 = vmatpush2.bf16.msra.mxu0 0
        %3821 = vmatprep.subr.bf16.mxu0 0
        %3822 = vmatpush2.bf16.msra.mxu0 0
        %3823 = vmatprep.subr.bf16.mxu0 0
        %3824 = vmatpush2.bf16.msra.mxu0 0
        %3825 = vmatprep.subr.bf16.mxu0 0
        %3826 = vmatpush2.bf16.msra.mxu0 0
        %3827 = vmatprep.mubr.bf16.mxu0 0
        %3828 = vmatmul.mubr.bf16.gmra.mxu0 %v3564
        %v3829 = vpop.f32.mrf.mxu0
        %v3830 = vadd.f32 %v3765, %v3829
        %v3831 = vpop.f32.mrf.mxu0
        %v3832 = vpop.f32.mrf.mxu0
        %v3833 = vadd.f32 %v3768, %v3832
        %v3834 = vpop.f32.mrf.mxu0
        %3835 = vmatprep.mubr.bf16.mxu0 0
        %3836 = vmatmul.mubr.bf16.gmra.mxu0 %v3567
        %v3837 = vpop.f32.mrf.mxu0
        %v3838 = vadd.f32 %v3773, %v3837
        %v3839 = vpop.f32.mrf.mxu0
        %v3840 = vpop.f32.mrf.mxu0
        %v3841 = vadd.f32 %v3776, %v3840
        %v3842 = vpop.f32.mrf.mxu0
        %3843 = vmatprep.mubr.bf16.mxu0 0
        %3844 = vmatmul.mubr.bf16.gmra.mxu0 %v3570
        %v3845 = vpop.f32.mrf.mxu0
        %v3846 = vadd.f32 %v3781, %v3845
        %v3847 = vpop.f32.mrf.mxu0
        %v3848 = vpop.f32.mrf.mxu0
        %v3849 = vadd.f32 %v3784, %v3848
        %v3850 = vpop.f32.mrf.mxu0
        %3851 = vmatprep.mubr.bf16.mxu0 0
        %3852 = vmatmul.mubr.bf16.gmra.mxu0 %v3573
        %v3853 = vpop.f32.mrf.mxu0
        %v3854 = vadd.f32 %v3789, %v3853
        %v3855 = vpop.f32.mrf.mxu0
        %v3856 = vpop.f32.mrf.mxu0
        %v3857 = vadd.f32 %v3792, %v3856
        %v3858 = vpop.f32.mrf.mxu0
        %3859 = vdwg.mxu0
        %v3860 = vadd.f32 %v3446, %v3830
        %v3861 = vadd.f32 %v3447, %v3833
        %v3862 = vadd.f32 %v3448, %v3838
        %v3863 = vadd.f32 %v3449, %v3841
        %v3864 = vadd.f32 %v3450, %v3846
        %v3865 = vadd.f32 %v3451, %v3849
        %v3866 = vadd.f32 %v3452, %v3854
        %v3867 = vadd.f32 %v3453, %v3857
        %v3868 = vld [vmem:[%s3454 + $0xc] sm:$0xff]
        %v3869 = vld [vmem:[%s3454 + $0x14] sm:$0xf]
        %v3870 = vld [vmem:[%s3454 + $0x18] sm:$0xff]
        %v3871 = vld [vmem:[%s3454 + $0x20] sm:$0xf]
        %v3872 = vld [vmem:[%s3454 + $0x24] sm:$0xff]
        %v3873 = vld [vmem:[%s3454 + $0x2c] sm:$0xf]
        %v3874 = vld [vmem:[%s3454 + $0x30] sm:$0xff]
        %v3875 = vld [vmem:[%s3454 + $0x38] sm:$0xf]
        %v3876 = vld [vmem:[%s3454 + $0x3c] sm:$0xff]
        %v3877 = vld [vmem:[%s3454 + $0x44] sm:$0xf]
        %v3878 = vld [vmem:[%s3454 + $0x48] sm:$0xff]
        %v3879 = vld [vmem:[%s3454 + $0x50] sm:$0xf]
        %v3880 = vld [vmem:[%s3454 + $0x54] sm:$0xff]
        %v3881 = vld [vmem:[%s3454 + $0x5c] sm:$0xf]
        %v3882 = vld [vmem:[%s3454 + $0x60] sm:$0xff]
        %v3883 = vld [vmem:[%s3454 + $0x68] sm:$0xf]
        %s3884 = sadd.s32 336, %s1056
        %s3885 = smul.addr %s3884, 4
        %s3886 = scalar_lea.vmem %s1, %s3885
        %v3887 = vld [vmem:[%s3886] sm:$0xf]
        %v3888 = vld [vmem:[%s3886 + $0x4] sm:$0xf]
        %v3889 = vld [vmem:[%s3886 + $0x8] sm:$0xf]
        %v3890 = vld [vmem:[%s3886 + $0xc] sm:$0xf]
        %v3891 = vld [vmem:[%s3886 + $0x10] sm:$0xf]
        %v3892 = vld [vmem:[%s3886 + $0x14] sm:$0xf]
        %v3893 = vld [vmem:[%s3886 + $0x18] sm:$0xf]
        %v3894 = vld [vmem:[%s3886 + $0x1c] sm:$0xf]
        %v3895 = vld [vmem:[%s3886 + $0x20] sm:$0xf]
        %v3896 = vld [vmem:[%s3886 + $0x24] sm:$0xf]
        %v3897 = vld [vmem:[%s3886 + $0x28] sm:$0xf]
        %v3898 = vld [vmem:[%s3886 + $0x2c] sm:$0xf]
        %v3899 = vld [vmem:[%s3886 + $0x30] sm:$0xf]
        %v3900 = vld [vmem:[%s3886 + $0x34] sm:$0xf]
        %v3901 = vld [vmem:[%s3886 + $0x38] sm:$0xf]
        %v3902 = vld [vmem:[%s3886 + $0x3c] sm:$0xf]
        %v3903 = vld [vmem:[%s3886 + $0x40] sm:$0xf]
        %v3904 = vld [vmem:[%s3886 + $0x44] sm:$0xf]
        %v3905 = vld [vmem:[%s3886 + $0x48] sm:$0xf]
        %v3906 = vld [vmem:[%s3886 + $0x4c] sm:$0xf]
        %v3907 = vld [vmem:[%s3886 + $0x50] sm:$0xf]
        %v3908 = vld [vmem:[%s3886 + $0x54] sm:$0xf]
        %v3909 = vld [vmem:[%s3886 + $0x58] sm:$0xf]
        %v3910 = vld [vmem:[%s3886 + $0x5c] sm:$0xf]
        %v3911 = vld [vmem:[%s3886 + $0x60] sm:$0xf]
        %v3912 = vld [vmem:[%s3886 + $0x64] sm:$0xf]
        %v3913 = vld [vmem:[%s3886 + $0x68] sm:$0xf]
        %v3914 = vld [vmem:[%s3886 + $0x6c] sm:$0xf]
        %v3915 = vld [vmem:[%s3886 + $0x70] sm:$0xf]
        %v3916 = vld [vmem:[%s3886 + $0x74] sm:$0xf]
        %v3917 = vld [vmem:[%s3886 + $0x78] sm:$0xf]
        %v3918 = vld [vmem:[%s3886 + $0x7c] sm:$0xf]
        %v3919 = vld [vmem:[%s3886 + $0x80] sm:$0xf]
        %v3920 = vld [vmem:[%s3886 + $0x84] sm:$0xf]
        %v3921 = vld [vmem:[%s3886 + $0x88] sm:$0xf]
        %v3922 = vld [vmem:[%s3886 + $0x8c] sm:$0xf]
        %v3923 = vld [vmem:[%s3886 + $0x90] sm:$0xf]
        %v3924 = vld [vmem:[%s3886 + $0x94] sm:$0xf]
        %v3925 = vld [vmem:[%s3886 + $0x98] sm:$0xf]
        %v3926 = vld [vmem:[%s3886 + $0x9c] sm:$0xf]
        %v3927 = vld [vmem:[%s3886 + $0xa0] sm:$0xf]
        %v3928 = vld [vmem:[%s3886 + $0xa4] sm:$0xf]
        %v3929 = vld [vmem:[%s3886 + $0xa8] sm:$0xf]
        %v3930 = vld [vmem:[%s3886 + $0xac] sm:$0xf]
        %v3931 = vld [vmem:[%s3886 + $0xb0] sm:$0xf]
        %v3932 = vld [vmem:[%s3886 + $0xb4] sm:$0xf]
        %v3933 = vld [vmem:[%s3886 + $0xb8] sm:$0xf]
        %v3934 = vld [vmem:[%s3886 + $0xbc] sm:$0xf]
        %v3951 = vunpack.c.l.b16 %v3868
        %v3952 = vunpack.c.h.b16 %v3868
        %v3953 = vunpack.c.l.b16 %v3869
        %v3954 = vunpack.c.l.b16 %v3870
        %v3955 = vunpack.c.h.b16 %v3870
        %v3956 = vunpack.c.l.b16 %v3871
        %v3957 = vunpack.c.l.b16 %v3872
        %v3958 = vunpack.c.h.b16 %v3872
        %v3959 = vunpack.c.l.b16 %v3873
        %v3960 = vunpack.c.l.b16 %v3874
        %v3961 = vunpack.c.h.b16 %v3874
        %v3962 = vunpack.c.l.b16 %v3875
        %v3963 = vunpack.c.l.b16 %v3876
        %v3964 = vunpack.c.h.b16 %v3876
        %v3965 = vunpack.c.l.b16 %v3877
        %v3966 = vunpack.c.l.b16 %v3878
        %v3967 = vunpack.c.h.b16 %v3878
        %v3968 = vunpack.c.l.b16 %v3879
        %v3969 = vunpack.c.l.b16 %v3880
        %v3970 = vunpack.c.h.b16 %v3880
        %v3971 = vunpack.c.l.b16 %v3881
        %v3972 = vunpack.c.l.b16 %v3882
        %v3973 = vunpack.c.h.b16 %v3882
        %v3974 = vunpack.c.l.b16 %v3883
        %v3975 = vpack.c.b16 %v3954, %v3951
        %v3976 = vpack.c.b16 %v3955, %v3952
        %v3977 = vpack.c.b16 %v3956, %v3953
        %v3978 = vpack.c.b16 %v3960, %v3957
        %v3979 = vpack.c.b16 %v3961, %v3958
        %v3980 = vpack.c.b16 %v3962, %v3959
        %v3981 = vpack.c.b16 %v3966, %v3963
        %v3982 = vpack.c.b16 %v3967, %v3964
        %v3983 = vpack.c.b16 %v3968, %v3965
        %v3984 = vpack.c.b16 %v3972, %v3969
        %v3985 = vpack.c.b16 %v3973, %v3970
        %v3986 = vpack.c.b16 %v3974, %v3971
        %v4047 = vunpack.c.l.b16 %v3887
        %v4048 = vunpack.c.l.b16 %v3888
        %v4049 = vunpack.c.l.b16 %v3889
        %v4050 = vunpack.c.l.b16 %v3890
        %v4051 = vunpack.c.l.b16 %v3891
        %v4052 = vunpack.c.l.b16 %v3892
        %v4053 = vunpack.c.l.b16 %v3893
        %v4054 = vunpack.c.l.b16 %v3894
        %v4055 = vunpack.c.l.b16 %v3895
        %v4056 = vunpack.c.l.b16 %v3896
        %v4057 = vunpack.c.l.b16 %v3897
        %v4058 = vunpack.c.l.b16 %v3898
        %v4059 = vunpack.c.l.b16 %v3899
        %v4060 = vunpack.c.l.b16 %v3900
        %v4061 = vunpack.c.l.b16 %v3901
        %v4062 = vunpack.c.l.b16 %v3902
        %v4063 = vunpack.c.l.b16 %v3903
        %v4064 = vunpack.c.l.b16 %v3904
        %v4065 = vunpack.c.l.b16 %v3905
        %v4066 = vunpack.c.l.b16 %v3906
        %v4067 = vunpack.c.l.b16 %v3907
        %v4068 = vunpack.c.l.b16 %v3908
        %v4069 = vunpack.c.l.b16 %v3909
        %v4070 = vunpack.c.l.b16 %v3910
        %v4071 = vunpack.c.l.b16 %v3911
        %v4072 = vunpack.c.l.b16 %v3912
        %v4073 = vunpack.c.l.b16 %v3913
        %v4074 = vunpack.c.l.b16 %v3914
        %v4075 = vunpack.c.l.b16 %v3915
        %v4076 = vunpack.c.l.b16 %v3916
        %v4077 = vunpack.c.l.b16 %v3917
        %v4078 = vunpack.c.l.b16 %v3918
        %v4079 = vunpack.c.l.b16 %v3919
        %v4080 = vunpack.c.l.b16 %v3920
        %v4081 = vunpack.c.l.b16 %v3921
        %v4082 = vunpack.c.l.b16 %v3922
        %v4083 = vunpack.c.l.b16 %v3923
        %v4084 = vunpack.c.l.b16 %v3924
        %v4085 = vunpack.c.l.b16 %v3925
        %v4086 = vunpack.c.l.b16 %v3926
        %v4087 = vunpack.c.l.b16 %v3927
        %v4088 = vunpack.c.l.b16 %v3928
        %v4089 = vunpack.c.l.b16 %v3929
        %v4090 = vunpack.c.l.b16 %v3930
        %v4091 = vunpack.c.l.b16 %v3931
        %v4092 = vunpack.c.l.b16 %v3932
        %v4093 = vunpack.c.l.b16 %v3933
        %v4094 = vunpack.c.l.b16 %v3934
        %v4095 = vpack.c.b16 %v4048, %v4047
        %v4096 = vpack.c.b16 %v4050, %v4049
        %v4097 = vpack.c.b16 %v4052, %v4051
        %v4098 = vpack.c.b16 %v4054, %v4053
        %v4099 = vpack.c.b16 %v4056, %v4055
        %v4100 = vpack.c.b16 %v4058, %v4057
        %v4101 = vpack.c.b16 %v4060, %v4059
        %v4102 = vpack.c.b16 %v4062, %v4061
        %v4103 = vpack.c.b16 %v4064, %v4063
        %v4104 = vpack.c.b16 %v4066, %v4065
        %v4105 = vpack.c.b16 %v4068, %v4067
        %v4106 = vpack.c.b16 %v4070, %v4069
        %v4107 = vpack.c.b16 %v4072, %v4071
        %v4108 = vpack.c.b16 %v4074, %v4073
        %v4109 = vpack.c.b16 %v4076, %v4075
        %v4110 = vpack.c.b16 %v4078, %v4077
        %v4111 = vpack.c.b16 %v4080, %v4079
        %v4112 = vpack.c.b16 %v4082, %v4081
        %v4113 = vpack.c.b16 %v4084, %v4083
        %v4114 = vpack.c.b16 %v4086, %v4085
        %v4115 = vpack.c.b16 %v4088, %v4087
        %v4116 = vpack.c.b16 %v4090, %v4089
        %v4117 = vpack.c.b16 %v4092, %v4091
        %v4118 = vpack.c.b16 %v4094, %v4093
        %4143 = vmatprep.subr.bf16.mxu0 0
        %4144 = vmatpush1.bf16.msra.mxu0 %v4102
        %4145 = vmatprep.subr.bf16.mxu0 0
        %4146 = vmatpush1.bf16.msra.mxu0 %v4101
        %4147 = vmatprep.subr.bf16.mxu0 0
        %4148 = vmatpush1.bf16.msra.mxu0 %v4100
        %4149 = vmatprep.subr.bf16.mxu0 0
        %4150 = vmatpush1.bf16.msra.mxu0 %v4099
        %4151 = vmatprep.subr.bf16.mxu0 0
        %4152 = vmatpush1.bf16.msra.mxu0 %v4098
        %4153 = vmatprep.subr.bf16.mxu0 0
        %4154 = vmatpush1.bf16.msra.mxu0 %v4097
        %4155 = vmatprep.subr.bf16.mxu0 0
        %4156 = vmatpush1.bf16.msra.mxu0 %v4096
        %4157 = vmatprep.subr.bf16.mxu0 0
        %4158 = vmatpush1.bf16.msra.mxu0 %v4095
        %4159 = vmatprep.subr.bf16.mxu0 0
        %4160 = vmatpush2.bf16.msra.mxu0 %v4110
        %4161 = vmatprep.subr.bf16.mxu0 0
        %4162 = vmatpush2.bf16.msra.mxu0 %v4109
        %4163 = vmatprep.subr.bf16.mxu0 0
        %4164 = vmatpush2.bf16.msra.mxu0 %v4108
        %4165 = vmatprep.subr.bf16.mxu0 0
        %4166 = vmatpush2.bf16.msra.mxu0 %v4107
        %4167 = vmatprep.subr.bf16.mxu0 0
        %4168 = vmatpush2.bf16.msra.mxu0 %v4106
        %4169 = vmatprep.subr.bf16.mxu0 0
        %4170 = vmatpush2.bf16.msra.mxu0 %v4105
        %4171 = vmatprep.subr.bf16.mxu0 0
        %4172 = vmatpush2.bf16.msra.mxu0 %v4104
        %4173 = vmatprep.subr.bf16.mxu0 0
        %4174 = vmatpush2.bf16.msra.mxu0 %v4103
        %4175 = vmatprep.mubr.bf16.mxu0 %v3976
        %4176 = vmatmul.mubr.bf16.gmra.mxu0 %v3975
        %v4177 = vpop.f32.mrf.mxu0
        %v4178 = vadd.f32 0.0, %v4177
        %v4179 = vpop.f32.mrf.mxu0
        %v4180 = vpop.f32.mrf.mxu0
        %v4181 = vadd.f32 0.0, %v4180
        %v4182 = vpop.f32.mrf.mxu0
        %4183 = vmatprep.mubr.bf16.mxu0 %v3979
        %4184 = vmatmul.mubr.bf16.gmra.mxu0 %v3978
        %v4185 = vpop.f32.mrf.mxu0
        %v4186 = vadd.f32 0.0, %v4185
        %v4187 = vpop.f32.mrf.mxu0
        %v4188 = vpop.f32.mrf.mxu0
        %v4189 = vadd.f32 0.0, %v4188
        %v4190 = vpop.f32.mrf.mxu0
        %4191 = vmatprep.mubr.bf16.mxu0 %v3982
        %4192 = vmatmul.mubr.bf16.gmra.mxu0 %v3981
        %v4193 = vpop.f32.mrf.mxu0
        %v4194 = vadd.f32 0.0, %v4193
        %v4195 = vpop.f32.mrf.mxu0
        %v4196 = vpop.f32.mrf.mxu0
        %v4197 = vadd.f32 0.0, %v4196
        %v4198 = vpop.f32.mrf.mxu0
        %4199 = vmatprep.mubr.bf16.mxu0 %v3985
        %4200 = vmatmul.mubr.bf16.gmra.mxu0 %v3984
        %v4201 = vpop.f32.mrf.mxu0
        %v4202 = vadd.f32 0.0, %v4201
        %v4203 = vpop.f32.mrf.mxu0
        %v4204 = vpop.f32.mrf.mxu0
        %v4205 = vadd.f32 0.0, %v4204
        %v4206 = vpop.f32.mrf.mxu0
        %4207 = vdwg.mxu0
        %4208 = vmatprep.subr.bf16.mxu0 0
        %4209 = vmatpush1.bf16.msra.mxu0 %v4118
        %4210 = vmatprep.subr.bf16.mxu0 0
        %4211 = vmatpush1.bf16.msra.mxu0 %v4117
        %4212 = vmatprep.subr.bf16.mxu0 0
        %4213 = vmatpush1.bf16.msra.mxu0 %v4116
        %4214 = vmatprep.subr.bf16.mxu0 0
        %4215 = vmatpush1.bf16.msra.mxu0 %v4115
        %4216 = vmatprep.subr.bf16.mxu0 0
        %4217 = vmatpush1.bf16.msra.mxu0 %v4114
        %4218 = vmatprep.subr.bf16.mxu0 0
        %4219 = vmatpush1.bf16.msra.mxu0 %v4113
        %4220 = vmatprep.subr.bf16.mxu0 0
        %4221 = vmatpush1.bf16.msra.mxu0 %v4112
        %4222 = vmatprep.subr.bf16.mxu0 0
        %4223 = vmatpush1.bf16.msra.mxu0 %v4111
        %4224 = vmatprep.subr.bf16.mxu0 0
        %4225 = vmatpush2.bf16.msra.mxu0 0
        %4226 = vmatprep.subr.bf16.mxu0 0
        %4227 = vmatpush2.bf16.msra.mxu0 0
        %4228 = vmatprep.subr.bf16.mxu0 0
        %4229 = vmatpush2.bf16.msra.mxu0 0
        %4230 = vmatprep.subr.bf16.mxu0 0
        %4231 = vmatpush2.bf16.msra.mxu0 0
        %4232 = vmatprep.subr.bf16.mxu0 0
        %4233 = vmatpush2.bf16.msra.mxu0 0
        %4234 = vmatprep.subr.bf16.mxu0 0
        %4235 = vmatpush2.bf16.msra.mxu0 0
        %4236 = vmatprep.subr.bf16.mxu0 0
        %4237 = vmatpush2.bf16.msra.mxu0 0
        %4238 = vmatprep.subr.bf16.mxu0 0
        %4239 = vmatpush2.bf16.msra.mxu0 0
        %4240 = vmatprep.mubr.bf16.mxu0 0
        %4241 = vmatmul.mubr.bf16.gmra.mxu0 %v3977
        %v4242 = vpop.f32.mrf.mxu0
        %v4243 = vadd.f32 %v4178, %v4242
        %v4244 = vpop.f32.mrf.mxu0
        %v4245 = vpop.f32.mrf.mxu0
        %v4246 = vadd.f32 %v4181, %v4245
        %v4247 = vpop.f32.mrf.mxu0
        %4248 = vmatprep.mubr.bf16.mxu0 0
        %4249 = vmatmul.mubr.bf16.gmra.mxu0 %v3980
        %v4250 = vpop.f32.mrf.mxu0
        %v4251 = vadd.f32 %v4186, %v4250
        %v4252 = vpop.f32.mrf.mxu0
        %v4253 = vpop.f32.mrf.mxu0
        %v4254 = vadd.f32 %v4189, %v4253
        %v4255 = vpop.f32.mrf.mxu0
        %4256 = vmatprep.mubr.bf16.mxu0 0
        %4257 = vmatmul.mubr.bf16.gmra.mxu0 %v3983
        %v4258 = vpop.f32.mrf.mxu0
        %v4259 = vadd.f32 %v4194, %v4258
        %v4260 = vpop.f32.mrf.mxu0
        %v4261 = vpop.f32.mrf.mxu0
        %v4262 = vadd.f32 %v4197, %v4261
        %v4263 = vpop.f32.mrf.mxu0
        %4264 = vmatprep.mubr.bf16.mxu0 0
        %4265 = vmatmul.mubr.bf16.gmra.mxu0 %v3986
        %v4266 = vpop.f32.mrf.mxu0
        %v4267 = vadd.f32 %v4202, %v4266
        %v4268 = vpop.f32.mrf.mxu0
        %v4269 = vpop.f32.mrf.mxu0
        %v4270 = vadd.f32 %v4205, %v4269
        %v4271 = vpop.f32.mrf.mxu0
        %4272 = vdwg.mxu0
        %v4273 = vadd.f32 %v3860, %v4243
        %v4274 = vadd.f32 %v3861, %v4246
        %v4275 = vadd.f32 %v3862, %v4251
        %v4276 = vadd.f32 %v3863, %v4254
        %v4277 = vadd.f32 %v3864, %v4259
        %v4278 = vadd.f32 %v3865, %v4262
        %v4279 = vadd.f32 %v3866, %v4267
        %v4280 = vadd.f32 %v3867, %v4270
        %v4281 = vld [vmem:[%s3454 + $0x18] sm:$0xff]
        %v4282 = vld [vmem:[%s3454 + $0x20] sm:$0xf]
        %v4283 = vld [vmem:[%s3454 + $0x24] sm:$0xff]
        %v4284 = vld [vmem:[%s3454 + $0x2c] sm:$0xf]
        %v4285 = vld [vmem:[%s3454 + $0x30] sm:$0xff]
        %v4286 = vld [vmem:[%s3454 + $0x38] sm:$0xf]
        %v4287 = vld [vmem:[%s3454 + $0x3c] sm:$0xff]
        %v4288 = vld [vmem:[%s3454 + $0x44] sm:$0xf]
        %v4289 = vld [vmem:[%s3454 + $0x48] sm:$0xff]
        %v4290 = vld [vmem:[%s3454 + $0x50] sm:$0xf]
        %v4291 = vld [vmem:[%s3454 + $0x54] sm:$0xff]
        %v4292 = vld [vmem:[%s3454 + $0x5c] sm:$0xf]
        %v4293 = vld [vmem:[%s3454 + $0x60] sm:$0xff]
        %v4294 = vld [vmem:[%s3454 + $0x68] sm:$0xf]
        %v4295 = vld [vmem:[%s3454 + $0x6c] sm:$0xff]
        %v4296 = vld [vmem:[%s3454 + $0x74] sm:$0xf]
        %s4297 = sadd.s32 384, %s1056
        %s4298 = smul.addr %s4297, 4
        %s4299 = scalar_lea.vmem %s1, %s4298
        %v4300 = vld [vmem:[%s4299] sm:$0xf]
        %v4301 = vld [vmem:[%s4299 + $0x4] sm:$0xf]
        %v4302 = vld [vmem:[%s4299 + $0x8] sm:$0xf]
        %v4303 = vld [vmem:[%s4299 + $0xc] sm:$0xf]
        %v4304 = vld [vmem:[%s4299 + $0x10] sm:$0xf]
        %v4305 = vld [vmem:[%s4299 + $0x14] sm:$0xf]
        %v4306 = vld [vmem:[%s4299 + $0x18] sm:$0xf]
        %v4307 = vld [vmem:[%s4299 + $0x1c] sm:$0xf]
        %v4308 = vld [vmem:[%s4299 + $0x20] sm:$0xf]
        %v4309 = vld [vmem:[%s4299 + $0x24] sm:$0xf]
        %v4310 = vld [vmem:[%s4299 + $0x28] sm:$0xf]
        %v4311 = vld [vmem:[%s4299 + $0x2c] sm:$0xf]
        %v4312 = vld [vmem:[%s4299 + $0x30] sm:$0xf]
        %v4313 = vld [vmem:[%s4299 + $0x34] sm:$0xf]
        %v4314 = vld [vmem:[%s4299 + $0x38] sm:$0xf]
        %v4315 = vld [vmem:[%s4299 + $0x3c] sm:$0xf]
        %v4316 = vld [vmem:[%s4299 + $0x40] sm:$0xf]
        %v4317 = vld [vmem:[%s4299 + $0x44] sm:$0xf]
        %v4318 = vld [vmem:[%s4299 + $0x48] sm:$0xf]
        %v4319 = vld [vmem:[%s4299 + $0x4c] sm:$0xf]
        %v4320 = vld [vmem:[%s4299 + $0x50] sm:$0xf]
        %v4321 = vld [vmem:[%s4299 + $0x54] sm:$0xf]
        %v4322 = vld [vmem:[%s4299 + $0x58] sm:$0xf]
        %v4323 = vld [vmem:[%s4299 + $0x5c] sm:$0xf]
        %v4324 = vld [vmem:[%s4299 + $0x60] sm:$0xf]
        %v4325 = vld [vmem:[%s4299 + $0x64] sm:$0xf]
        %v4326 = vld [vmem:[%s4299 + $0x68] sm:$0xf]
        %v4327 = vld [vmem:[%s4299 + $0x6c] sm:$0xf]
        %v4328 = vld [vmem:[%s4299 + $0x70] sm:$0xf]
        %v4329 = vld [vmem:[%s4299 + $0x74] sm:$0xf]
        %v4330 = vld [vmem:[%s4299 + $0x78] sm:$0xf]
        %v4331 = vld [vmem:[%s4299 + $0x7c] sm:$0xf]
        %v4332 = vld [vmem:[%s4299 + $0x80] sm:$0xf]
        %v4333 = vld [vmem:[%s4299 + $0x84] sm:$0xf]
        %v4334 = vld [vmem:[%s4299 + $0x88] sm:$0xf]
        %v4335 = vld [vmem:[%s4299 + $0x8c] sm:$0xf]
        %v4336 = vld [vmem:[%s4299 + $0x90] sm:$0xf]
        %v4337 = vld [vmem:[%s4299 + $0x94] sm:$0xf]
        %v4338 = vld [vmem:[%s4299 + $0x98] sm:$0xf]
        %v4339 = vld [vmem:[%s4299 + $0x9c] sm:$0xf]
        %v4340 = vld [vmem:[%s4299 + $0xa0] sm:$0xf]
        %v4341 = vld [vmem:[%s4299 + $0xa4] sm:$0xf]
        %v4342 = vld [vmem:[%s4299 + $0xa8] sm:$0xf]
        %v4343 = vld [vmem:[%s4299 + $0xac] sm:$0xf]
        %v4344 = vld [vmem:[%s4299 + $0xb0] sm:$0xf]
        %v4345 = vld [vmem:[%s4299 + $0xb4] sm:$0xf]
        %v4346 = vld [vmem:[%s4299 + $0xb8] sm:$0xf]
        %v4347 = vld [vmem:[%s4299 + $0xbc] sm:$0xf]
        %v4364 = vunpack.c.l.b16 %v4281
        %v4365 = vunpack.c.h.b16 %v4281
        %v4366 = vunpack.c.l.b16 %v4282
        %v4367 = vunpack.c.l.b16 %v4283
        %v4368 = vunpack.c.h.b16 %v4283
        %v4369 = vunpack.c.l.b16 %v4284
        %v4370 = vunpack.c.l.b16 %v4285
        %v4371 = vunpack.c.h.b16 %v4285
        %v4372 = vunpack.c.l.b16 %v4286
        %v4373 = vunpack.c.l.b16 %v4287
        %v4374 = vunpack.c.h.b16 %v4287
        %v4375 = vunpack.c.l.b16 %v4288
        %v4376 = vunpack.c.l.b16 %v4289
        %v4377 = vunpack.c.h.b16 %v4289
        %v4378 = vunpack.c.l.b16 %v4290
        %v4379 = vunpack.c.l.b16 %v4291
        %v4380 = vunpack.c.h.b16 %v4291
        %v4381 = vunpack.c.l.b16 %v4292
        %v4382 = vunpack.c.l.b16 %v4293
        %v4383 = vunpack.c.h.b16 %v4293
        %v4384 = vunpack.c.l.b16 %v4294
        %v4385 = vunpack.c.l.b16 %v4295
        %v4386 = vunpack.c.h.b16 %v4295
        %v4387 = vunpack.c.l.b16 %v4296
        %v4388 = vpack.c.b16 %v4367, %v4364
        %v4389 = vpack.c.b16 %v4368, %v4365
        %v4390 = vpack.c.b16 %v4369, %v4366
        %v4391 = vpack.c.b16 %v4373, %v4370
        %v4392 = vpack.c.b16 %v4374, %v4371
        %v4393 = vpack.c.b16 %v4375, %v4372
        %v4394 = vpack.c.b16 %v4379, %v4376
        %v4395 = vpack.c.b16 %v4380, %v4377
        %v4396 = vpack.c.b16 %v4381, %v4378
        %v4397 = vpack.c.b16 %v4385, %v4382
        %v4398 = vpack.c.b16 %v4386, %v4383
        %v4399 = vpack.c.b16 %v4387, %v4384
        %v4460 = vunpack.c.l.b16 %v4300
        %v4461 = vunpack.c.l.b16 %v4301
        %v4462 = vunpack.c.l.b16 %v4302
        %v4463 = vunpack.c.l.b16 %v4303
        %v4464 = vunpack.c.l.b16 %v4304
        %v4465 = vunpack.c.l.b16 %v4305
        %v4466 = vunpack.c.l.b16 %v4306
        %v4467 = vunpack.c.l.b16 %v4307
        %v4468 = vunpack.c.l.b16 %v4308
        %v4469 = vunpack.c.l.b16 %v4309
        %v4470 = vunpack.c.l.b16 %v4310
        %v4471 = vunpack.c.l.b16 %v4311
        %v4472 = vunpack.c.l.b16 %v4312
        %v4473 = vunpack.c.l.b16 %v4313
        %v4474 = vunpack.c.l.b16 %v4314
        %v4475 = vunpack.c.l.b16 %v4315
        %v4476 = vunpack.c.l.b16 %v4316
        %v4477 = vunpack.c.l.b16 %v4317
        %v4478 = vunpack.c.l.b16 %v4318
        %v4479 = vunpack.c.l.b16 %v4319
        %v4480 = vunpack.c.l.b16 %v4320
        %v4481 = vunpack.c.l.b16 %v4321
        %v4482 = vunpack.c.l.b16 %v4322
        %v4483 = vunpack.c.l.b16 %v4323
        %v4484 = vunpack.c.l.b16 %v4324
        %v4485 = vunpack.c.l.b16 %v4325
        %v4486 = vunpack.c.l.b16 %v4326
        %v4487 = vunpack.c.l.b16 %v4327
        %v4488 = vunpack.c.l.b16 %v4328
        %v4489 = vunpack.c.l.b16 %v4329
        %v4490 = vunpack.c.l.b16 %v4330
        %v4491 = vunpack.c.l.b16 %v4331
        %v4492 = vunpack.c.l.b16 %v4332
        %v4493 = vunpack.c.l.b16 %v4333
        %v4494 = vunpack.c.l.b16 %v4334
        %v4495 = vunpack.c.l.b16 %v4335
        %v4496 = vunpack.c.l.b16 %v4336
        %v4497 = vunpack.c.l.b16 %v4337
        %v4498 = vunpack.c.l.b16 %v4338
        %v4499 = vunpack.c.l.b16 %v4339
        %v4500 = vunpack.c.l.b16 %v4340
        %v4501 = vunpack.c.l.b16 %v4341
        %v4502 = vunpack.c.l.b16 %v4342
        %v4503 = vunpack.c.l.b16 %v4343
        %v4504 = vunpack.c.l.b16 %v4344
        %v4505 = vunpack.c.l.b16 %v4345
        %v4506 = vunpack.c.l.b16 %v4346
        %v4507 = vunpack.c.l.b16 %v4347
        %v4508 = vpack.c.b16 %v4461, %v4460
        %v4509 = vpack.c.b16 %v4463, %v4462
        %v4510 = vpack.c.b16 %v4465, %v4464
        %v4511 = vpack.c.b16 %v4467, %v4466
        %v4512 = vpack.c.b16 %v4469, %v4468
        %v4513 = vpack.c.b16 %v4471, %v4470
        %v4514 = vpack.c.b16 %v4473, %v4472
        %v4515 = vpack.c.b16 %v4475, %v4474
        %v4516 = vpack.c.b16 %v4477, %v4476
        %v4517 = vpack.c.b16 %v4479, %v4478
        %v4518 = vpack.c.b16 %v4481, %v4480
        %v4519 = vpack.c.b16 %v4483, %v4482
        %v4520 = vpack.c.b16 %v4485, %v4484
        %v4521 = vpack.c.b16 %v4487, %v4486
        %v4522 = vpack.c.b16 %v4489, %v4488
        %v4523 = vpack.c.b16 %v4491, %v4490
        %v4524 = vpack.c.b16 %v4493, %v4492
        %v4525 = vpack.c.b16 %v4495, %v4494
        %v4526 = vpack.c.b16 %v4497, %v4496
        %v4527 = vpack.c.b16 %v4499, %v4498
        %v4528 = vpack.c.b16 %v4501, %v4500
        %v4529 = vpack.c.b16 %v4503, %v4502
        %v4530 = vpack.c.b16 %v4505, %v4504
        %v4531 = vpack.c.b16 %v4507, %v4506
        %4556 = vmatprep.subr.bf16.mxu0 0
        %4557 = vmatpush1.bf16.msra.mxu0 %v4515
        %4558 = vmatprep.subr.bf16.mxu0 0
        %4559 = vmatpush1.bf16.msra.mxu0 %v4514
        %4560 = vmatprep.subr.bf16.mxu0 0
        %4561 = vmatpush1.bf16.msra.mxu0 %v4513
        %4562 = vmatprep.subr.bf16.mxu0 0
        %4563 = vmatpush1.bf16.msra.mxu0 %v4512
        %4564 = vmatprep.subr.bf16.mxu0 0
        %4565 = vmatpush1.bf16.msra.mxu0 %v4511
        %4566 = vmatprep.subr.bf16.mxu0 0
        %4567 = vmatpush1.bf16.msra.mxu0 %v4510
        %4568 = vmatprep.subr.bf16.mxu0 0
        %4569 = vmatpush1.bf16.msra.mxu0 %v4509
        %4570 = vmatprep.subr.bf16.mxu0 0
        %4571 = vmatpush1.bf16.msra.mxu0 %v4508
        %4572 = vmatprep.subr.bf16.mxu0 0
        %4573 = vmatpush2.bf16.msra.mxu0 %v4523
        %4574 = vmatprep.subr.bf16.mxu0 0
        %4575 = vmatpush2.bf16.msra.mxu0 %v4522
        %4576 = vmatprep.subr.bf16.mxu0 0
        %4577 = vmatpush2.bf16.msra.mxu0 %v4521
        %4578 = vmatprep.subr.bf16.mxu0 0
        %4579 = vmatpush2.bf16.msra.mxu0 %v4520
        %4580 = vmatprep.subr.bf16.mxu0 0
        %4581 = vmatpush2.bf16.msra.mxu0 %v4519
        %4582 = vmatprep.subr.bf16.mxu0 0
        %4583 = vmatpush2.bf16.msra.mxu0 %v4518
        %4584 = vmatprep.subr.bf16.mxu0 0
        %4585 = vmatpush2.bf16.msra.mxu0 %v4517
        %4586 = vmatprep.subr.bf16.mxu0 0
        %4587 = vmatpush2.bf16.msra.mxu0 %v4516
        %4588 = vmatprep.mubr.bf16.mxu0 %v4389
        %4589 = vmatmul.mubr.bf16.gmra.mxu0 %v4388
        %v4590 = vpop.f32.mrf.mxu0
        %v4591 = vadd.f32 0.0, %v4590
        %v4592 = vpop.f32.mrf.mxu0
        %v4593 = vpop.f32.mrf.mxu0
        %v4594 = vadd.f32 0.0, %v4593
        %v4595 = vpop.f32.mrf.mxu0
        %4596 = vmatprep.mubr.bf16.mxu0 %v4392
        %4597 = vmatmul.mubr.bf16.gmra.mxu0 %v4391
        %v4598 = vpop.f32.mrf.mxu0
        %v4599 = vadd.f32 0.0, %v4598
        %v4600 = vpop.f32.mrf.mxu0
        %v4601 = vpop.f32.mrf.mxu0
        %v4602 = vadd.f32 0.0, %v4601
        %v4603 = vpop.f32.mrf.mxu0
        %4604 = vmatprep.mubr.bf16.mxu0 %v4395
        %4605 = vmatmul.mubr.bf16.gmra.mxu0 %v4394
        %v4606 = vpop.f32.mrf.mxu0
        %v4607 = vadd.f32 0.0, %v4606
        %v4608 = vpop.f32.mrf.mxu0
        %v4609 = vpop.f32.mrf.mxu0
        %v4610 = vadd.f32 0.0, %v4609
        %v4611 = vpop.f32.mrf.mxu0
        %4612 = vmatprep.mubr.bf16.mxu0 %v4398
        %4613 = vmatmul.mubr.bf16.gmra.mxu0 %v4397
        %v4614 = vpop.f32.mrf.mxu0
        %v4615 = vadd.f32 0.0, %v4614
        %v4616 = vpop.f32.mrf.mxu0
        %v4617 = vpop.f32.mrf.mxu0
        %v4618 = vadd.f32 0.0, %v4617
        %v4619 = vpop.f32.mrf.mxu0
        %4620 = vdwg.mxu0
        %4621 = vmatprep.subr.bf16.mxu0 0
        %4622 = vmatpush1.bf16.msra.mxu0 %v4531
        %4623 = vmatprep.subr.bf16.mxu0 0
        %4624 = vmatpush1.bf16.msra.mxu0 %v4530
        %4625 = vmatprep.subr.bf16.mxu0 0
        %4626 = vmatpush1.bf16.msra.mxu0 %v4529
        %4627 = vmatprep.subr.bf16.mxu0 0
        %4628 = vmatpush1.bf16.msra.mxu0 %v4528
        %4629 = vmatprep.subr.bf16.mxu0 0
        %4630 = vmatpush1.bf16.msra.mxu0 %v4527
        %4631 = vmatprep.subr.bf16.mxu0 0
        %4632 = vmatpush1.bf16.msra.mxu0 %v4526
        %4633 = vmatprep.subr.bf16.mxu0 0
        %4634 = vmatpush1.bf16.msra.mxu0 %v4525
        %4635 = vmatprep.subr.bf16.mxu0 0
        %4636 = vmatpush1.bf16.msra.mxu0 %v4524
        %4637 = vmatprep.subr.bf16.mxu0 0
        %4638 = vmatpush2.bf16.msra.mxu0 0
        %4639 = vmatprep.subr.bf16.mxu0 0
        %4640 = vmatpush2.bf16.msra.mxu0 0
        %4641 = vmatprep.subr.bf16.mxu0 0
        %4642 = vmatpush2.bf16.msra.mxu0 0
        %4643 = vmatprep.subr.bf16.mxu0 0
        %4644 = vmatpush2.bf16.msra.mxu0 0
        %4645 = vmatprep.subr.bf16.mxu0 0
        %4646 = vmatpush2.bf16.msra.mxu0 0
        %4647 = vmatprep.subr.bf16.mxu0 0
        %4648 = vmatpush2.bf16.msra.mxu0 0
        %4649 = vmatprep.subr.bf16.mxu0 0
        %4650 = vmatpush2.bf16.msra.mxu0 0
        %4651 = vmatprep.subr.bf16.mxu0 0
        %4652 = vmatpush2.bf16.msra.mxu0 0
        %4653 = vmatprep.mubr.bf16.mxu0 0
        %4654 = vmatmul.mubr.bf16.gmra.mxu0 %v4390
        %v4655 = vpop.f32.mrf.mxu0
        %v4656 = vadd.f32 %v4591, %v4655
        %v4657 = vpop.f32.mrf.mxu0
        %v4658 = vpop.f32.mrf.mxu0
        %v4659 = vadd.f32 %v4594, %v4658
        %v4660 = vpop.f32.mrf.mxu0
        %4661 = vmatprep.mubr.bf16.mxu0 0
        %4662 = vmatmul.mubr.bf16.gmra.mxu0 %v4393
        %v4663 = vpop.f32.mrf.mxu0
        %v4664 = vadd.f32 %v4599, %v4663
        %v4665 = vpop.f32.mrf.mxu0
        %v4666 = vpop.f32.mrf.mxu0
        %v4667 = vadd.f32 %v4602, %v4666
        %v4668 = vpop.f32.mrf.mxu0
        %4669 = vmatprep.mubr.bf16.mxu0 0
        %4670 = vmatmul.mubr.bf16.gmra.mxu0 %v4396
        %v4671 = vpop.f32.mrf.mxu0
        %v4672 = vadd.f32 %v4607, %v4671
        %v4673 = vpop.f32.mrf.mxu0
        %v4674 = vpop.f32.mrf.mxu0
        %v4675 = vadd.f32 %v4610, %v4674
        %v4676 = vpop.f32.mrf.mxu0
        %4677 = vmatprep.mubr.bf16.mxu0 0
        %4678 = vmatmul.mubr.bf16.gmra.mxu0 %v4399
        %v4679 = vpop.f32.mrf.mxu0
        %v4680 = vadd.f32 %v4615, %v4679
        %v4681 = vpop.f32.mrf.mxu0
        %v4682 = vpop.f32.mrf.mxu0
        %v4683 = vadd.f32 %v4618, %v4682
        %v4684 = vpop.f32.mrf.mxu0
        %4685 = vdwg.mxu0
        %v4686 = vadd.f32 %v4273, %v4656
        %v4687 = vadd.f32 %v4274, %v4659
        %v4688 = vadd.f32 %v4275, %v4664
        %v4689 = vadd.f32 %v4276, %v4667
        %v4690 = vadd.f32 %v4277, %v4672
        %v4691 = vadd.f32 %v4278, %v4675
        %v4692 = vadd.f32 %v4279, %v4680
        %v4693 = vadd.f32 %v4280, %v4683
        %v4694 = vld [vmem:[%s205] sm:$0x1]
        %v4696 = vlaneseq
        %v4697 = vshrl.u32 %v4696, 7
        %v4698 = vsub.s32 0, %v4697
        %v4699 = vrot.slane %v4694, %v4698
        %v4701 = vadd.f32 %v4686, %v4699
        %v4702 = vadd.f32 %v4687, %v4699
        %v4703 = vadd.f32 %v4688, %v4699
        %v4704 = vadd.f32 %v4689, %v4699
        %v4705 = vadd.f32 %v4690, %v4699
        %v4706 = vadd.f32 %v4691, %v4699
        %v4707 = vadd.f32 %v4692, %v4699
        %v4708 = vadd.f32 %v4693, %v4699
        %4709 = vst [vmem:[%s197] sm:$0xff] %v4701
        %4710 = vst [vmem:[%s197 + $0x8] sm:$0xff] %v4702
        %4711 = vst [vmem:[%s197 + $0x10] sm:$0xff] %v4703
        %4712 = vst [vmem:[%s197 + $0x18] sm:$0xff] %v4704
        %4713 = vst [vmem:[%s197 + $0x20] sm:$0xff] %v4705
        %4714 = vst [vmem:[%s197 + $0x28] sm:$0xff] %v4706
        %4715 = vst [vmem:[%s197 + $0x30] sm:$0xff] %v4707
        %4716 = vst [vmem:[%s197 + $0x38] sm:$0xff] %v4708
        %s4717 = sand.u32 %s121, 1
        %s4718 = scalar_lea.sflag [#allocation4], %s4717
        %s4719 = sand.u32 %s121, 1
        %s4720 = smul.addr %s4719, 64
        %s4721 = scalar_lea.vmem [#allocation3], %s4720
        // Predicated region
        $region37: #{tpu_custom_call.1} parent=31 // pred_check
          %p4722 = pneg %p131
        $region38: #{tpu_custom_call.1} parent=31 // pred_check_branch
          %4724 = sbr.rel (%p4722) target = $region40
        $region39: #{tpu_custom_call.1} parent=31 // pred_region
          %s4726 = ssub.s32 1024, 1024
          %4727 = vsyncadd %s4718, %s4726
          %s4728 = smul.addr %s23, 8
          %s4729 = sadd.s32 %s24, %s4728
          %s4730 = smul.addr %s22, 64
          %s4731 = sadd.s32 %s4729, %s4730
          %s4732 = smul.addr %s4731, 128
          %s4733 = scalar_lea.hbm %s3, %s4732
          %s4734 = sshll.u32 %s4721, 4
          %s4735 = int_to_ptr.vmem [resolvable:$true] %s4734
          %4740 = dma.vmem_to_hbm [thread:$0]  %s4735, 1024, %s4733, %s4718, 128, 128, 8
        $region40: #{tpu_custom_call.1} parent=31 // pred_fallthru
          _
      $region32: #{tpu_custom_call.1} parent=5 // pred_fallthru
        _
      %p4741 = scmp.le.s32.totalorder 2, %s12
      // Predicated region
      $region41: #{tpu_custom_call.1} parent=5 // pred_check
        %p4742 = pneg %p4741
      $region42: #{tpu_custom_call.1} parent=5 // pred_check_branch
        %4744 = sbr.rel (%p4742) target = $region44
      $region43: #{tpu_custom_call.1} parent=5 // pred_region
        %s4745 = ssub.s32 %s12, 2
        // Predicated region
        $region45: #{tpu_custom_call.1} parent=43 // pred_check
          %p4746 = pneg %p137
        $region46: #{tpu_custom_call.1} parent=43 // pred_check_branch
          %4748 = sbr.rel (%p4746) target = $region48
        $region47: #{tpu_custom_call.1} parent=43 // pred_region
          %s4749 = sand.u32 %s122, 1
          %s4750 = scalar_lea.sflag [#allocation4], %s4749
          %s4751 = sand.u32 %s122, 1
          %s4752 = smul.addr %s4751, 64
          %s4753 = scalar_lea.vmem [#allocation3], %s4752
          %4754 = dma.done %s4750, 1024
        $region48: #{tpu_custom_call.1} parent=43 // pred_fallthru
          _
      $region44: #{tpu_custom_call.1} parent=5 // pred_fallthru
        _
    $region6: #{tpu_custom_call.1} parent=1 // loop_footer
      %s16 = sadd.s32 1, %s12
    $region7: #{tpu_custom_call.1} parent=1 // loop_footer_branch
      %11 = sbr.rel target = $region3
    $region8: #{tpu_custom_call.1} parent=1 // loop_exit
      _
    %4755 = vsyncpa [#allocation4], 1
    %s4756 = scalar_lea.sflag [#allocation4], 1
    %4757 = vsyncpa %s4756, 1

</llo_original>
